<compile_context>
chip_gen: v7x
topology: tpu7x:2x2x1
jax: 0.10.0
libtpu: 0.0.40
codegen_flags: <defaults>
</compile_context>

<pallas_src>
import functools

import jax
import jax.numpy as jnp
from jax.experimental import pallas as pl
from jax.experimental.pallas import tpu as pltpu


_BF16_MIN_CIN = 16   # use bf16 MXU operands only when the contraction is wide


# ---------------------------------------------------------------------------
# Kernel 1: fused BN1 (scale/shift) + ReLU + 1x1 conv (row-tiled matmul)
#           + fused partial sums for the downstream BN2 batch statistics.
# ---------------------------------------------------------------------------
def _bn_relu_conv1x1_kernel(m_valid, tm, masked, use_bf16,
                            x_ref, s_ref, t_ref, w_ref, b_ref,
                            z_ref, ssum_ref, ssq_ref):
    # x: (tm, Cin)  s/t: (1, Cin)  w: (Cin, C1)  b: (1, C1)
    # z: (tm, C1)   ssum/ssq: (1, 1, C1) per-block partial BN2 stats
    a = jnp.maximum(x_ref[...] * s_ref[...] + t_ref[...], 0.0)
    lhs = a.astype(jnp.bfloat16) if use_bf16 else a
    # TODO(synk): for very small Cin a VPU broadcast-FMA path could skip the
    #             MXU entirely; kernel 1 is memory-bound so the win is modest.
    z = jnp.dot(lhs, w_ref[...], preferred_element_type=jnp.float32) + b_ref[...]
    z_ref[...] = z

    if masked:   # static flag: rows were padded up to a tile multiple
        row = (pl.program_id(0) * tm
               + jax.lax.broadcasted_iota(jnp.int32, (tm, 1), 0))
        zm = jnp.where(row < m_valid, z, 0.0)
    else:
        zm = z
    c1 = z.shape[-1]
    ssum_ref[...] = jnp.sum(zm, axis=0, keepdims=True).reshape(1, 1, c1)
    ssq_ref[...] = jnp.sum(zm * z, axis=0, keepdims=True).reshape(1, 1, c1)


def _pick_row_tile(m, max_tm=1024, min_tm=128):
    """Row tile for the (m, Cin) @ (Cin, C1) matmul.

    Prefer a tile that divides m exactly (multiple of 8) so the wrapper never
    pays a pad copy of x_flat and a slice copy of z; fall back to a power of
    two with padding only if no reasonable divisor exists."""
    if m <= max_tm:
        return m
    top = (min(max_tm, m) // 8) * 8
    for tm in range(top, min_tm - 1, -8):
        if m % tm == 0:
            return tm
    tm = max_tm
    while tm > min_tm and -(-m // tm) < 8:
        tm //= 2
    return tm


def bn_relu_conv1x1_with_stats(x_flat, scale, shift, w, b):
    m, cin = x_flat.shape
    c1 = w.shape[1]
    use_bf16 = cin >= _BF16_MIN_CIN
    w_op = w.astype(jnp.bfloat16) if use_bf16 else w

    tm = _pick_row_tile(m)
    g = -(-m // tm)
    m_pad = g * tm
    if m_pad != m:
        x_flat = jnp.pad(x_flat, ((0, m_pad - m), (0, 0)))

    kernel = functools.partial(_bn_relu_conv1x1_kernel, m, tm, m_pad != m,
                               use_bf16)
    z, ssum, ssq = pl.pallas_call(
        kernel,
        out_shape=(
            jax.ShapeDtypeStruct((m_pad, c1), jnp.float32),
            jax.ShapeDtypeStruct((g, 1, c1), jnp.float32),
            jax.ShapeDtypeStruct((g, 1, c1), jnp.float32),
        ),
        grid_spec=pltpu.PrefetchScalarGridSpec(
            num_scalar_prefetch=0,
            grid=(g,),
            in_specs=[
                pl.BlockSpec((tm, cin), lambda i: (i, 0)),
                pl.BlockSpec((1, cin), lambda i: (0, 0)),
                pl.BlockSpec((1, cin), lambda i: (0, 0)),
                pl.BlockSpec((cin, c1), lambda i: (0, 0)),
                pl.BlockSpec((1, c1), lambda i: (0, 0)),
            ],
            out_specs=[
                pl.BlockSpec((tm, c1), lambda i: (i, 0)),
                pl.BlockSpec((1, 1, c1), lambda i: (i, 0, 0)),
                pl.BlockSpec((1, 1, c1), lambda i: (i, 0, 0)),
            ],
        ),
        compiler_params=pltpu.CompilerParams(dimension_semantics=("parallel",)),
    )(x_flat, scale, shift, w_op, b)

    if m_pad != m:
        z = z[:m]
    return z, jnp.sum(ssum, axis=(0, 1)), jnp.sum(ssq, axis=(0, 1))


# ---------------------------------------------------------------------------
# Kernel 2: fused BN2 (scale/shift) + ReLU + 3x3 conv (padding=1)
#   - grid (image, row-tile); 1-row halos via clamped 1-row BlockSpec inputs
#   - per dx: one bf16 matmul with a single <=128-lane output holding the
#     three dy taps in disjoint k-wide lane groups; dy row shifts are folded
#     with a full-width lane select, and the final dy sum uses pltpu.roll.
# ---------------------------------------------------------------------------
def _bn_relu_conv3x3_kernel(TH, W, C, K, KP,
                            zt_ref, zm_ref, zb_ref, s_ref, t_ref, w_ref, b_ref,
                            o_ref, pad_ref):
    # zt/zb: (1, 1, W, C) halo rows   zm: (1, TH, W, C)
    # s/t: (1, 1, C)   w: (3, C, KP) bf16   b: (1, 1, K)
    # o: (1, TH, W, K)   pad scratch: (TH + 2, W + 2, C) f32
    r = pl.program_id(1)
    last_r = pl.num_programs(1) - 1
    s = s_ref[...]
    t = t_ref[...]

    a_mid = jnp.maximum(zm_ref[0] * s + t, 0.0)                  # (TH, W, C)
    a_top = jnp.maximum(zt_ref[0] * s + t, 0.0)                  # (1, W, C)
    a_bot = jnp.maximum(zb_ref[0] * s + t, 0.0)                  # (1, W, C)
    # Halo rows outside the image become zeros (conv zero padding).
    a_top = a_top * (r > 0).astype(jnp.float32)
    a_bot = a_bot * (r < last_r).astype(jnp.float32)

    # Assemble the zero-padded activation tile; only the 1-pixel W border is
    # memset, everything else is overwritten every step.
    zero_col = jnp.zeros((TH + 2, 1, C), jnp.float32)
    pad_ref[:, 0:1, :] = zero_col
    pad_ref[:, W + 1:W + 2, :] = zero_col
    pad_ref[0:1, 1:W + 1, :] = a_top
    pad_ref[1:TH + 1, 1:W + 1, :] = a_mid
    pad_ref[TH + 1:TH + 2, 1:W + 1, :] = a_bot

    # p[rr, x, dy*K + c] = a_pad[rr, x + dx, :] @ w[dy, dx][:, c]
    # out[y, x, c] = sum_{dx, dy} p_dx[y + dy, x, dy*K + c]
    lane = jax.lax.broadcasted_iota(jnp.int32, (TH, W, KP), 2)
    acc = jnp.zeros((TH, W, KP), jnp.float32)
    for dx in range(3):                                          # static unroll
        cols = pad_ref[:, dx:dx + W, :].reshape((TH + 2) * W, C)
        p = jnp.dot(cols.astype(jnp.bfloat16), w_ref[dx],
                    preferred_element_type=jnp.float32)
        p = p.reshape(TH + 2, W, KP)
        acc = acc + jnp.where(lane < K, p[0:TH],
                              jnp.where(lane < 2 * K, p[1:TH + 1],
                                        p[2:TH + 2]))
    # Fold the three dy lane groups onto lanes [0, K): XLU rolls + VPU adds.
    comb = (acc
            + pltpu.roll(acc, shift=KP - K, axis=2)
            + pltpu.roll(acc, shift=KP - 2 * K, axis=2))
    out = comb[:, :, 0:K] + b_ref[...]
    o_ref[...] = out.reshape(1, TH, W, K)


def _pick_row_tile_h(h, max_th=32):
    """Largest row tile <= max_th dividing H that leaves >= 2 row tiles (so
    the pipeline has steps and both v7x TensorCores get work); fall back to
    the whole image for small / awkward H."""
    for th in range(min(max_th, h // 2), 3, -1):
        if h % th == 0:
            return th
    return h


def bn_relu_conv3x3(z_nhwc, scale, shift, w3, b, K, KP):
    N, H, W, C = z_nhwc.shape
    TH = _pick_row_tile_h(H)
    R = H // TH

    # Rough per-step VMEM bound: double-buffered ins/outs + weights + pad
    # scratch + matmul temporaries, with 2x headroom (capped for v7x).
    est = (2 * 4 * (TH * W * C + 2 * W * C + TH * W * K + 2 * C + K)
           + 2 * 2 * 3 * C * KP
           + 4 * (TH + 2) * (W + 2) * C
           + 8 * 4 * (TH + 2) * W * KP)
    vmem_limit = int(min(max(2 * est, 16 * 1024 * 1024), 40 * 1024 * 1024))

    kernel = functools.partial(_bn_relu_conv3x3_kernel, TH, W, C, K, KP)
    return pl.pallas_call(
        kernel,
        out_shape=jax.ShapeDtypeStruct((N, H, W, K), jnp.float32),
        grid_spec=pltpu.PrefetchScalarGridSpec(
            num_scalar_prefetch=0,
            grid=(N, R),
            in_specs=[
                # halo row above / tile body / halo row below (index clamped at
                # the image edges; the kernel zeroes the out-of-range halos)
                pl.BlockSpec(
                    (1, 1, W, C),
                    lambda n, r: (n, jnp.maximum(r * TH - 1, 0), 0, 0)),
                pl.BlockSpec((1, TH, W, C), lambda n, r: (n, r, 0, 0)),
                pl.BlockSpec(
                    (1, 1, W, C),
                    lambda n, r: (n, jnp.minimum((r + 1) * TH, H - 1), 0, 0)),
                pl.BlockSpec((1, 1, C), lambda n, r: (0, 0, 0)),
                pl.BlockSpec((1, 1, C), lambda n, r: (0, 0, 0)),
                pl.BlockSpec((3, C, KP), lambda n, r: (0, 0, 0)),
                pl.BlockSpec((1, 1, K), lambda n, r: (0, 0, 0)),
            ],
            out_specs=pl.BlockSpec((1, TH, W, K), lambda n, r: (n, r, 0, 0)),
            scratch_shapes=[pltpu.VMEM((TH + 2, W + 2, C), jnp.float32)],
        ),
        compiler_params=pltpu.CompilerParams(
            dimension_semantics=("parallel", "parallel"),
            vmem_limit_bytes=vmem_limit),
    )(z_nhwc, z_nhwc, z_nhwc, scale, shift, w3, b)


# ---------------------------------------------------------------------------
# BottleNeck forward (wrapper glue around the two kernels)
# ---------------------------------------------------------------------------
def _bn_affine(mean, var, gamma, beta, eps=1e-5):
    scale = gamma / jnp.sqrt(var + eps)
    shift = beta - mean * scale
    return scale, shift


def bottleneck_forward(x_nchw, params, k=32, eps=1e-5):
    N, Cin, H, W = x_nchw.shape
    C1 = 4 * k
    KP = max(128, -(-3 * k // 128) * 128)        # packed dy groups, lane padded
    x = jnp.transpose(x_nchw, (0, 2, 3, 1)).astype(jnp.float32)   # NHWC
    m = N * H * W

    # BN1 batch stats in ONE pass over x (training mode, biased variance).
    xs = jnp.sum(x, axis=(0, 1, 2))
    xss = jnp.sum(x * x, axis=(0, 1, 2))
    mean1 = xs / m
    var1 = jnp.maximum(xss / m - mean1 * mean1, 0.0)
    scale1, shift1 = _bn_affine(mean1, var1, params["bn1_gamma"],
                                params["bn1_beta"], eps)

    x_flat = x.reshape(m, Cin)
    z, zsum, zsq = bn_relu_conv1x1_with_stats(
        x_flat, scale1[None, :], shift1[None, :],
        params["w1"], params["b1"][None, :])                      # (m, 4k)

    # BN2 batch stats from the fused partial sums (single pass, biased).
    # NOTE: E[z^2] - E[z]^2 can cancel when |mean| >> std; fine in f32 here.
    mean2 = zsum / m
    var2 = jnp.maximum(zsq / m - mean2 * mean2, 0.0)
    scale2, shift2 = _bn_affine(mean2, var2, params["bn2_gamma"],
                                params["bn2_beta"], eps)

    # 3x3 weights packed for the dy-grouped 128-lane-output matmuls:
    #   w3[dx, :, dy*k : (dy+1)*k] = w2[dy, dx]   (zeros in lanes [3k, KP))
    w2r = params["w2"].reshape(3, 3, C1, k)                       # (dy,dx,C,k)
    w3 = jnp.transpose(w2r, (1, 2, 0, 3)).reshape(3, C1, 3 * k)
    w3 = jnp.pad(w3, ((0, 0), (0, 0), (0, KP - 3 * k))).astype(jnp.bfloat16)

    z4 = z.reshape(N, H, W, C1)
    left = bn_relu_conv3x3(z4, scale2.reshape(1, 1, C1),
                           shift2.reshape(1, 1, C1), w3,
                           params["b2"].reshape(1, 1, k), k, KP)  # (N,H,W,k)

    # TODO(synk): fuse this transpose + channel concat into kernel 2 (write the
    #             left channels at offset Cin of a preallocated NCHW output via
    #             input_output_aliases) to drop the remaining wrapper passes.
    left_nchw = jnp.transpose(left, (0, 3, 1, 2))
    return jnp.concatenate([x_nchw.astype(jnp.float32), left_nchw], axis=1)


# Plain-JAX reference (same math, including the bf16-operand / f32-accumulate
# matmuls, built from XLA ops) for the correctness check.
def bottleneck_reference(x_nchw, params, k=32, eps=1e-5):
    N, Cin, H, W = x_nchw.shape
    C1 = 4 * k
    x = jnp.transpose(x_nchw, (0, 2, 3, 1)).astype(jnp.float32)
    mean1 = jnp.mean(x, axis=(0, 1, 2))
    var1 = jnp.mean(jnp.square(x - mean1), axis=(0, 1, 2))
    s1, t1 = _bn_affine(mean1, var1, params["bn1_gamma"], params["bn1_beta"], eps)
    a = jnp.maximum(x * s1 + t1, 0.0).reshape(-1, Cin)
    if Cin >= _BF16_MIN_CIN:
        z = jnp.dot(a.astype(jnp.bfloat16), params["w1"].astype(jnp.bfloat16),
                    preferred_element_type=jnp.float32) + params["b1"]
    else:
        z = jnp.dot(a, params["w1"],
                    preferred_element_type=jnp.float32) + params["b1"]
    mean2 = jnp.mean(z, axis=0)
    var2 = jnp.mean(jnp.square(z - mean2), axis=0)
    s2, t2 = _bn_affine(mean2, var2, params["bn2_gamma"], params["bn2_beta"], eps)
    a2 = jnp.maximum(z.reshape(N, H, W, C1) * s2 + t2, 0.0)
    w_hwio = params["w2"].reshape(3, 3, C1, k)
    left = jax.lax.conv_general_dilated(
        a2.astype(jnp.bfloat16), w_hwio.astype(jnp.bfloat16),
        window_strides=(1, 1), padding=((1, 1), (1, 1)),
        dimension_numbers=("NHWC", "HWIO", "NHWC"),
        preferred_element_type=jnp.float32) + params["b2"]
    left_nchw = jnp.transpose(left, (0, 3, 1, 2))
    return jnp.concatenate([x_nchw.astype(jnp.float32), left_nchw], axis=1)


def init_params(key, inCH, k=32):
    C1 = 4 * k
    k1, k2, k3, k4 = jax.random.split(key, 4)
    bound1 = 1.0 / jnp.sqrt(inCH * 1.0)          # conv1: fan_in = inCH*1*1
    bound2 = 1.0 / jnp.sqrt(C1 * 9.0)            # conv2: fan_in = 4k*3*3
    return {
        "bn1_gamma": jnp.ones((inCH,), jnp.float32),
        "bn1_beta": jnp.zeros((inCH,), jnp.float32),
        "bn2_gamma": jnp.ones((C1,), jnp.float32),
        "bn2_beta": jnp.zeros((C1,), jnp.float32),
        # conv weights stored directly in kernel-friendly layout:
        #   w1: (Cin, 4k)    (== torch weight (4k,Cin,1,1) transposed)
        #   w2: (9, 4k, k)   (== torch weight (k,4k,3,3) -> (kh*kw, in, out))
        "w1": jax.random.uniform(k1, (inCH, C1), jnp.float32, -bound1, bound1),
        "b1": jax.random.uniform(k2, (C1,), jnp.float32, -bound1, bound1),
        "w2": jax.random.uniform(k3, (9, C1, k), jnp.float32, -bound2, bound2),
        "b2": jax.random.uniform(k4, (k,), jnp.float32, -bound2, bound2),
    }


if __name__ == "__main__":
    key = jax.random.PRNGKey(0)
    kx, kp = jax.random.split(key)

    N, inCH, H, W, k = 2, 4, 16, 16, 32
    x = jax.random.normal(kx, (N, inCH, H, W), jnp.float32)   # NCHW like torch
    params = init_params(kp, inCH, k)

    fwd = jax.jit(functools.partial(bottleneck_forward, k=k))
    out = jax.block_until_ready(fwd(x, params))
    assert out.shape == (N, inCH + k, H, W), out.shape

    ref = jax.block_until_ready(bottleneck_reference(x, params, k=k))
    assert jnp.allclose(out, ref, rtol=2e-3, atol=2e-3), float(
        jnp.max(jnp.abs(out - ref)))

    print("KERNEL_OK")
</pallas_src>

<mosaic_0001>
module attributes {stable_mosaic.version = 11 : i64} {
  func.func @_bn_relu_conv1x1_kernel(%arg0: i32, %arg1: memref<512x4xf32, #tpu.memory_space<vmem>>, %arg2: memref<1x4xf32, #tpu.memory_space<vmem>>, %arg3: memref<1x4xf32, #tpu.memory_space<vmem>>, %arg4: memref<4x128xf32, #tpu.memory_space<vmem>>, %arg5: memref<1x128xf32, #tpu.memory_space<vmem>>, %arg6: memref<512x128xf32, #tpu.memory_space<vmem>>, %arg7: memref<1x1x128xf32, #tpu.memory_space<vmem>>, %arg8: memref<1x1x128xf32, #tpu.memory_space<vmem>>) attributes {dimension_semantics = [#tpu.dimension_semantics<parallel>], iteration_bounds = array<i64: 1>, scalar_prefetch = 0 : i64, scratch_operands = 0 : i64, tpu.core_type = #tpu.core_type<tc>, window_params = [{transform_indices = @transform_0, window_bounds = array<i64: 512, 4>}, {pipeline_mode = #tpu.pipeline_mode<synchronous>, transform_indices = @transform_1, window_bounds = array<i64: 1, 4>}, {pipeline_mode = #tpu.pipeline_mode<synchronous>, transform_indices = @transform_2, window_bounds = array<i64: 1, 4>}, {pipeline_mode = #tpu.pipeline_mode<synchronous>, transform_indices = @transform_3, window_bounds = array<i64: 4, 128>}, {pipeline_mode = #tpu.pipeline_mode<synchronous>, transform_indices = @transform_4, window_bounds = array<i64: 1, 128>}, {transform_indices = @transform_5, window_bounds = array<i64: 512, 128>}, {transform_indices = @transform_6, window_bounds = array<i64: 1, 1, 128>}, {transform_indices = @transform_7, window_bounds = array<i64: 1, 1, 128>}]} {
    %c0 = arith.constant 0 : index
    %c0_0 = arith.constant 0 : index
    %0 = vector.load %arg1[%c0, %c0_0] : memref<512x4xf32, #tpu.memory_space<vmem>>, vector<512x4xf32>
    %c0_1 = arith.constant 0 : index
    %c0_2 = arith.constant 0 : index
    %1 = vector.load %arg2[%c0_1, %c0_2] : memref<1x4xf32, #tpu.memory_space<vmem>>, vector<1x4xf32>
    %2 = vector.broadcast %1 : vector<1x4xf32> to vector<512x4xf32>
    %3 = arith.mulf %0, %2 : vector<512x4xf32>
    %c0_3 = arith.constant 0 : index
    %c0_4 = arith.constant 0 : index
    %4 = vector.load %arg3[%c0_3, %c0_4] : memref<1x4xf32, #tpu.memory_space<vmem>>, vector<1x4xf32>
    %5 = vector.broadcast %4 : vector<1x4xf32> to vector<512x4xf32>
    %6 = arith.addf %3, %5 : vector<512x4xf32>
    %cst = arith.constant 0.000000e+00 : f32
    %7 = vector.broadcast %cst : f32 to vector<512x4xf32>
    %8 = arith.maximumf %6, %7 : vector<512x4xf32>
    %c0_5 = arith.constant 0 : index
    %c0_6 = arith.constant 0 : index
    %9 = vector.load %arg4[%c0_5, %c0_6] : memref<4x128xf32, #tpu.memory_space<vmem>>, vector<4x128xf32>
    %cst_7 = arith.constant dense<0.000000e+00> : vector<512x128xf32>
    %10 = tpu.matmul %8, %9, %cst_7 {dimension_numbers = #tpu.dot_dimension_numbers<[1], [0], [0], [1], [0, 0, 1, 1], [], []>} : vector<512x4xf32>, vector<4x128xf32>, vector<512x128xf32> -> vector<512x128xf32>
    %c0_8 = arith.constant 0 : index
    %c0_9 = arith.constant 0 : index
    %11 = vector.load %arg5[%c0_8, %c0_9] : memref<1x128xf32, #tpu.memory_space<vmem>>, vector<1x128xf32>
    %12 = vector.broadcast %11 : vector<1x128xf32> to vector<512x128xf32>
    %13 = arith.addf %10, %12 : vector<512x128xf32>
    %c0_10 = arith.constant 0 : index
    %c0_11 = arith.constant 0 : index
    %14 = vector.load %arg6[%c0_10, %c0_11] : memref<512x128xf32, #tpu.memory_space<vmem>>, vector<512x128xf32>
    tpu.vector_store %arg6[%c0_10, %c0_11], %13 {strides = array<i32>} : memref<512x128xf32, #tpu.memory_space<vmem>>, vector<512x128xf32>,
    %cst_12 = arith.constant dense<0.000000e+00> : vector<128xf32>
    %15 = vector.multi_reduction <add>, %13, %cst_12 [0] : vector<512x128xf32> to vector<128xf32>
    %16 = vector.shape_cast %15 : vector<128xf32> to vector<1x128xf32>
    %17 = vector.shape_cast %16 : vector<1x128xf32> to vector<1x1x128xf32>
    %c0_13 = arith.constant 0 : index
    %c0_14 = arith.constant 0 : index
    %c0_15 = arith.constant 0 : index
    %18 = vector.load %arg7[%c0_13, %c0_14, %c0_15] : memref<1x1x128xf32, #tpu.memory_space<vmem>>, vector<1x1x128xf32>
    tpu.vector_store %arg7[%c0_13, %c0_14, %c0_15], %17 {strides = array<i32>} : memref<1x1x128xf32, #tpu.memory_space<vmem>>, vector<1x1x128xf32>,
    %19 = arith.mulf %13, %13 : vector<512x128xf32>
    %cst_16 = arith.constant dense<0.000000e+00> : vector<128xf32>
    %20 = vector.multi_reduction <add>, %19, %cst_16 [0] : vector<512x128xf32> to vector<128xf32>
    %21 = vector.shape_cast %20 : vector<128xf32> to vector<1x128xf32>
    %22 = vector.shape_cast %21 : vector<1x128xf32> to vector<1x1x128xf32>
    %c0_17 = arith.constant 0 : index
    %c0_18 = arith.constant 0 : index
    %c0_19 = arith.constant 0 : index
    %23 = vector.load %arg8[%c0_17, %c0_18, %c0_19] : memref<1x1x128xf32, #tpu.memory_space<vmem>>, vector<1x1x128xf32>
    tpu.vector_store %arg8[%c0_17, %c0_18, %c0_19], %22 {strides = array<i32>} : memref<1x1x128xf32, #tpu.memory_space<vmem>>, vector<1x1x128xf32>,
    return
  }
  func.func @transform_0(%arg0: i32) -> (i32, i32) {
    %c0_i32 = arith.constant 0 : i32
    %c0_i32_0 = arith.constant 0 : i32
    return %arg0, %c0_i32 : i32, i32
  }
  func.func @transform_1(%arg0: i32) -> (i32, i32) {
    %c0_i32 = arith.constant 0 : i32
    %c0_i32_0 = arith.constant 0 : i32
    %c0_i32_1 = arith.constant 0 : i32
    return %c0_i32, %c0_i32_0 : i32, i32
  }
  func.func @transform_2(%arg0: i32) -> (i32, i32) {
    %c0_i32 = arith.constant 0 : i32
    %c0_i32_0 = arith.constant 0 : i32
    %c0_i32_1 = arith.constant 0 : i32
    return %c0_i32, %c0_i32_0 : i32, i32
  }
  func.func @transform_3(%arg0: i32) -> (i32, i32) {
    %c0_i32 = arith.constant 0 : i32
    %c0_i32_0 = arith.constant 0 : i32
    %c0_i32_1 = arith.constant 0 : i32
    return %c0_i32, %c0_i32_0 : i32, i32
  }
  func.func @transform_4(%arg0: i32) -> (i32, i32) {
    %c0_i32 = arith.constant 0 : i32
    %c0_i32_0 = arith.constant 0 : i32
    %c0_i32_1 = arith.constant 0 : i32
    return %c0_i32, %c0_i32_0 : i32, i32
  }
  func.func @transform_5(%arg0: i32) -> (i32, i32) {
    %c0_i32 = arith.constant 0 : i32
    %c0_i32_0 = arith.constant 0 : i32
    return %arg0, %c0_i32 : i32, i32
  }
  func.func @transform_6(%arg0: i32) -> (i32, i32, i32) {
    %c0_i32 = arith.constant 0 : i32
    %c0_i32_0 = arith.constant 0 : i32
    %c0_i32_1 = arith.constant 0 : i32
    return %arg0, %c0_i32, %c0_i32_0 : i32, i32, i32
  }
  func.func @transform_7(%arg0: i32) -> (i32, i32, i32) {
    %c0_i32 = arith.constant 0 : i32
    %c0_i32_0 = arith.constant 0 : i32
    %c0_i32_1 = arith.constant 0 : i32
    return %arg0, %c0_i32, %c0_i32_0 : i32, i32, i32
  }
}

module attributes {stable_mosaic.version = 11 : i64} {
  func.func @_bn_relu_conv3x3_kernel(%arg0: i32, %arg1: i32, %arg2: memref<1x1x16x128xf32, #tpu.memory_space<vmem>>, %arg3: memref<1x8x16x128xf32, #tpu.memory_space<vmem>>, %arg4: memref<1x1x16x128xf32, #tpu.memory_space<vmem>>, %arg5: memref<1x1x128xf32, #tpu.memory_space<vmem>>, %arg6: memref<1x1x128xf32, #tpu.memory_space<vmem>>, %arg7: memref<3x128x128xbf16, #tpu.memory_space<vmem>>, %arg8: memref<1x1x32xf32, #tpu.memory_space<vmem>>, %arg9: memref<1x8x16x32xf32, #tpu.memory_space<vmem>>, %arg10: memref<10x18x128xf32, #tpu.memory_space<vmem>>) attributes {dimension_semantics = [#tpu.dimension_semantics<parallel>, #tpu.dimension_semantics<parallel>], iteration_bounds = array<i64: 2, 2>, scalar_prefetch = 0 : i64, scratch_operands = 1 : i64, tpu.core_type = #tpu.core_type<tc>, window_params = [{transform_indices = @transform_0, window_bounds = array<i64: 1, 1, 16, 128>}, {transform_indices = @transform_1, window_bounds = array<i64: 1, 8, 16, 128>}, {transform_indices = @transform_2, window_bounds = array<i64: 1, 1, 16, 128>}, {pipeline_mode = #tpu.pipeline_mode<synchronous>, transform_indices = @transform_3, window_bounds = array<i64: 1, 1, 128>}, {pipeline_mode = #tpu.pipeline_mode<synchronous>, transform_indices = @transform_4, window_bounds = array<i64: 1, 1, 128>}, {pipeline_mode = #tpu.pipeline_mode<synchronous>, transform_indices = @transform_5, window_bounds = array<i64: 3, 128, 128>}, {pipeline_mode = #tpu.pipeline_mode<synchronous>, transform_indices = @transform_6, window_bounds = array<i64: 1, 1, 32>}, {transform_indices = @transform_7, window_bounds = array<i64: 1, 8, 16, 32>}]} {
    %c0 = arith.constant 0 : index
    %c0_0 = arith.constant 0 : index
    %c0_1 = arith.constant 0 : index
    %0 = vector.load %arg5[%c0, %c0_0, %c0_1] : memref<1x1x128xf32, #tpu.memory_space<vmem>>, vector<1x1x128xf32>
    %c0_2 = arith.constant 0 : index
    %c0_3 = arith.constant 0 : index
    %c0_4 = arith.constant 0 : index
    %1 = vector.load %arg6[%c0_2, %c0_3, %c0_4] : memref<1x1x128xf32, #tpu.memory_space<vmem>>, vector<1x1x128xf32>
    %c0_5 = arith.constant 0 : index
    %c0_6 = arith.constant 0 : index
    %c0_7 = arith.constant 0 : index
    %c0_8 = arith.constant 0 : index
    %2 = vector.load %arg3[%c0_5, %c0_6, %c0_7, %c0_8] : memref<1x8x16x128xf32, #tpu.memory_space<vmem>>, vector<1x8x16x128xf32>
    %3 = vector.shape_cast %2 : vector<1x8x16x128xf32> to vector<8x16x128xf32>
    %4 = vector.broadcast %0 : vector<1x1x128xf32> to vector<8x16x128xf32>
    %5 = arith.mulf %3, %4 : vector<8x16x128xf32>
    %6 = vector.broadcast %1 : vector<1x1x128xf32> to vector<8x16x128xf32>
    %7 = arith.addf %5, %6 : vector<8x16x128xf32>
    %cst = arith.constant 0.000000e+00 : f32
    %8 = vector.broadcast %cst : f32 to vector<8x16x128xf32>
    %9 = arith.maximumf %7, %8 : vector<8x16x128xf32>
    %c0_9 = arith.constant 0 : index
    %c0_10 = arith.constant 0 : index
    %c0_11 = arith.constant 0 : index
    %c0_12 = arith.constant 0 : index
    %10 = vector.load %arg2[%c0_9, %c0_10, %c0_11, %c0_12] : memref<1x1x16x128xf32, #tpu.memory_space<vmem>>, vector<1x1x16x128xf32>
    %11 = vector.shape_cast %10 : vector<1x1x16x128xf32> to vector<1x16x128xf32>
    %12 = vector.broadcast %0 : vector<1x1x128xf32> to vector<1x16x128xf32>
    %13 = arith.mulf %11, %12 : vector<1x16x128xf32>
    %14 = vector.broadcast %1 : vector<1x1x128xf32> to vector<1x16x128xf32>
    %15 = arith.addf %13, %14 : vector<1x16x128xf32>
    %cst_13 = arith.constant 0.000000e+00 : f32
    %16 = vector.broadcast %cst_13 : f32 to vector<1x16x128xf32>
    %17 = arith.maximumf %15, %16 : vector<1x16x128xf32>
    %c0_14 = arith.constant 0 : index
    %c0_15 = arith.constant 0 : index
    %c0_16 = arith.constant 0 : index
    %c0_17 = arith.constant 0 : index
    %18 = vector.load %arg4[%c0_14, %c0_15, %c0_16, %c0_17] : memref<1x1x16x128xf32, #tpu.memory_space<vmem>>, vector<1x1x16x128xf32>
    %19 = vector.shape_cast %18 : vector<1x1x16x128xf32> to vector<1x16x128xf32>
    %20 = vector.broadcast %0 : vector<1x1x128xf32> to vector<1x16x128xf32>
    %21 = arith.mulf %19, %20 : vector<1x16x128xf32>
    %22 = vector.broadcast %1 : vector<1x1x128xf32> to vector<1x16x128xf32>
    %23 = arith.addf %21, %22 : vector<1x16x128xf32>
    %cst_18 = arith.constant 0.000000e+00 : f32
    %24 = vector.broadcast %cst_18 : f32 to vector<1x16x128xf32>
    %25 = arith.maximumf %23, %24 : vector<1x16x128xf32>
    %c0_i32 = arith.constant 0 : i32
    %26 = arith.cmpi sgt, %arg1, %c0_i32 : i32
    %27 = arith.extui %26 : i1 to i32
    %28 = arith.sitofp %27 : i32 to f32
    %29 = vector.broadcast %28 : f32 to vector<1x16x128xf32>
    %30 = arith.mulf %17, %29 : vector<1x16x128xf32>
    %c1_i32 = arith.constant 1 : i32
    %31 = arith.cmpi slt, %arg1, %c1_i32 : i32
    %32 = arith.extui %31 : i1 to i32
    %33 = arith.sitofp %32 : i32 to f32
    %34 = vector.broadcast %33 : f32 to vector<1x16x128xf32>
    %35 = arith.mulf %25, %34 : vector<1x16x128xf32>
    %cst_19 = arith.constant 0.000000e+00 : f32
    %36 = vector.broadcast %cst_19 : f32 to vector<10x1x128xf32>
    %c0_20 = arith.constant 0 : index
    %c0_21 = arith.constant 0 : index
    %c0_22 = arith.constant 0 : index
    %37 = vector.load %arg10[%c0_20, %c0_21, %c0_22] : memref<10x18x128xf32, #tpu.memory_space<vmem>>, vector<10x1x128xf32>
    tpu.vector_store %arg10[%c0_20, %c0_21, %c0_22], %36 {strides = array<i32>} : memref<10x18x128xf32, #tpu.memory_space<vmem>>, vector<10x1x128xf32>,
    %c0_23 = arith.constant 0 : index
    %c17 = arith.constant 17 : index
    %c0_24 = arith.constant 0 : index
    %38 = vector.load %arg10[%c0_23, %c17, %c0_24] : memref<10x18x128xf32, #tpu.memory_space<vmem>>, vector<10x1x128xf32>
    tpu.vector_store %arg10[%c0_23, %c17, %c0_24], %36 {strides = array<i32>} : memref<10x18x128xf32, #tpu.memory_space<vmem>>, vector<10x1x128xf32>,
    %c0_25 = arith.constant 0 : index
    %c1 = arith.constant 1 : index
    %c0_26 = arith.constant 0 : index
    %39 = vector.load %arg10[%c0_25, %c1, %c0_26] : memref<10x18x128xf32, #tpu.memory_space<vmem>>, vector<1x16x128xf32>
    tpu.vector_store %arg10[%c0_25, %c1, %c0_26], %30 {strides = array<i32>} : memref<10x18x128xf32, #tpu.memory_space<vmem>>, vector<1x16x128xf32>,
    %c1_27 = arith.constant 1 : index
    %c1_28 = arith.constant 1 : index
    %c0_29 = arith.constant 0 : index
    %40 = vector.load %arg10[%c1_27, %c1_28, %c0_29] : memref<10x18x128xf32, #tpu.memory_space<vmem>>, vector<8x16x128xf32>
    tpu.vector_store %arg10[%c1_27, %c1_28, %c0_29], %9 {strides = array<i32>} : memref<10x18x128xf32, #tpu.memory_space<vmem>>, vector<8x16x128xf32>,
    %c9 = arith.constant 9 : index
    %c1_30 = arith.constant 1 : index
    %c0_31 = arith.constant 0 : index
    %41 = vector.load %arg10[%c9, %c1_30, %c0_31] : memref<10x18x128xf32, #tpu.memory_space<vmem>>, vector<1x16x128xf32>
    tpu.vector_store %arg10[%c9, %c1_30, %c0_31], %35 {strides = array<i32>} : memref<10x18x128xf32, #tpu.memory_space<vmem>>, vector<1x16x128xf32>,
    %42 = tpu.iota {dimensions = array<i32: 2>} : vector<8x16x128xi32>
    %cst_32 = arith.constant 0.000000e+00 : f32
    %43 = vector.broadcast %cst_32 : f32 to vector<8x16x128xf32>
    %c0_33 = arith.constant 0 : index
    %c0_34 = arith.constant 0 : index
    %c0_35 = arith.constant 0 : index
    %44 = vector.load %arg10[%c0_33, %c0_34, %c0_35] : memref<10x18x128xf32, #tpu.memory_space<vmem>>, vector<10x16x128xf32>
    %45 = vector.shape_cast %44 : vector<10x16x128xf32> to vector<160x128xf32>
    %46 = arith.truncf %45 : vector<160x128xf32> to vector<160x128xbf16>
    %c0_36 = arith.constant 0 : index
    %c0_37 = arith.constant 0 : index
    %c0_38 = arith.constant 0 : index
    %47 = vector.load %arg7[%c0_36, %c0_37, %c0_38] : memref<3x128x128xbf16, #tpu.memory_space<vmem>>, vector<1x128x128xbf16>
    %48 = vector.shape_cast %47 : vector<1x128x128xbf16> to vector<128x128xbf16>
    %cst_39 = arith.constant dense<0.000000e+00> : vector<160x128xf32>
    %49 = tpu.matmul %46, %48, %cst_39 {dimension_numbers = #tpu.dot_dimension_numbers<[1], [0], [0], [1], [0, 0, 1, 1], [], []>} : vector<160x128xbf16>, vector<128x128xbf16>, vector<160x128xf32> -> vector<160x128xf32>
    %50 = vector.shape_cast %49 : vector<160x128xf32> to vector<10x16x128xf32>
    %c32_i32 = arith.constant 32 : i32
    %51 = vector.broadcast %c32_i32 : i32 to vector<8x16x128xi32>
    %52 = arith.cmpi slt, %42, %51 : vector<8x16x128xi32>
    %53 = vector.extract_strided_slice %50 {offsets = [0, 0, 0], sizes = [8, 16, 128], strides = [1, 1, 1]} : vector<10x16x128xf32> to vector<8x16x128xf32>
    %c64_i32 = arith.constant 64 : i32
    %54 = vector.broadcast %c64_i32 : i32 to vector<8x16x128xi32>
    %55 = arith.cmpi slt, %42, %54 : vector<8x16x128xi32>
    %56 = vector.extract_strided_slice %50 {offsets = [1, 0, 0], sizes = [8, 16, 128], strides = [1, 1, 1]} : vector<10x16x128xf32> to vector<8x16x128xf32>
    %57 = vector.extract_strided_slice %50 {offsets = [2, 0, 0], sizes = [8, 16, 128], strides = [1, 1, 1]} : vector<10x16x128xf32> to vector<8x16x128xf32>
    %58 = arith.select %55, %56, %57 : vector<8x16x128xi1>, vector<8x16x128xf32>
    %59 = arith.select %52, %53, %58 : vector<8x16x128xi1>, vector<8x16x128xf32>
    %60 = arith.addf %43, %59 : vector<8x16x128xf32>
    %c0_40 = arith.constant 0 : index
    %c1_41 = arith.constant 1 : index
    %c0_42 = arith.constant 0 : index
    %61 = vector.load %arg10[%c0_40, %c1_41, %c0_42] : memref<10x18x128xf32, #tpu.memory_space<vmem>>, vector<10x16x128xf32>
    %62 = vector.shape_cast %61 : vector<10x16x128xf32> to vector<160x128xf32>
    %63 = arith.truncf %62 : vector<160x128xf32> to vector<160x128xbf16>
    %c1_43 = arith.constant 1 : index
    %c0_44 = arith.constant 0 : index
    %c0_45 = arith.constant 0 : index
    %64 = vector.load %arg7[%c1_43, %c0_44, %c0_45] : memref<3x128x128xbf16, #tpu.memory_space<vmem>>, vector<1x128x128xbf16>
    %65 = vector.shape_cast %64 : vector<1x128x128xbf16> to vector<128x128xbf16>
    %cst_46 = arith.constant dense<0.000000e+00> : vector<160x128xf32>
    %66 = tpu.matmul %63, %65, %cst_46 {dimension_numbers = #tpu.dot_dimension_numbers<[1], [0], [0], [1], [0, 0, 1, 1], [], []>} : vector<160x128xbf16>, vector<128x128xbf16>, vector<160x128xf32> -> vector<160x128xf32>
    %67 = vector.shape_cast %66 : vector<160x128xf32> to vector<10x16x128xf32>
    %c32_i32_47 = arith.constant 32 : i32
    %68 = vector.broadcast %c32_i32_47 : i32 to vector<8x16x128xi32>
    %69 = arith.cmpi slt, %42, %68 : vector<8x16x128xi32>
    %70 = vector.extract_strided_slice %67 {offsets = [0, 0, 0], sizes = [8, 16, 128], strides = [1, 1, 1]} : vector<10x16x128xf32> to vector<8x16x128xf32>
    %c64_i32_48 = arith.constant 64 : i32
    %71 = vector.broadcast %c64_i32_48 : i32 to vector<8x16x128xi32>
    %72 = arith.cmpi slt, %42, %71 : vector<8x16x128xi32>
    %73 = vector.extract_strided_slice %67 {offsets = [1, 0, 0], sizes = [8, 16, 128], strides = [1, 1, 1]} : vector<10x16x128xf32> to vector<8x16x128xf32>
    %74 = vector.extract_strided_slice %67 {offsets = [2, 0, 0], sizes = [8, 16, 128], strides = [1, 1, 1]} : vector<10x16x128xf32> to vector<8x16x128xf32>
    %75 = arith.select %72, %73, %74 : vector<8x16x128xi1>, vector<8x16x128xf32>
    %76 = arith.select %69, %70, %75 : vector<8x16x128xi1>, vector<8x16x128xf32>
    %77 = arith.addf %60, %76 : vector<8x16x128xf32>
    %c0_49 = arith.constant 0 : index
    %c2 = arith.constant 2 : index
    %c0_50 = arith.constant 0 : index
    %78 = vector.load %arg10[%c0_49, %c2, %c0_50] : memref<10x18x128xf32, #tpu.memory_space<vmem>>, vector<10x16x128xf32>
    %79 = vector.shape_cast %78 : vector<10x16x128xf32> to vector<160x128xf32>
    %80 = arith.truncf %79 : vector<160x128xf32> to vector<160x128xbf16>
    %c2_51 = arith.constant 2 : index
    %c0_52 = arith.constant 0 : index
    %c0_53 = arith.constant 0 : index
    %81 = vector.load %arg7[%c2_51, %c0_52, %c0_53] : memref<3x128x128xbf16, #tpu.memory_space<vmem>>, vector<1x128x128xbf16>
    %82 = vector.shape_cast %81 : vector<1x128x128xbf16> to vector<128x128xbf16>
    %cst_54 = arith.constant dense<0.000000e+00> : vector<160x128xf32>
    %83 = tpu.matmul %80, %82, %cst_54 {dimension_numbers = #tpu.dot_dimension_numbers<[1], [0], [0], [1], [0, 0, 1, 1], [], []>} : vector<160x128xbf16>, vector<128x128xbf16>, vector<160x128xf32> -> vector<160x128xf32>
    %84 = vector.shape_cast %83 : vector<160x128xf32> to vector<10x16x128xf32>
    %c32_i32_55 = arith.constant 32 : i32
    %85 = vector.broadcast %c32_i32_55 : i32 to vector<8x16x128xi32>
    %86 = arith.cmpi slt, %42, %85 : vector<8x16x128xi32>
    %87 = vector.extract_strided_slice %84 {offsets = [0, 0, 0], sizes = [8, 16, 128], strides = [1, 1, 1]} : vector<10x16x128xf32> to vector<8x16x128xf32>
    %c64_i32_56 = arith.constant 64 : i32
    %88 = vector.broadcast %c64_i32_56 : i32 to vector<8x16x128xi32>
    %89 = arith.cmpi slt, %42, %88 : vector<8x16x128xi32>
    %90 = vector.extract_strided_slice %84 {offsets = [1, 0, 0], sizes = [8, 16, 128], strides = [1, 1, 1]} : vector<10x16x128xf32> to vector<8x16x128xf32>
    %91 = vector.extract_strided_slice %84 {offsets = [2, 0, 0], sizes = [8, 16, 128], strides = [1, 1, 1]} : vector<10x16x128xf32> to vector<8x16x128xf32>
    %92 = arith.select %89, %90, %91 : vector<8x16x128xi1>, vector<8x16x128xf32>
    %93 = arith.select %86, %87, %92 : vector<8x16x128xi1>, vector<8x16x128xf32>
    %94 = arith.addf %77, %93 : vector<8x16x128xf32>
    %c96_i32 = arith.constant 96 : i32
    %95 = tpu.dynamic_rotate %94 by %c96_i32 dim 2 : vector<8x16x128xf32>, i32 -> vector<8x16x128xf32>
    %96 = arith.addf %94, %95 : vector<8x16x128xf32>
    %c64_i32_57 = arith.constant 64 : i32
    %97 = tpu.dynamic_rotate %94 by %c64_i32_57 dim 2 : vector<8x16x128xf32>, i32 -> vector<8x16x128xf32>
    %98 = arith.addf %96, %97 : vector<8x16x128xf32>
    %99 = vector.extract_strided_slice %98 {offsets = [0, 0, 0], sizes = [8, 16, 32], strides = [1, 1, 1]} : vector<8x16x128xf32> to vector<8x16x32xf32>
    %c0_58 = arith.constant 0 : index
    %c0_59 = arith.constant 0 : index
    %c0_60 = arith.constant 0 : index
    %100 = vector.load %arg8[%c0_58, %c0_59, %c0_60] : memref<1x1x32xf32, #tpu.memory_space<vmem>>, vector<1x1x32xf32>
    %101 = vector.broadcast %100 : vector<1x1x32xf32> to vector<8x16x32xf32>
    %102 = arith.addf %99, %101 : vector<8x16x32xf32>
    %103 = vector.shape_cast %102 : vector<8x16x32xf32> to vector<1x8x16x32xf32>
    %c0_61 = arith.constant 0 : index
    %c0_62 = arith.constant 0 : index
    %c0_63 = arith.constant 0 : index
    %c0_64 = arith.constant 0 : index
    %104 = vector.load %arg9[%c0_61, %c0_62, %c0_63, %c0_64] : memref<1x8x16x32xf32, #tpu.memory_space<vmem>>, vector<1x8x16x32xf32>
    tpu.vector_store %arg9[%c0_61, %c0_62, %c0_63, %c0_64], %103 {strides = array<i32>} : memref<1x8x16x32xf32, #tpu.memory_space<vmem>>, vector<1x8x16x32xf32>,
    return
  }
  func.func @transform_0(%arg0: i32, %arg1: i32) -> (i32, i32, i32, i32) {
    %c8_i32 = arith.constant 8 : i32
    %0 = arith.muli %arg1, %c8_i32 : i32
    %c1_i32 = arith.constant 1 : i32
    %1 = arith.subi %0, %c1_i32 : i32
    %c0_i32 = arith.constant 0 : i32
    %2 = arith.maxsi %1, %c0_i32 : i32
    %c0_i32_0 = arith.constant 0 : i32
    %c0_i32_1 = arith.constant 0 : i32
    %c0_i32_2 = arith.constant 0 : i32
    return %arg0, %2, %c0_i32_0, %c0_i32_1 : i32, i32, i32, i32
  }
  func.func @transform_1(%arg0: i32, %arg1: i32) -> (i32, i32, i32, i32) {
    %c0_i32 = arith.constant 0 : i32
    %c0_i32_0 = arith.constant 0 : i32
    %c0_i32_1 = arith.constant 0 : i32
    return %arg0, %arg1, %c0_i32, %c0_i32_0 : i32, i32, i32, i32
  }
  func.func @transform_2(%arg0: i32, %arg1: i32) -> (i32, i32, i32, i32) {
    %c1_i32 = arith.constant 1 : i32
    %0 = arith.addi %arg1, %c1_i32 : i32
    %c8_i32 = arith.constant 8 : i32
    %1 = arith.muli %0, %c8_i32 : i32
    %c15_i32 = arith.constant 15 : i32
    %2 = arith.minsi %1, %c15_i32 : i32
    %c0_i32 = arith.constant 0 : i32
    %c0_i32_0 = arith.constant 0 : i32
    %c0_i32_1 = arith.constant 0 : i32
    return %arg0, %2, %c0_i32, %c0_i32_0 : i32, i32, i32, i32
  }
  func.func @transform_3(%arg0: i32, %arg1: i32) -> (i32, i32, i32) {
    %c0_i32 = arith.constant 0 : i32
    %c0_i32_0 = arith.constant 0 : i32
    %c0_i32_1 = arith.constant 0 : i32
    %c0_i32_2 = arith.constant 0 : i32
    return %c0_i32, %c0_i32_0, %c0_i32_1 : i32, i32, i32
  }
  func.func @transform_4(%arg0: i32, %arg1: i32) -> (i32, i32, i32) {
    %c0_i32 = arith.constant 0 : i32
    %c0_i32_0 = arith.constant 0 : i32
    %c0_i32_1 = arith.constant 0 : i32
    %c0_i32_2 = arith.constant 0 : i32
    return %c0_i32, %c0_i32_0, %c0_i32_1 : i32, i32, i32
  }
  func.func @transform_5(%arg0: i32, %arg1: i32) -> (i32, i32, i32) {
    %c0_i32 = arith.constant 0 : i32
    %c0_i32_0 = arith.constant 0 : i32
    %c0_i32_1 = arith.constant 0 : i32
    %c0_i32_2 = arith.constant 0 : i32
    return %c0_i32, %c0_i32_0, %c0_i32_1 : i32, i32, i32
  }
  func.func @transform_6(%arg0: i32, %arg1: i32) -> (i32, i32, i32) {
    %c0_i32 = arith.constant 0 : i32
    %c0_i32_0 = arith.constant 0 : i32
    %c0_i32_1 = arith.constant 0 : i32
    %c0_i32_2 = arith.constant 0 : i32
    return %c0_i32, %c0_i32_0, %c0_i32_1 : i32, i32, i32
  }
  func.func @transform_7(%arg0: i32, %arg1: i32) -> (i32, i32, i32, i32) {
    %c0_i32 = arith.constant 0 : i32
    %c0_i32_0 = arith.constant 0 : i32
    %c0_i32_1 = arith.constant 0 : i32
    return %arg0, %arg1, %c0_i32, %c0_i32_0 : i32, i32, i32, i32
  }
}

</mosaic_0001>

<llo_original>
// kernel: bottleneck_forward.2
$region0: #{bottleneck_forward.2}
  #allocation0 [shape = 'u32[]', space=smem, size = 0x4, offset = 0x4, fixed_abs, tag = 'smem constant byte address 0x4 - core index']
  #allocation1 [shape = 'u32[144,128]{1,0:T(1,128)}', space=vmem, size = 0x12000, scoped, tag = 'internal scratch']
  %s0 = inlined_call_operand.vmem [shape: f32[512,4], index: 0, kind: input, shape index: {}]
  %s1 = inlined_call_operand.vmem [shape: f32[1,4], index: 1, kind: input, shape index: {}]
  %s2 = inlined_call_operand.vmem [shape: f32[1,4], index: 2, kind: input, shape index: {}]
  %s3 = inlined_call_operand.vmem [shape: f32[4,128], index: 3, kind: input, shape index: {}]
  %s4 = inlined_call_operand.vmem [shape: f32[1,128], index: 4, kind: input, shape index: {}]
  %s5 = inlined_call_operand.vmem [shape: f32[512,128], index: 5, kind: output, shape index: {0}]
  %s6 = inlined_call_operand.vmem [shape: f32[1,1,128], index: 6, kind: output, shape index: {1}]
  %s7 = inlined_call_operand.vmem [shape: f32[1,1,128], index: 7, kind: output, shape index: {2}]
  %8 = xla_tuple %s5, %s6, %s7
  %s9 = sld [smem:[#allocation0]]
  $region46: #{bottleneck_forward.2} parent=0
    _
  %s11 = ssub.s32 1, %s9
  %s12 = scalar_select 0, %s11, %s9
  // Predicated region
  $region2: #{bottleneck_forward.2} parent=0 // pred_check
    _
  $region3: #{bottleneck_forward.2} parent=0 // pred_check_branch
    %14 = sbr.rel (0) target = $region5
  $region4: #{bottleneck_forward.2} parent=0 // pred_region
    _
  $region5: #{bottleneck_forward.2} parent=0 // pred_fallthru
    _
  // Predicated region
  $region6: #{bottleneck_forward.2} parent=0 // pred_check
    _
  $region7: #{bottleneck_forward.2} parent=0 // pred_check_branch
    %16 = sbr.rel (0) target = $region9
  $region8: #{bottleneck_forward.2} parent=0 // pred_region
    _
  $region9: #{bottleneck_forward.2} parent=0 // pred_fallthru
    _
  // Predicated region
  $region10: #{bottleneck_forward.2} parent=0 // pred_check
    _
  $region11: #{bottleneck_forward.2} parent=0 // pred_check_branch
    %18 = sbr.rel (0) target = $region13
  $region12: #{bottleneck_forward.2} parent=0 // pred_region
    _
  $region13: #{bottleneck_forward.2} parent=0 // pred_fallthru
    _
  // Predicated region
  $region14: #{bottleneck_forward.2} parent=0 // pred_check
    _
  $region15: #{bottleneck_forward.2} parent=0 // pred_check_branch
    %20 = sbr.rel (0) target = $region17
  $region16: #{bottleneck_forward.2} parent=0 // pred_region
    _
  $region17: #{bottleneck_forward.2} parent=0 // pred_fallthru
    _
  // Predicated region
  $region18: #{bottleneck_forward.2} parent=0 // pred_check
    _
  $region19: #{bottleneck_forward.2} parent=0 // pred_check_branch
    %22 = sbr.rel (0) target = $region21
  $region20: #{bottleneck_forward.2} parent=0 // pred_region
    _
  $region21: #{bottleneck_forward.2} parent=0 // pred_fallthru
    _
  %v23 = vld [vmem:[%s0] sm:$0xff]
  %v24 = vld [vmem:[%s0 + $0x8] sm:$0xff]
  %v25 = vld [vmem:[%s0 + $0x10] sm:$0xff]
  %v26 = vld [vmem:[%s0 + $0x18] sm:$0xff]
  %v27 = vld [vmem:[%s0 + $0x20] sm:$0xff]
  %v28 = vld [vmem:[%s0 + $0x28] sm:$0xff]
  %v29 = vld [vmem:[%s0 + $0x30] sm:$0xff]
  %v30 = vld [vmem:[%s0 + $0x38] sm:$0xff]
  %v31 = vld [vmem:[%s0 + $0x40] sm:$0xff]
  %v32 = vld [vmem:[%s0 + $0x48] sm:$0xff]
  %v33 = vld [vmem:[%s0 + $0x50] sm:$0xff]
  %v34 = vld [vmem:[%s0 + $0x58] sm:$0xff]
  %v35 = vld [vmem:[%s0 + $0x60] sm:$0xff]
  %v36 = vld [vmem:[%s0 + $0x68] sm:$0xff]
  %v37 = vld [vmem:[%s0 + $0x70] sm:$0xff]
  %v38 = vld [vmem:[%s0 + $0x78] sm:$0xff]
  %v39 = vld [vmem:[%s0 + $0x80] sm:$0xff]
  %v40 = vld [vmem:[%s0 + $0x88] sm:$0xff]
  %v41 = vld [vmem:[%s0 + $0x90] sm:$0xff]
  %v42 = vld [vmem:[%s0 + $0x98] sm:$0xff]
  %v43 = vld [vmem:[%s0 + $0xa0] sm:$0xff]
  %v44 = vld [vmem:[%s0 + $0xa8] sm:$0xff]
  %v45 = vld [vmem:[%s0 + $0xb0] sm:$0xff]
  %v46 = vld [vmem:[%s0 + $0xb8] sm:$0xff]
  %v47 = vld [vmem:[%s0 + $0xc0] sm:$0xff]
  %v48 = vld [vmem:[%s0 + $0xc8] sm:$0xff]
  %v49 = vld [vmem:[%s0 + $0xd0] sm:$0xff]
  %v50 = vld [vmem:[%s0 + $0xd8] sm:$0xff]
  %v51 = vld [vmem:[%s0 + $0xe0] sm:$0xff]
  %v52 = vld [vmem:[%s0 + $0xe8] sm:$0xff]
  %v53 = vld [vmem:[%s0 + $0xf0] sm:$0xff]
  %v54 = vld [vmem:[%s0 + $0xf8] sm:$0xff]
  %v55 = vld [vmem:[%s0 + $0x100] sm:$0xff]
  %v56 = vld [vmem:[%s0 + $0x108] sm:$0xff]
  %v57 = vld [vmem:[%s0 + $0x110] sm:$0xff]
  %v58 = vld [vmem:[%s0 + $0x118] sm:$0xff]
  %v59 = vld [vmem:[%s0 + $0x120] sm:$0xff]
  %v60 = vld [vmem:[%s0 + $0x128] sm:$0xff]
  %v61 = vld [vmem:[%s0 + $0x130] sm:$0xff]
  %v62 = vld [vmem:[%s0 + $0x138] sm:$0xff]
  %v63 = vld [vmem:[%s0 + $0x140] sm:$0xff]
  %v64 = vld [vmem:[%s0 + $0x148] sm:$0xff]
  %v65 = vld [vmem:[%s0 + $0x150] sm:$0xff]
  %v66 = vld [vmem:[%s0 + $0x158] sm:$0xff]
  %v67 = vld [vmem:[%s0 + $0x160] sm:$0xff]
  %v68 = vld [vmem:[%s0 + $0x168] sm:$0xff]
  %v69 = vld [vmem:[%s0 + $0x170] sm:$0xff]
  %v70 = vld [vmem:[%s0 + $0x178] sm:$0xff]
  %v71 = vld [vmem:[%s0 + $0x180] sm:$0xff]
  %v72 = vld [vmem:[%s0 + $0x188] sm:$0xff]
  %v73 = vld [vmem:[%s0 + $0x190] sm:$0xff]
  %v74 = vld [vmem:[%s0 + $0x198] sm:$0xff]
  %v75 = vld [vmem:[%s0 + $0x1a0] sm:$0xff]
  %v76 = vld [vmem:[%s0 + $0x1a8] sm:$0xff]
  %v77 = vld [vmem:[%s0 + $0x1b0] sm:$0xff]
  %v78 = vld [vmem:[%s0 + $0x1b8] sm:$0xff]
  %v79 = vld [vmem:[%s0 + $0x1c0] sm:$0xff]
  %v80 = vld [vmem:[%s0 + $0x1c8] sm:$0xff]
  %v81 = vld [vmem:[%s0 + $0x1d0] sm:$0xff]
  %v82 = vld [vmem:[%s0 + $0x1d8] sm:$0xff]
  %v83 = vld [vmem:[%s0 + $0x1e0] sm:$0xff]
  %v84 = vld [vmem:[%s0 + $0x1e8] sm:$0xff]
  %v85 = vld [vmem:[%s0 + $0x1f0] sm:$0xff]
  %v86 = vld [vmem:[%s0 + $0x1f8] sm:$0xff]
  %v87 = vld [vmem:[%s1] sm:$0x1]
  %v89 = vlaneseq
  %v90 = vshrl.u32 %v89, 7
  %v91 = vsub.s32 0, %v90
  %v92 = vrot.slane %v87, %v91
  %v94 = vmul.f32 %v23, %v92
  %v95 = vmul.f32 %v24, %v92
  %v96 = vmul.f32 %v25, %v92
  %v97 = vmul.f32 %v26, %v92
  %v98 = vmul.f32 %v27, %v92
  %v99 = vmul.f32 %v28, %v92
  %v100 = vmul.f32 %v29, %v92
  %v101 = vmul.f32 %v30, %v92
  %v102 = vmul.f32 %v31, %v92
  %v103 = vmul.f32 %v32, %v92
  %v104 = vmul.f32 %v33, %v92
  %v105 = vmul.f32 %v34, %v92
  %v106 = vmul.f32 %v35, %v92
  %v107 = vmul.f32 %v36, %v92
  %v108 = vmul.f32 %v37, %v92
  %v109 = vmul.f32 %v38, %v92
  %v110 = vmul.f32 %v39, %v92
  %v111 = vmul.f32 %v40, %v92
  %v112 = vmul.f32 %v41, %v92
  %v113 = vmul.f32 %v42, %v92
  %v114 = vmul.f32 %v43, %v92
  %v115 = vmul.f32 %v44, %v92
  %v116 = vmul.f32 %v45, %v92
  %v117 = vmul.f32 %v46, %v92
  %v118 = vmul.f32 %v47, %v92
  %v119 = vmul.f32 %v48, %v92
  %v120 = vmul.f32 %v49, %v92
  %v121 = vmul.f32 %v50, %v92
  %v122 = vmul.f32 %v51, %v92
  %v123 = vmul.f32 %v52, %v92
  %v124 = vmul.f32 %v53, %v92
  %v125 = vmul.f32 %v54, %v92
  %v126 = vmul.f32 %v55, %v92
  %v127 = vmul.f32 %v56, %v92
  %v128 = vmul.f32 %v57, %v92
  %v129 = vmul.f32 %v58, %v92
  %v130 = vmul.f32 %v59, %v92
  %v131 = vmul.f32 %v60, %v92
  %v132 = vmul.f32 %v61, %v92
  %v133 = vmul.f32 %v62, %v92
  %v134 = vmul.f32 %v63, %v92
  %v135 = vmul.f32 %v64, %v92
  %v136 = vmul.f32 %v65, %v92
  %v137 = vmul.f32 %v66, %v92
  %v138 = vmul.f32 %v67, %v92
  %v139 = vmul.f32 %v68, %v92
  %v140 = vmul.f32 %v69, %v92
  %v141 = vmul.f32 %v70, %v92
  %v142 = vmul.f32 %v71, %v92
  %v143 = vmul.f32 %v72, %v92
  %v144 = vmul.f32 %v73, %v92
  %v145 = vmul.f32 %v74, %v92
  %v146 = vmul.f32 %v75, %v92
  %v147 = vmul.f32 %v76, %v92
  %v148 = vmul.f32 %v77, %v92
  %v149 = vmul.f32 %v78, %v92
  %v150 = vmul.f32 %v79, %v92
  %v151 = vmul.f32 %v80, %v92
  %v152 = vmul.f32 %v81, %v92
  %v153 = vmul.f32 %v82, %v92
  %v154 = vmul.f32 %v83, %v92
  %v155 = vmul.f32 %v84, %v92
  %v156 = vmul.f32 %v85, %v92
  %v157 = vmul.f32 %v86, %v92
  %v158 = vld [vmem:[%s2] sm:$0x1]
  %v160 = vlaneseq
  %v161 = vshrl.u32 %v160, 7
  %v162 = vsub.s32 0, %v161
  %v163 = vrot.slane %v158, %v162
  %v165 = vadd.f32 %v94, %v163
  %v166 = vadd.f32 %v95, %v163
  %v167 = vadd.f32 %v96, %v163
  %v168 = vadd.f32 %v97, %v163
  %v169 = vadd.f32 %v98, %v163
  %v170 = vadd.f32 %v99, %v163
  %v171 = vadd.f32 %v100, %v163
  %v172 = vadd.f32 %v101, %v163
  %v173 = vadd.f32 %v102, %v163
  %v174 = vadd.f32 %v103, %v163
  %v175 = vadd.f32 %v104, %v163
  %v176 = vadd.f32 %v105, %v163
  %v177 = vadd.f32 %v106, %v163
  %v178 = vadd.f32 %v107, %v163
  %v179 = vadd.f32 %v108, %v163
  %v180 = vadd.f32 %v109, %v163
  %v181 = vadd.f32 %v110, %v163
  %v182 = vadd.f32 %v111, %v163
  %v183 = vadd.f32 %v112, %v163
  %v184 = vadd.f32 %v113, %v163
  %v185 = vadd.f32 %v114, %v163
  %v186 = vadd.f32 %v115, %v163
  %v187 = vadd.f32 %v116, %v163
  %v188 = vadd.f32 %v117, %v163
  %v189 = vadd.f32 %v118, %v163
  %v190 = vadd.f32 %v119, %v163
  %v191 = vadd.f32 %v120, %v163
  %v192 = vadd.f32 %v121, %v163
  %v193 = vadd.f32 %v122, %v163
  %v194 = vadd.f32 %v123, %v163
  %v195 = vadd.f32 %v124, %v163
  %v196 = vadd.f32 %v125, %v163
  %v197 = vadd.f32 %v126, %v163
  %v198 = vadd.f32 %v127, %v163
  %v199 = vadd.f32 %v128, %v163
  %v200 = vadd.f32 %v129, %v163
  %v201 = vadd.f32 %v130, %v163
  %v202 = vadd.f32 %v131, %v163
  %v203 = vadd.f32 %v132, %v163
  %v204 = vadd.f32 %v133, %v163
  %v205 = vadd.f32 %v134, %v163
  %v206 = vadd.f32 %v135, %v163
  %v207 = vadd.f32 %v136, %v163
  %v208 = vadd.f32 %v137, %v163
  %v209 = vadd.f32 %v138, %v163
  %v210 = vadd.f32 %v139, %v163
  %v211 = vadd.f32 %v140, %v163
  %v212 = vadd.f32 %v141, %v163
  %v213 = vadd.f32 %v142, %v163
  %v214 = vadd.f32 %v143, %v163
  %v215 = vadd.f32 %v144, %v163
  %v216 = vadd.f32 %v145, %v163
  %v217 = vadd.f32 %v146, %v163
  %v218 = vadd.f32 %v147, %v163
  %v219 = vadd.f32 %v148, %v163
  %v220 = vadd.f32 %v149, %v163
  %v221 = vadd.f32 %v150, %v163
  %v222 = vadd.f32 %v151, %v163
  %v223 = vadd.f32 %v152, %v163
  %v224 = vadd.f32 %v153, %v163
  %v225 = vadd.f32 %v154, %v163
  %v226 = vadd.f32 %v155, %v163
  %v227 = vadd.f32 %v156, %v163
  %v228 = vadd.f32 %v157, %v163
  %v229 = vmax.f32 %v165, 0.0
  %v230 = vmax.f32 %v166, 0.0
  %v231 = vmax.f32 %v167, 0.0
  %v232 = vmax.f32 %v168, 0.0
  %v233 = vmax.f32 %v169, 0.0
  %v234 = vmax.f32 %v170, 0.0
  %v235 = vmax.f32 %v171, 0.0
  %v236 = vmax.f32 %v172, 0.0
  %v237 = vmax.f32 %v173, 0.0
  %v238 = vmax.f32 %v174, 0.0
  %v239 = vmax.f32 %v175, 0.0
  %v240 = vmax.f32 %v176, 0.0
  %v241 = vmax.f32 %v177, 0.0
  %v242 = vmax.f32 %v178, 0.0
  %v243 = vmax.f32 %v179, 0.0
  %v244 = vmax.f32 %v180, 0.0
  %v245 = vmax.f32 %v181, 0.0
  %v246 = vmax.f32 %v182, 0.0
  %v247 = vmax.f32 %v183, 0.0
  %v248 = vmax.f32 %v184, 0.0
  %v249 = vmax.f32 %v185, 0.0
  %v250 = vmax.f32 %v186, 0.0
  %v251 = vmax.f32 %v187, 0.0
  %v252 = vmax.f32 %v188, 0.0
  %v253 = vmax.f32 %v189, 0.0
  %v254 = vmax.f32 %v190, 0.0
  %v255 = vmax.f32 %v191, 0.0
  %v256 = vmax.f32 %v192, 0.0
  %v257 = vmax.f32 %v193, 0.0
  %v258 = vmax.f32 %v194, 0.0
  %v259 = vmax.f32 %v195, 0.0
  %v260 = vmax.f32 %v196, 0.0
  %v261 = vmax.f32 %v197, 0.0
  %v262 = vmax.f32 %v198, 0.0
  %v263 = vmax.f32 %v199, 0.0
  %v264 = vmax.f32 %v200, 0.0
  %v265 = vmax.f32 %v201, 0.0
  %v266 = vmax.f32 %v202, 0.0
  %v267 = vmax.f32 %v203, 0.0
  %v268 = vmax.f32 %v204, 0.0
  %v269 = vmax.f32 %v205, 0.0
  %v270 = vmax.f32 %v206, 0.0
  %v271 = vmax.f32 %v207, 0.0
  %v272 = vmax.f32 %v208, 0.0
  %v273 = vmax.f32 %v209, 0.0
  %v274 = vmax.f32 %v210, 0.0
  %v275 = vmax.f32 %v211, 0.0
  %v276 = vmax.f32 %v212, 0.0
  %v277 = vmax.f32 %v213, 0.0
  %v278 = vmax.f32 %v214, 0.0
  %v279 = vmax.f32 %v215, 0.0
  %v280 = vmax.f32 %v216, 0.0
  %v281 = vmax.f32 %v217, 0.0
  %v282 = vmax.f32 %v218, 0.0
  %v283 = vmax.f32 %v219, 0.0
  %v284 = vmax.f32 %v220, 0.0
  %v285 = vmax.f32 %v221, 0.0
  %v286 = vmax.f32 %v222, 0.0
  %v287 = vmax.f32 %v223, 0.0
  %v288 = vmax.f32 %v224, 0.0
  %v289 = vmax.f32 %v225, 0.0
  %v290 = vmax.f32 %v226, 0.0
  %v291 = vmax.f32 %v227, 0.0
  %v292 = vmax.f32 %v228, 0.0
  %v293 = vld [vmem:[%s3] sm:$0xf]
  %v294 = vld [vmem:[%s4] sm:$0x1]
  %v296 = vlaneseq
  %v297 = vshrl.u32 %v296, 7
  %v298 = vsub.s32 0, %v297
  %v299 = vrot.slane %v294, %v298
  %vm301 = vcmask 31744
  %v303 = vsel %vm301, %v229, 0
  %v306 = vsel %vm301, %v230, 0
  %v309 = vsel %vm301, %v231, 0
  %v312 = vsel %vm301, %v232, 0
  %v315 = vsel %vm301, %v233, 0
  %v318 = vsel %vm301, %v234, 0
  %v321 = vsel %vm301, %v235, 0
  %v324 = vsel %vm301, %v236, 0
  %v327 = vsel %vm301, %v237, 0
  %v330 = vsel %vm301, %v238, 0
  %v333 = vsel %vm301, %v239, 0
  %v336 = vsel %vm301, %v240, 0
  %v339 = vsel %vm301, %v241, 0
  %v342 = vsel %vm301, %v242, 0
  %v345 = vsel %vm301, %v243, 0
  %v348 = vsel %vm301, %v244, 0
  %v351 = vsel %vm301, %v245, 0
  %v354 = vsel %vm301, %v246, 0
  %v357 = vsel %vm301, %v247, 0
  %v360 = vsel %vm301, %v248, 0
  %v363 = vsel %vm301, %v249, 0
  %v366 = vsel %vm301, %v250, 0
  %v369 = vsel %vm301, %v251, 0
  %v372 = vsel %vm301, %v252, 0
  %v375 = vsel %vm301, %v253, 0
  %v378 = vsel %vm301, %v254, 0
  %v381 = vsel %vm301, %v255, 0
  %v384 = vsel %vm301, %v256, 0
  %v387 = vsel %vm301, %v257, 0
  %v390 = vsel %vm301, %v258, 0
  %v393 = vsel %vm301, %v259, 0
  %v396 = vsel %vm301, %v260, 0
  %v399 = vsel %vm301, %v261, 0
  %v402 = vsel %vm301, %v262, 0
  %v405 = vsel %vm301, %v263, 0
  %v408 = vsel %vm301, %v264, 0
  %v411 = vsel %vm301, %v265, 0
  %v414 = vsel %vm301, %v266, 0
  %v417 = vsel %vm301, %v267, 0
  %v420 = vsel %vm301, %v268, 0
  %v423 = vsel %vm301, %v269, 0
  %v426 = vsel %vm301, %v270, 0
  %v429 = vsel %vm301, %v271, 0
  %v432 = vsel %vm301, %v272, 0
  %v435 = vsel %vm301, %v273, 0
  %v438 = vsel %vm301, %v274, 0
  %v441 = vsel %vm301, %v275, 0
  %v444 = vsel %vm301, %v276, 0
  %v447 = vsel %vm301, %v277, 0
  %v450 = vsel %vm301, %v278, 0
  %v453 = vsel %vm301, %v279, 0
  %v456 = vsel %vm301, %v280, 0
  %v459 = vsel %vm301, %v281, 0
  %v462 = vsel %vm301, %v282, 0
  %v465 = vsel %vm301, %v283, 0
  %v468 = vsel %vm301, %v284, 0
  %v471 = vsel %vm301, %v285, 0
  %v474 = vsel %vm301, %v286, 0
  %v477 = vsel %vm301, %v287, 0
  %v480 = vsel %vm301, %v288, 0
  %v483 = vsel %vm301, %v289, 0
  %v486 = vsel %vm301, %v290, 0
  %v489 = vsel %vm301, %v291, 0
  %v492 = vsel %vm301, %v292, 0
  %vm494 = vcmask 1043456
  %v496 = vsel %vm494, %v293, 0
  %498 = vmatprep.subr.mxu0 0.0
  %499 = vmatpush1.msra.mxu0 %v496
  %500 = vmatprep.subr.mxu0 0.0
  %501 = vmatpush1.msra.mxu0 0.0
  %502 = vmatprep.subr.mxu0 0.0
  %503 = vmatpush1.msra.mxu0 0.0
  %504 = vmatprep.subr.mxu0 0.0
  %505 = vmatpush1.msra.mxu0 0.0
  %506 = vmatprep.subr.mxu0 0.0
  %507 = vmatpush1.msra.mxu0 0.0
  %508 = vmatprep.subr.mxu0 0.0
  %509 = vmatpush1.msra.mxu0 0.0
  %510 = vmatprep.subr.mxu0 0.0
  %511 = vmatpush1.msra.mxu0 0.0
  %512 = vmatprep.subr.mxu0 0.0
  %513 = vmatpush1.msra.mxu0 0.0
  %514 = vmatprep.subr.mxu0 0.0
  %515 = vmatpush1.msra.mxu0 0.0
  %516 = vmatprep.subr.mxu0 0.0
  %517 = vmatpush1.msra.mxu0 0.0
  %518 = vmatprep.subr.mxu0 0.0
  %519 = vmatpush1.msra.mxu0 0.0
  %520 = vmatprep.subr.mxu0 0.0
  %521 = vmatpush1.msra.mxu0 0.0
  %522 = vmatprep.subr.mxu0 0.0
  %523 = vmatpush1.msra.mxu0 0.0
  %524 = vmatprep.subr.mxu0 0.0
  %525 = vmatpush1.msra.mxu0 0.0
  %526 = vmatprep.subr.mxu0 0.0
  %527 = vmatpush1.msra.mxu0 0.0
  %528 = vmatprep.subr.mxu0 0.0
  %529 = vmatpush1.msra.mxu0 0.0
  %530 = vmatprep.subr.mxu0 0.0
  %531 = vmatpush1.msra.mxu0 0.0
  %532 = vmatprep.subr.mxu0 0.0
  %533 = vmatpush1.msra.mxu0 0.0
  %534 = vmatprep.subr.mxu0 0.0
  %535 = vmatpush1.msra.mxu0 0.0
  %536 = vmatprep.subr.mxu0 0.0
  %537 = vmatpush1.msra.mxu0 0.0
  %538 = vmatprep.subr.mxu0 0.0
  %539 = vmatpush1.msra.mxu0 0.0
  %540 = vmatprep.subr.mxu0 0.0
  %541 = vmatpush1.msra.mxu0 0.0
  %542 = vmatprep.subr.mxu0 0.0
  %543 = vmatpush1.msra.mxu0 0.0
  %544 = vmatprep.subr.mxu0 0.0
  %545 = vmatpush1.msra.mxu0 0.0
  %546 = vmatprep.subr.mxu0 0.0
  %547 = vmatpush1.msra.mxu0 0.0
  %548 = vmatprep.subr.mxu0 0.0
  %549 = vmatpush1.msra.mxu0 0.0
  %550 = vmatprep.subr.mxu0 0.0
  %551 = vmatpush1.msra.mxu0 0.0
  %552 = vmatprep.subr.mxu0 0.0
  %553 = vmatpush1.msra.mxu0 0.0
  %554 = vmatprep.subr.mxu0 0.0
  %555 = vmatpush1.msra.mxu0 0.0
  %556 = vmatprep.subr.mxu0 0.0
  %557 = vmatpush1.msra.mxu0 0.0
  %558 = vmatprep.subr.mxu0 0.0
  %559 = vmatpush1.msra.mxu0 0.0
  %560 = vmatprep.subr.mxu0 0.0
  %561 = vmatpush1.msra.mxu0 0.0
  %562 = vmatprep.mubr.f32.mxu0 0.0
  %563 = vmatmul.mubr.f32.gmra.mrb[0].mxu0 %v303
  %v564 = vpop.f32.mrb[0].mxu0
  %v565 = vadd.f32 %v299, %v564
  %v566 = vpop.f32.mrb[0].mxu0
  %567 = vmatprep.mubr.f32.mxu0 0.0
  %568 = vmatmul.mubr.f32.gmra.mrb[0].mxu0 %v306
  %v569 = vpop.f32.mrb[0].mxu0
  %v570 = vadd.f32 %v299, %v569
  %v571 = vpop.f32.mrb[0].mxu0
  %572 = vmatprep.mubr.f32.mxu0 0.0
  %573 = vmatmul.mubr.f32.gmra.mrb[0].mxu0 %v309
  %v574 = vpop.f32.mrb[0].mxu0
  %v575 = vadd.f32 %v299, %v574
  %v576 = vpop.f32.mrb[0].mxu0
  %577 = vmatprep.mubr.f32.mxu0 0.0
  %578 = vmatmul.mubr.f32.gmra.mrb[0].mxu0 %v312
  %v579 = vpop.f32.mrb[0].mxu0
  %v580 = vadd.f32 %v299, %v579
  %v581 = vpop.f32.mrb[0].mxu0
  %582 = vmatprep.mubr.f32.mxu0 0.0
  %583 = vmatmul.mubr.f32.gmra.mrb[0].mxu0 %v315
  %v584 = vpop.f32.mrb[0].mxu0
  %v585 = vadd.f32 %v299, %v584
  %v586 = vpop.f32.mrb[0].mxu0
  %587 = vmatprep.mubr.f32.mxu0 0.0
  %588 = vmatmul.mubr.f32.gmra.mrb[0].mxu0 %v318
  %v589 = vpop.f32.mrb[0].mxu0
  %v590 = vadd.f32 %v299, %v589
  %v591 = vpop.f32.mrb[0].mxu0
  %592 = vmatprep.mubr.f32.mxu0 0.0
  %593 = vmatmul.mubr.f32.gmra.mrb[0].mxu0 %v321
  %v594 = vpop.f32.mrb[0].mxu0
  %v595 = vadd.f32 %v299, %v594
  %v596 = vpop.f32.mrb[0].mxu0
  %597 = vmatprep.mubr.f32.mxu0 0.0
  %598 = vmatmul.mubr.f32.gmra.mrb[0].mxu0 %v324
  %v599 = vpop.f32.mrb[0].mxu0
  %v600 = vadd.f32 %v299, %v599
  %v601 = vpop.f32.mrb[0].mxu0
  %602 = vmatprep.mubr.f32.mxu0 0.0
  %603 = vmatmul.mubr.f32.gmra.mrb[0].mxu0 %v327
  %v604 = vpop.f32.mrb[0].mxu0
  %v605 = vadd.f32 %v299, %v604
  %v606 = vpop.f32.mrb[0].mxu0
  %607 = vmatprep.mubr.f32.mxu0 0.0
  %608 = vmatmul.mubr.f32.gmra.mrb[0].mxu0 %v330
  %v609 = vpop.f32.mrb[0].mxu0
  %v610 = vadd.f32 %v299, %v609
  %v611 = vpop.f32.mrb[0].mxu0
  %612 = vmatprep.mubr.f32.mxu0 0.0
  %613 = vmatmul.mubr.f32.gmra.mrb[0].mxu0 %v333
  %v614 = vpop.f32.mrb[0].mxu0
  %v615 = vadd.f32 %v299, %v614
  %v616 = vpop.f32.mrb[0].mxu0
  %617 = vmatprep.mubr.f32.mxu0 0.0
  %618 = vmatmul.mubr.f32.gmra.mrb[0].mxu0 %v336
  %v619 = vpop.f32.mrb[0].mxu0
  %v620 = vadd.f32 %v299, %v619
  %v621 = vpop.f32.mrb[0].mxu0
  %622 = vmatprep.mubr.f32.mxu0 0.0
  %623 = vmatmul.mubr.f32.gmra.mrb[0].mxu0 %v339
  %v624 = vpop.f32.mrb[0].mxu0
  %v625 = vadd.f32 %v299, %v624
  %v626 = vpop.f32.mrb[0].mxu0
  %627 = vmatprep.mubr.f32.mxu0 0.0
  %628 = vmatmul.mubr.f32.gmra.mrb[0].mxu0 %v342
  %v629 = vpop.f32.mrb[0].mxu0
  %v630 = vadd.f32 %v299, %v629
  %v631 = vpop.f32.mrb[0].mxu0
  %632 = vmatprep.mubr.f32.mxu0 0.0
  %633 = vmatmul.mubr.f32.gmra.mrb[0].mxu0 %v345
  %v634 = vpop.f32.mrb[0].mxu0
  %v635 = vadd.f32 %v299, %v634
  %v636 = vpop.f32.mrb[0].mxu0
  %637 = vmatprep.mubr.f32.mxu0 0.0
  %638 = vmatmul.mubr.f32.gmra.mrb[0].mxu0 %v348
  %v639 = vpop.f32.mrb[0].mxu0
  %v640 = vadd.f32 %v299, %v639
  %v641 = vpop.f32.mrb[0].mxu0
  %642 = vmatprep.mubr.f32.mxu0 0.0
  %643 = vmatmul.mubr.f32.gmra.mrb[0].mxu0 %v351
  %v644 = vpop.f32.mrb[0].mxu0
  %v645 = vadd.f32 %v299, %v644
  %v646 = vpop.f32.mrb[0].mxu0
  %647 = vmatprep.mubr.f32.mxu0 0.0
  %648 = vmatmul.mubr.f32.gmra.mrb[0].mxu0 %v354
  %v649 = vpop.f32.mrb[0].mxu0
  %v650 = vadd.f32 %v299, %v649
  %v651 = vpop.f32.mrb[0].mxu0
  %652 = vmatprep.mubr.f32.mxu0 0.0
  %653 = vmatmul.mubr.f32.gmra.mrb[0].mxu0 %v357
  %v654 = vpop.f32.mrb[0].mxu0
  %v655 = vadd.f32 %v299, %v654
  %v656 = vpop.f32.mrb[0].mxu0
  %657 = vmatprep.mubr.f32.mxu0 0.0
  %658 = vmatmul.mubr.f32.gmra.mrb[0].mxu0 %v360
  %v659 = vpop.f32.mrb[0].mxu0
  %v660 = vadd.f32 %v299, %v659
  %v661 = vpop.f32.mrb[0].mxu0
  %662 = vmatprep.mubr.f32.mxu0 0.0
  %663 = vmatmul.mubr.f32.gmra.mrb[0].mxu0 %v363
  %v664 = vpop.f32.mrb[0].mxu0
  %v665 = vadd.f32 %v299, %v664
  %v666 = vpop.f32.mrb[0].mxu0
  %667 = vmatprep.mubr.f32.mxu0 0.0
  %668 = vmatmul.mubr.f32.gmra.mrb[0].mxu0 %v366
  %v669 = vpop.f32.mrb[0].mxu0
  %v670 = vadd.f32 %v299, %v669
  %v671 = vpop.f32.mrb[0].mxu0
  %672 = vmatprep.mubr.f32.mxu0 0.0
  %673 = vmatmul.mubr.f32.gmra.mrb[0].mxu0 %v369
  %v674 = vpop.f32.mrb[0].mxu0
  %v675 = vadd.f32 %v299, %v674
  %v676 = vpop.f32.mrb[0].mxu0
  %677 = vmatprep.mubr.f32.mxu0 0.0
  %678 = vmatmul.mubr.f32.gmra.mrb[0].mxu0 %v372
  %v679 = vpop.f32.mrb[0].mxu0
  %v680 = vadd.f32 %v299, %v679
  %v681 = vpop.f32.mrb[0].mxu0
  %682 = vmatprep.mubr.f32.mxu0 0.0
  %683 = vmatmul.mubr.f32.gmra.mrb[0].mxu0 %v375
  %v684 = vpop.f32.mrb[0].mxu0
  %v685 = vadd.f32 %v299, %v684
  %v686 = vpop.f32.mrb[0].mxu0
  %687 = vmatprep.mubr.f32.mxu0 0.0
  %688 = vmatmul.mubr.f32.gmra.mrb[0].mxu0 %v378
  %v689 = vpop.f32.mrb[0].mxu0
  %v690 = vadd.f32 %v299, %v689
  %v691 = vpop.f32.mrb[0].mxu0
  %692 = vmatprep.mubr.f32.mxu0 0.0
  %693 = vmatmul.mubr.f32.gmra.mrb[0].mxu0 %v381
  %v694 = vpop.f32.mrb[0].mxu0
  %v695 = vadd.f32 %v299, %v694
  %v696 = vpop.f32.mrb[0].mxu0
  %697 = vmatprep.mubr.f32.mxu0 0.0
  %698 = vmatmul.mubr.f32.gmra.mrb[0].mxu0 %v384
  %v699 = vpop.f32.mrb[0].mxu0
  %v700 = vadd.f32 %v299, %v699
  %v701 = vpop.f32.mrb[0].mxu0
  %702 = vmatprep.mubr.f32.mxu0 0.0
  %703 = vmatmul.mubr.f32.gmra.mrb[0].mxu0 %v387
  %v704 = vpop.f32.mrb[0].mxu0
  %v705 = vadd.f32 %v299, %v704
  %v706 = vpop.f32.mrb[0].mxu0
  %707 = vmatprep.mubr.f32.mxu0 0.0
  %708 = vmatmul.mubr.f32.gmra.mrb[0].mxu0 %v390
  %v709 = vpop.f32.mrb[0].mxu0
  %v710 = vadd.f32 %v299, %v709
  %v711 = vpop.f32.mrb[0].mxu0
  %712 = vmatprep.mubr.f32.mxu0 0.0
  %713 = vmatmul.mubr.f32.gmra.mrb[0].mxu0 %v393
  %v714 = vpop.f32.mrb[0].mxu0
  %v715 = vadd.f32 %v299, %v714
  %v716 = vpop.f32.mrb[0].mxu0
  %717 = vmatprep.mubr.f32.mxu0 0.0
  %718 = vmatmul.mubr.f32.gmra.mrb[0].mxu0 %v396
  %v719 = vpop.f32.mrb[0].mxu0
  %v720 = vadd.f32 %v299, %v719
  %v721 = vpop.f32.mrb[0].mxu0
  %722 = vmatprep.mubr.f32.mxu0 0.0
  %723 = vmatmul.mubr.f32.gmra.mrb[0].mxu0 %v399
  %v724 = vpop.f32.mrb[0].mxu0
  %v725 = vadd.f32 %v299, %v724
  %v726 = vpop.f32.mrb[0].mxu0
  %727 = vmatprep.mubr.f32.mxu0 0.0
  %728 = vmatmul.mubr.f32.gmra.mrb[0].mxu0 %v402
  %v729 = vpop.f32.mrb[0].mxu0
  %v730 = vadd.f32 %v299, %v729
  %v731 = vpop.f32.mrb[0].mxu0
  %732 = vmatprep.mubr.f32.mxu0 0.0
  %733 = vmatmul.mubr.f32.gmra.mrb[0].mxu0 %v405
  %v734 = vpop.f32.mrb[0].mxu0
  %v735 = vadd.f32 %v299, %v734
  %v736 = vpop.f32.mrb[0].mxu0
  %737 = vmatprep.mubr.f32.mxu0 0.0
  %738 = vmatmul.mubr.f32.gmra.mrb[0].mxu0 %v408
  %v739 = vpop.f32.mrb[0].mxu0
  %v740 = vadd.f32 %v299, %v739
  %v741 = vpop.f32.mrb[0].mxu0
  %742 = vmatprep.mubr.f32.mxu0 0.0
  %743 = vmatmul.mubr.f32.gmra.mrb[0].mxu0 %v411
  %v744 = vpop.f32.mrb[0].mxu0
  %v745 = vadd.f32 %v299, %v744
  %v746 = vpop.f32.mrb[0].mxu0
  %747 = vmatprep.mubr.f32.mxu0 0.0
  %748 = vmatmul.mubr.f32.gmra.mrb[0].mxu0 %v414
  %v749 = vpop.f32.mrb[0].mxu0
  %v750 = vadd.f32 %v299, %v749
  %v751 = vpop.f32.mrb[0].mxu0
  %752 = vmatprep.mubr.f32.mxu0 0.0
  %753 = vmatmul.mubr.f32.gmra.mrb[0].mxu0 %v417
  %v754 = vpop.f32.mrb[0].mxu0
  %v755 = vadd.f32 %v299, %v754
  %v756 = vpop.f32.mrb[0].mxu0
  %757 = vmatprep.mubr.f32.mxu0 0.0
  %758 = vmatmul.mubr.f32.gmra.mrb[0].mxu0 %v420
  %v759 = vpop.f32.mrb[0].mxu0
  %v760 = vadd.f32 %v299, %v759
  %v761 = vpop.f32.mrb[0].mxu0
  %762 = vmatprep.mubr.f32.mxu0 0.0
  %763 = vmatmul.mubr.f32.gmra.mrb[0].mxu0 %v423
  %v764 = vpop.f32.mrb[0].mxu0
  %v765 = vadd.f32 %v299, %v764
  %v766 = vpop.f32.mrb[0].mxu0
  %767 = vmatprep.mubr.f32.mxu0 0.0
  %768 = vmatmul.mubr.f32.gmra.mrb[0].mxu0 %v426
  %v769 = vpop.f32.mrb[0].mxu0
  %v770 = vadd.f32 %v299, %v769
  %v771 = vpop.f32.mrb[0].mxu0
  %772 = vmatprep.mubr.f32.mxu0 0.0
  %773 = vmatmul.mubr.f32.gmra.mrb[0].mxu0 %v429
  %v774 = vpop.f32.mrb[0].mxu0
  %v775 = vadd.f32 %v299, %v774
  %v776 = vpop.f32.mrb[0].mxu0
  %777 = vmatprep.mubr.f32.mxu0 0.0
  %778 = vmatmul.mubr.f32.gmra.mrb[0].mxu0 %v432
  %v779 = vpop.f32.mrb[0].mxu0
  %v780 = vadd.f32 %v299, %v779
  %v781 = vpop.f32.mrb[0].mxu0
  %782 = vmatprep.mubr.f32.mxu0 0.0
  %783 = vmatmul.mubr.f32.gmra.mrb[0].mxu0 %v435
  %v784 = vpop.f32.mrb[0].mxu0
  %v785 = vadd.f32 %v299, %v784
  %v786 = vpop.f32.mrb[0].mxu0
  %787 = vmatprep.mubr.f32.mxu0 0.0
  %788 = vmatmul.mubr.f32.gmra.mrb[0].mxu0 %v438
  %v789 = vpop.f32.mrb[0].mxu0
  %v790 = vadd.f32 %v299, %v789
  %v791 = vpop.f32.mrb[0].mxu0
  %792 = vmatprep.mubr.f32.mxu0 0.0
  %793 = vmatmul.mubr.f32.gmra.mrb[0].mxu0 %v441
  %v794 = vpop.f32.mrb[0].mxu0
  %v795 = vadd.f32 %v299, %v794
  %v796 = vpop.f32.mrb[0].mxu0
  %797 = vmatprep.mubr.f32.mxu0 0.0
  %798 = vmatmul.mubr.f32.gmra.mrb[0].mxu0 %v444
  %v799 = vpop.f32.mrb[0].mxu0
  %v800 = vadd.f32 %v299, %v799
  %v801 = vpop.f32.mrb[0].mxu0
  %802 = vmatprep.mubr.f32.mxu0 0.0
  %803 = vmatmul.mubr.f32.gmra.mrb[0].mxu0 %v447
  %v804 = vpop.f32.mrb[0].mxu0
  %v805 = vadd.f32 %v299, %v804
  %v806 = vpop.f32.mrb[0].mxu0
  %807 = vmatprep.mubr.f32.mxu0 0.0
  %808 = vmatmul.mubr.f32.gmra.mrb[0].mxu0 %v450
  %v809 = vpop.f32.mrb[0].mxu0
  %v810 = vadd.f32 %v299, %v809
  %v811 = vpop.f32.mrb[0].mxu0
  %812 = vmatprep.mubr.f32.mxu0 0.0
  %813 = vmatmul.mubr.f32.gmra.mrb[0].mxu0 %v453
  %v814 = vpop.f32.mrb[0].mxu0
  %v815 = vadd.f32 %v299, %v814
  %v816 = vpop.f32.mrb[0].mxu0
  %817 = vmatprep.mubr.f32.mxu0 0.0
  %818 = vmatmul.mubr.f32.gmra.mrb[0].mxu0 %v456
  %v819 = vpop.f32.mrb[0].mxu0
  %v820 = vadd.f32 %v299, %v819
  %v821 = vpop.f32.mrb[0].mxu0
  %822 = vmatprep.mubr.f32.mxu0 0.0
  %823 = vmatmul.mubr.f32.gmra.mrb[0].mxu0 %v459
  %v824 = vpop.f32.mrb[0].mxu0
  %v825 = vadd.f32 %v299, %v824
  %v826 = vpop.f32.mrb[0].mxu0
  %827 = vmatprep.mubr.f32.mxu0 0.0
  %828 = vmatmul.mubr.f32.gmra.mrb[0].mxu0 %v462
  %v829 = vpop.f32.mrb[0].mxu0
  %v830 = vadd.f32 %v299, %v829
  %v831 = vpop.f32.mrb[0].mxu0
  %832 = vmatprep.mubr.f32.mxu0 0.0
  %833 = vmatmul.mubr.f32.gmra.mrb[0].mxu0 %v465
  %v834 = vpop.f32.mrb[0].mxu0
  %v835 = vadd.f32 %v299, %v834
  %v836 = vpop.f32.mrb[0].mxu0
  %837 = vmatprep.mubr.f32.mxu0 0.0
  %838 = vmatmul.mubr.f32.gmra.mrb[0].mxu0 %v468
  %v839 = vpop.f32.mrb[0].mxu0
  %v840 = vadd.f32 %v299, %v839
  %v841 = vpop.f32.mrb[0].mxu0
  %842 = vmatprep.mubr.f32.mxu0 0.0
  %843 = vmatmul.mubr.f32.gmra.mrb[0].mxu0 %v471
  %v844 = vpop.f32.mrb[0].mxu0
  %v845 = vadd.f32 %v299, %v844
  %v846 = vpop.f32.mrb[0].mxu0
  %847 = vmatprep.mubr.f32.mxu0 0.0
  %848 = vmatmul.mubr.f32.gmra.mrb[0].mxu0 %v474
  %v849 = vpop.f32.mrb[0].mxu0
  %v850 = vadd.f32 %v299, %v849
  %v851 = vpop.f32.mrb[0].mxu0
  %852 = vmatprep.mubr.f32.mxu0 0.0
  %853 = vmatmul.mubr.f32.gmra.mrb[0].mxu0 %v477
  %v854 = vpop.f32.mrb[0].mxu0
  %v855 = vadd.f32 %v299, %v854
  %v856 = vpop.f32.mrb[0].mxu0
  %857 = vmatprep.mubr.f32.mxu0 0.0
  %858 = vmatmul.mubr.f32.gmra.mrb[0].mxu0 %v480
  %v859 = vpop.f32.mrb[0].mxu0
  %v860 = vadd.f32 %v299, %v859
  %v861 = vpop.f32.mrb[0].mxu0
  %862 = vmatprep.mubr.f32.mxu0 0.0
  %863 = vmatmul.mubr.f32.gmra.mrb[0].mxu0 %v483
  %v864 = vpop.f32.mrb[0].mxu0
  %v865 = vadd.f32 %v299, %v864
  %v866 = vpop.f32.mrb[0].mxu0
  %867 = vmatprep.mubr.f32.mxu0 0.0
  %868 = vmatmul.mubr.f32.gmra.mrb[0].mxu0 %v486
  %v869 = vpop.f32.mrb[0].mxu0
  %v870 = vadd.f32 %v299, %v869
  %v871 = vpop.f32.mrb[0].mxu0
  %872 = vmatprep.mubr.f32.mxu0 0.0
  %873 = vmatmul.mubr.f32.gmra.mrb[0].mxu0 %v489
  %v874 = vpop.f32.mrb[0].mxu0
  %v875 = vadd.f32 %v299, %v874
  %v876 = vpop.f32.mrb[0].mxu0
  %877 = vmatprep.mubr.f32.mxu0 0.0
  %878 = vmatmul.mubr.f32.gmra.mrb[0].mxu0 %v492
  %v879 = vpop.f32.mrb[0].mxu0
  %v880 = vadd.f32 %v299, %v879
  %v881 = vpop.f32.mrb[0].mxu0
  %882 = vdwg.mxu0
  %883 = vst [vmem:[%s5] sm:$0xff] %v565
  %884 = vst [vmem:[%s5 + $0x8] sm:$0xff] %v570
  %885 = vst [vmem:[%s5 + $0x10] sm:$0xff] %v575
  %886 = vst [vmem:[%s5 + $0x18] sm:$0xff] %v580
  %887 = vst [vmem:[%s5 + $0x20] sm:$0xff] %v585
  %888 = vst [vmem:[%s5 + $0x28] sm:$0xff] %v590
  %889 = vst [vmem:[%s5 + $0x30] sm:$0xff] %v595
  %890 = vst [vmem:[%s5 + $0x38] sm:$0xff] %v600
  %891 = vst [vmem:[%s5 + $0x40] sm:$0xff] %v605
  %892 = vst [vmem:[%s5 + $0x48] sm:$0xff] %v610
  %893 = vst [vmem:[%s5 + $0x50] sm:$0xff] %v615
  %894 = vst [vmem:[%s5 + $0x58] sm:$0xff] %v620
  %895 = vst [vmem:[%s5 + $0x60] sm:$0xff] %v625
  %896 = vst [vmem:[%s5 + $0x68] sm:$0xff] %v630
  %897 = vst [vmem:[%s5 + $0x70] sm:$0xff] %v635
  %898 = vst [vmem:[%s5 + $0x78] sm:$0xff] %v640
  %899 = vst [vmem:[%s5 + $0x80] sm:$0xff] %v645
  %900 = vst [vmem:[%s5 + $0x88] sm:$0xff] %v650
  %901 = vst [vmem:[%s5 + $0x90] sm:$0xff] %v655
  %902 = vst [vmem:[%s5 + $0x98] sm:$0xff] %v660
  %903 = vst [vmem:[%s5 + $0xa0] sm:$0xff] %v665
  %904 = vst [vmem:[%s5 + $0xa8] sm:$0xff] %v670
  %905 = vst [vmem:[%s5 + $0xb0] sm:$0xff] %v675
  %906 = vst [vmem:[%s5 + $0xb8] sm:$0xff] %v680
  %907 = vst [vmem:[%s5 + $0xc0] sm:$0xff] %v685
  %908 = vst [vmem:[%s5 + $0xc8] sm:$0xff] %v690
  %909 = vst [vmem:[%s5 + $0xd0] sm:$0xff] %v695
  %910 = vst [vmem:[%s5 + $0xd8] sm:$0xff] %v700
  %911 = vst [vmem:[%s5 + $0xe0] sm:$0xff] %v705
  %912 = vst [vmem:[%s5 + $0xe8] sm:$0xff] %v710
  %913 = vst [vmem:[%s5 + $0xf0] sm:$0xff] %v715
  %914 = vst [vmem:[%s5 + $0xf8] sm:$0xff] %v720
  %915 = vst [vmem:[%s5 + $0x100] sm:$0xff] %v725
  %916 = vst [vmem:[%s5 + $0x108] sm:$0xff] %v730
  %917 = vst [vmem:[%s5 + $0x110] sm:$0xff] %v735
  %918 = vst [vmem:[%s5 + $0x118] sm:$0xff] %v740
  %919 = vst [vmem:[%s5 + $0x120] sm:$0xff] %v745
  %920 = vst [vmem:[%s5 + $0x128] sm:$0xff] %v750
  %921 = vst [vmem:[%s5 + $0x130] sm:$0xff] %v755
  %922 = vst [vmem:[%s5 + $0x138] sm:$0xff] %v760
  %923 = vst [vmem:[%s5 + $0x140] sm:$0xff] %v765
  %924 = vst [vmem:[%s5 + $0x148] sm:$0xff] %v770
  %925 = vst [vmem:[%s5 + $0x150] sm:$0xff] %v775
  %926 = vst [vmem:[%s5 + $0x158] sm:$0xff] %v780
  %927 = vst [vmem:[%s5 + $0x160] sm:$0xff] %v785
  %928 = vst [vmem:[%s5 + $0x168] sm:$0xff] %v790
  %929 = vst [vmem:[%s5 + $0x170] sm:$0xff] %v795
  %930 = vst [vmem:[%s5 + $0x178] sm:$0xff] %v800
  %931 = vst [vmem:[%s5 + $0x180] sm:$0xff] %v805
  %932 = vst [vmem:[%s5 + $0x188] sm:$0xff] %v810
  %933 = vst [vmem:[%s5 + $0x190] sm:$0xff] %v815
  %934 = vst [vmem:[%s5 + $0x198] sm:$0xff] %v820
  %935 = vst [vmem:[%s5 + $0x1a0] sm:$0xff] %v825
  %936 = vst [vmem:[%s5 + $0x1a8] sm:$0xff] %v830
  %937 = vst [vmem:[%s5 + $0x1b0] sm:$0xff] %v835
  %938 = vst [vmem:[%s5 + $0x1b8] sm:$0xff] %v840
  %939 = vst [vmem:[%s5 + $0x1c0] sm:$0xff] %v845
  %940 = vst [vmem:[%s5 + $0x1c8] sm:$0xff] %v850
  %941 = vst [vmem:[%s5 + $0x1d0] sm:$0xff] %v855
  %942 = vst [vmem:[%s5 + $0x1d8] sm:$0xff] %v860
  %943 = vst [vmem:[%s5 + $0x1e0] sm:$0xff] %v865
  %944 = vst [vmem:[%s5 + $0x1e8] sm:$0xff] %v870
  %945 = vst [vmem:[%s5 + $0x1f0] sm:$0xff] %v875
  %946 = vst [vmem:[%s5 + $0x1f8] sm:$0xff] %v880
  %v947 = vadd.f32 %v565, %v570
  %v948 = vadd.f32 %v947, %v575
  %v949 = vadd.f32 %v948, %v580
  %v950 = vadd.f32 %v949, %v585
  %v951 = vadd.f32 %v950, %v590
  %v952 = vadd.f32 %v951, %v595
  %v953 = vadd.f32 %v952, %v600
  %v954 = vadd.f32 %v953, %v605
  %v955 = vadd.f32 %v954, %v610
  %v956 = vadd.f32 %v955, %v615
  %v957 = vadd.f32 %v956, %v620
  %v958 = vadd.f32 %v957, %v625
  %v959 = vadd.f32 %v958, %v630
  %v960 = vadd.f32 %v959, %v635
  %v961 = vadd.f32 %v960, %v640
  %v962 = vadd.f32 %v961, %v645
  %v963 = vadd.f32 %v962, %v650
  %v964 = vadd.f32 %v963, %v655
  %v965 = vadd.f32 %v964, %v660
  %v966 = vadd.f32 %v965, %v665
  %v967 = vadd.f32 %v966, %v670
  %v968 = vadd.f32 %v967, %v675
  %v969 = vadd.f32 %v968, %v680
  %v970 = vadd.f32 %v969, %v685
  %v971 = vadd.f32 %v970, %v690
  %v972 = vadd.f32 %v971, %v695
  %v973 = vadd.f32 %v972, %v700
  %v974 = vadd.f32 %v973, %v705
  %v975 = vadd.f32 %v974, %v710
  %v976 = vadd.f32 %v975, %v715
  %v977 = vadd.f32 %v976, %v720
  %v978 = vadd.f32 %v977, %v725
  %v979 = vadd.f32 %v978, %v730
  %v980 = vadd.f32 %v979, %v735
  %v981 = vadd.f32 %v980, %v740
  %v982 = vadd.f32 %v981, %v745
  %v983 = vadd.f32 %v982, %v750
  %v984 = vadd.f32 %v983, %v755
  %v985 = vadd.f32 %v984, %v760
  %v986 = vadd.f32 %v985, %v765
  %v987 = vadd.f32 %v986, %v770
  %v988 = vadd.f32 %v987, %v775
  %v989 = vadd.f32 %v988, %v780
  %v990 = vadd.f32 %v989, %v785
  %v991 = vadd.f32 %v990, %v790
  %v992 = vadd.f32 %v991, %v795
  %v993 = vadd.f32 %v992, %v800
  %v994 = vadd.f32 %v993, %v805
  %v995 = vadd.f32 %v994, %v810
  %v996 = vadd.f32 %v995, %v815
  %v997 = vadd.f32 %v996, %v820
  %v998 = vadd.f32 %v997, %v825
  %v999 = vadd.f32 %v998, %v830
  %v1000 = vadd.f32 %v999, %v835
  %v1001 = vadd.f32 %v1000, %v840
  %v1002 = vadd.f32 %v1001, %v845
  %v1003 = vadd.f32 %v1002, %v850
  %v1004 = vadd.f32 %v1003, %v855
  %v1005 = vadd.f32 %v1004, %v860
  %v1006 = vadd.f32 %v1005, %v865
  %v1007 = vadd.f32 %v1006, %v870
  %v1008 = vadd.f32 %v1007, %v875
  %v1009 = vadd.f32 %v1008, %v880
  %v1010 = vrot.slane %v1009, 4
  %v1011 = vadd.f32 %v1009, %v1010
  %v1012 = vrot.slane %v1011, 2
  %v1013 = vadd.f32 %v1011, %v1012
  %v1014 = vrot.slane %v1013, 1
  %v1015 = vadd.f32 %v1013, %v1014
  %1016 = vst [vmem:[%s6] sm:$0x1] %v1015
  %v1017 = vmul.f32 %v565, %v565
  %v1018 = vmul.f32 %v570, %v570
  %v1019 = vmul.f32 %v575, %v575
  %v1020 = vmul.f32 %v580, %v580
  %v1021 = vmul.f32 %v585, %v585
  %v1022 = vmul.f32 %v590, %v590
  %v1023 = vmul.f32 %v595, %v595
  %v1024 = vmul.f32 %v600, %v600
  %v1025 = vmul.f32 %v605, %v605
  %v1026 = vmul.f32 %v610, %v610
  %v1027 = vmul.f32 %v615, %v615
  %v1028 = vmul.f32 %v620, %v620
  %v1029 = vmul.f32 %v625, %v625
  %v1030 = vmul.f32 %v630, %v630
  %v1031 = vmul.f32 %v635, %v635
  %v1032 = vmul.f32 %v640, %v640
  %v1033 = vmul.f32 %v645, %v645
  %v1034 = vmul.f32 %v650, %v650
  %v1035 = vmul.f32 %v655, %v655
  %v1036 = vmul.f32 %v660, %v660
  %v1037 = vmul.f32 %v665, %v665
  %v1038 = vmul.f32 %v670, %v670
  %v1039 = vmul.f32 %v675, %v675
  %v1040 = vmul.f32 %v680, %v680
  %v1041 = vmul.f32 %v685, %v685
  %v1042 = vmul.f32 %v690, %v690
  %v1043 = vmul.f32 %v695, %v695
  %v1044 = vmul.f32 %v700, %v700
  %v1045 = vmul.f32 %v705, %v705
  %v1046 = vmul.f32 %v710, %v710
  %v1047 = vmul.f32 %v715, %v715
  %v1048 = vmul.f32 %v720, %v720
  %v1049 = vmul.f32 %v725, %v725
  %v1050 = vmul.f32 %v730, %v730
  %v1051 = vmul.f32 %v735, %v735
  %v1052 = vmul.f32 %v740, %v740
  %v1053 = vmul.f32 %v745, %v745
  %v1054 = vmul.f32 %v750, %v750
  %v1055 = vmul.f32 %v755, %v755
  %v1056 = vmul.f32 %v760, %v760
  %v1057 = vmul.f32 %v765, %v765
  %v1058 = vmul.f32 %v770, %v770
  %v1059 = vmul.f32 %v775, %v775
  %v1060 = vmul.f32 %v780, %v780
  %v1061 = vmul.f32 %v785, %v785
  %v1062 = vmul.f32 %v790, %v790
  %v1063 = vmul.f32 %v795, %v795
  %v1064 = vmul.f32 %v800, %v800
  %v1065 = vmul.f32 %v805, %v805
  %v1066 = vmul.f32 %v810, %v810
  %v1067 = vmul.f32 %v815, %v815
  %v1068 = vmul.f32 %v820, %v820
  %v1069 = vmul.f32 %v825, %v825
  %v1070 = vmul.f32 %v830, %v830
  %v1071 = vmul.f32 %v835, %v835
  %v1072 = vmul.f32 %v840, %v840
  %v1073 = vmul.f32 %v845, %v845
  %v1074 = vmul.f32 %v850, %v850
  %v1075 = vmul.f32 %v855, %v855
  %v1076 = vmul.f32 %v860, %v860
  %v1077 = vmul.f32 %v865, %v865
  %v1078 = vmul.f32 %v870, %v870
  %v1079 = vmul.f32 %v875, %v875
  %v1080 = vmul.f32 %v880, %v880
  %v1081 = vadd.f32 %v1017, %v1018
  %v1082 = vadd.f32 %v1081, %v1019
  %v1083 = vadd.f32 %v1082, %v1020
  %v1084 = vadd.f32 %v1083, %v1021
  %v1085 = vadd.f32 %v1084, %v1022
  %v1086 = vadd.f32 %v1085, %v1023
  %v1087 = vadd.f32 %v1086, %v1024
  %v1088 = vadd.f32 %v1087, %v1025
  %v1089 = vadd.f32 %v1088, %v1026
  %v1090 = vadd.f32 %v1089, %v1027
  %v1091 = vadd.f32 %v1090, %v1028
  %v1092 = vadd.f32 %v1091, %v1029
  %v1093 = vadd.f32 %v1092, %v1030
  %v1094 = vadd.f32 %v1093, %v1031
  %v1095 = vadd.f32 %v1094, %v1032
  %v1096 = vadd.f32 %v1095, %v1033
  %v1097 = vadd.f32 %v1096, %v1034
  %v1098 = vadd.f32 %v1097, %v1035
  %v1099 = vadd.f32 %v1098, %v1036
  %v1100 = vadd.f32 %v1099, %v1037
  %v1101 = vadd.f32 %v1100, %v1038
  %v1102 = vadd.f32 %v1101, %v1039
  %v1103 = vadd.f32 %v1102, %v1040
  %v1104 = vadd.f32 %v1103, %v1041
  %v1105 = vadd.f32 %v1104, %v1042
  %v1106 = vadd.f32 %v1105, %v1043
  %v1107 = vadd.f32 %v1106, %v1044
  %v1108 = vadd.f32 %v1107, %v1045
  %v1109 = vadd.f32 %v1108, %v1046
  %v1110 = vadd.f32 %v1109, %v1047
  %v1111 = vadd.f32 %v1110, %v1048
  %v1112 = vadd.f32 %v1111, %v1049
  %v1113 = vadd.f32 %v1112, %v1050
  %v1114 = vadd.f32 %v1113, %v1051
  %v1115 = vadd.f32 %v1114, %v1052
  %v1116 = vadd.f32 %v1115, %v1053
  %v1117 = vadd.f32 %v1116, %v1054
  %v1118 = vadd.f32 %v1117, %v1055
  %v1119 = vadd.f32 %v1118, %v1056
  %v1120 = vadd.f32 %v1119, %v1057
  %v1121 = vadd.f32 %v1120, %v1058
  %v1122 = vadd.f32 %v1121, %v1059
  %v1123 = vadd.f32 %v1122, %v1060
  %v1124 = vadd.f32 %v1123, %v1061
  %v1125 = vadd.f32 %v1124, %v1062
  %v1126 = vadd.f32 %v1125, %v1063
  %v1127 = vadd.f32 %v1126, %v1064
  %v1128 = vadd.f32 %v1127, %v1065
  %v1129 = vadd.f32 %v1128, %v1066
  %v1130 = vadd.f32 %v1129, %v1067
  %v1131 = vadd.f32 %v1130, %v1068
  %v1132 = vadd.f32 %v1131, %v1069
  %v1133 = vadd.f32 %v1132, %v1070
  %v1134 = vadd.f32 %v1133, %v1071
  %v1135 = vadd.f32 %v1134, %v1072
  %v1136 = vadd.f32 %v1135, %v1073
  %v1137 = vadd.f32 %v1136, %v1074
  %v1138 = vadd.f32 %v1137, %v1075
  %v1139 = vadd.f32 %v1138, %v1076
  %v1140 = vadd.f32 %v1139, %v1077
  %v1141 = vadd.f32 %v1140, %v1078
  %v1142 = vadd.f32 %v1141, %v1079
  %v1143 = vadd.f32 %v1142, %v1080
  %v1144 = vrot.slane %v1143, 4
  %v1145 = vadd.f32 %v1143, %v1144
  %v1146 = vrot.slane %v1145, 2
  %v1147 = vadd.f32 %v1145, %v1146
  %v1148 = vrot.slane %v1147, 1
  %v1149 = vadd.f32 %v1147, %v1148
  %1150 = vst [vmem:[%s7] sm:$0x1] %v1149
  // Predicated region
  $region22: #{bottleneck_forward.2} parent=0 // pred_check
    _
  $region23: #{bottleneck_forward.2} parent=0 // pred_check_branch
    %1152 = sbr.rel (0) target = $region25
  $region24: #{bottleneck_forward.2} parent=0 // pred_region
    _
  $region25: #{bottleneck_forward.2} parent=0 // pred_fallthru
    _
  // Predicated region
  $region26: #{bottleneck_forward.2} parent=0 // pred_check
    _
  $region27: #{bottleneck_forward.2} parent=0 // pred_check_branch
    %1154 = sbr.rel (0) target = $region29
  $region28: #{bottleneck_forward.2} parent=0 // pred_region
    _
  $region29: #{bottleneck_forward.2} parent=0 // pred_fallthru
    _
  // Predicated region
  $region30: #{bottleneck_forward.2} parent=0 // pred_check
    _
  $region31: #{bottleneck_forward.2} parent=0 // pred_check_branch
    %1156 = sbr.rel (0) target = $region33
  $region32: #{bottleneck_forward.2} parent=0 // pred_region
    _
  $region33: #{bottleneck_forward.2} parent=0 // pred_fallthru
    _
  // Predicated region
  $region34: #{bottleneck_forward.2} parent=0 // pred_check
    _
  $region35: #{bottleneck_forward.2} parent=0 // pred_check_branch
    %1158 = sbr.rel (0) target = $region37
  $region36: #{bottleneck_forward.2} parent=0 // pred_region
    _
  $region37: #{bottleneck_forward.2} parent=0 // pred_fallthru
    _
  // Predicated region
  $region38: #{bottleneck_forward.2} parent=0 // pred_check
    _
  $region39: #{bottleneck_forward.2} parent=0 // pred_check_branch
    %1160 = sbr.rel (0) target = $region41
  $region40: #{bottleneck_forward.2} parent=0 // pred_region
    _
  $region41: #{bottleneck_forward.2} parent=0 // pred_fallthru
    _
  // Predicated region
  $region42: #{bottleneck_forward.2} parent=0 // pred_check
    _
  $region43: #{bottleneck_forward.2} parent=0 // pred_check_branch
    %1162 = sbr.rel (0) target = $region45
  $region44: #{bottleneck_forward.2} parent=0 // pred_region
    _
  $region45: #{bottleneck_forward.2} parent=0 // pred_fallthru
    _

// kernel: bottleneck_forward.3
$region0: #{bottleneck_forward.3}
  #allocation0 [shape = 'u32[]', space=smem, size = 0x4, offset = 0x4, fixed_abs, tag = 'smem constant byte address 0x4 - core index']
  #allocation1 [shape = 'u32[144,128]{1,0:T(1,128)}', space=vmem, size = 0x12000, scoped, tag = 'internal scratch']
  #allocation2 [shape = 'f32[10,18,128]{2,1,0:T(8,128)}', space=vmem, size = 0x1e000, scoped, tag = 'scratch operand']
  %s0 = inlined_call_operand.vmem [shape: f32[2,16,16,128], index: 0, kind: input, shape index: {}, may-alias: {0,1,2}]
  %s1 = inlined_call_operand.vmem [shape: f32[2,16,16,128], index: 1, kind: input, shape index: {}, may-alias: {0,1,2}]
  %s2 = inlined_call_operand.vmem [shape: f32[2,16,16,128], index: 2, kind: input, shape index: {}, may-alias: {0,1,2}]
  %s3 = inlined_call_operand.vmem [shape: f32[1,1,128], index: 3, kind: input, shape index: {}]
  %s4 = inlined_call_operand.vmem [shape: f32[1,1,128], index: 4, kind: input, shape index: {}]
  %s5 = inlined_call_operand.vmem [shape: bf16[3,128,128], index: 5, kind: input, shape index: {}]
  %s6 = inlined_call_operand.vmem [shape: f32[1,1,32], index: 6, kind: input, shape index: {}]
  %s7 = inlined_call_operand.vmem [shape: f32[2,16,16,32], index: 7, kind: output, shape index: {}]
  %s8 = sld [smem:[#allocation0]]
  $region61: #{bottleneck_forward.3} parent=0
    _
  %s10 = ssub.s32 1, %s8
  %s11 = scalar_select 0, %s10, %s8
  loop: start=0, step=1, limit=6
  $region2: #{bottleneck_forward.3} parent=0 // loop_pre_header
    _
  $region3: #{bottleneck_forward.3} parent=0 // loop_header
    %s13 = sphi 0, %s17
    %p14 = scmp.ge.s32.totalorder %s13, 6
    %s20 = sphi 0, %s32
    %s21 = sphi 0, %s28
    %s22 = sphi 0, %s20
    %s23 = sphi 0, %s21
    %s24 = sphi 0, %s22
    %s25 = sphi 0, %s23
    %s45 = sphi 0, %s47
    %s48 = sphi 0, %s45
    %s49 = sphi 0, %s48
    %s65 = sphi 0, %s49
    %s73 = sphi 0, %s75
    %s76 = sphi 0, %s73
    %s77 = sphi 0, %s76
    %s93 = sphi 0, %s77
    %s109 = sphi 0, %s111
    %s112 = sphi 0, %s109
    %s113 = sphi 0, %s112
    %s129 = sphi 0, %s113
    %s133 = sphi 0, %s133
    %s135 = sphi 0, %s133
    %s136 = sphi 0, %s135
    %s150 = sphi 0, %s136
    %s154 = sphi 0, %s154
    %s156 = sphi 0, %s154
    %s157 = sphi 0, %s156
    %s171 = sphi 0, %s157
    %s175 = sphi 0, %s175
    %s177 = sphi 0, %s175
    %s178 = sphi 0, %s177
    %s192 = sphi 0, %s178
    %s196 = sphi 0, %s196
    %s198 = sphi 0, %s196
    %s199 = sphi 0, %s198
    %s213 = sphi 0, %s199
    %s221 = sphi 0, %s223
    %s224 = sphi 0, %s221
    %s225 = sphi 0, %s224
    %s241 = sphi 0, %s225
  $region4: #{bottleneck_forward.3} parent=0 // loop_header_branch
    %16 = sbr.rel (%p14) target = $region8
  $region5: #{bottleneck_forward.3} parent=0 // loop_body
    %s18 = ssub.s32 %s13, 1
    %s19 = ssub.s32 %s13, 2
    %s26 = sadd.s32 1, %s21
    %p27 = scmp.ge.s32.totalorder %s26, 2
    %s28 = scalar_select %p27, 0, %s26
    %s29 = sadd.s32 1, %s20
    %s30 = scalar_select %p27, %s29, %s20
    %p31 = scmp.ge.s32.totalorder %s30, 2
    %s32 = scalar_select %p31, 0, %s30
    %s33 = smul.u32 %s21, 8
    %s34 = ssub.s32 %s33, 1
    %p35 = scmp.gt.s32.totalorder %s34, 0
    %s36 = scalar_select %p35, %s34, 0
    %s37 = smul.u32 %s28, 8
    %s38 = ssub.s32 %s37, 1
    %p39 = scmp.gt.s32.totalorder %s38, 0
    %s40 = scalar_select %p39, %s38, 0
    %s41 = ssub.s32 %s20, %s32
    %s42 = ssub.s32 %s36, %s40
    %s43 = sor.u32 %s41, %s42
    %p44 = scmp.eq.s32.totalorder %s43, 0
    %s46 = sadd.s32 %s45, 1
    %s47 = scalar_select %p44, %s45, %s46
    %p50 = pneg %p44
    %p51 = scmp.eq.s32.totalorder %s13, 3
    %p52 = por %p50, %p51
    %p53 = scmp.ne.s32.totalorder %s45, %s48
    %p54 = scmp.eq.s32.totalorder %s13, 0
    %p55 = por %p53, %p54
    %p56 = scmp.ne.s32.totalorder %s45, %s48
    %p57 = scmp.eq.s32.totalorder %s18, 3
    %p58 = por %p56, %p57
    %p59 = scmp.ne.s32.totalorder %s48, %s49
    %p60 = scmp.eq.s32.totalorder %s18, 0
    %p61 = por %p59, %p60
    %p62 = scmp.ne.s32.totalorder %s48, %s49
    %p63 = scmp.eq.s32.totalorder %s19, 3
    %p64 = por %p62, %p63
    %p66 = scmp.ne.s32.totalorder %s49, %s65
    %p67 = scmp.eq.s32.totalorder %s19, 0
    %p68 = por %p66, %p67
    %s69 = ssub.s32 %s20, %s32
    %s70 = ssub.s32 %s21, %s28
    %s71 = sor.u32 %s69, %s70
    %p72 = scmp.eq.s32.totalorder %s71, 0
    %s74 = sadd.s32 %s73, 1
    %s75 = scalar_select %p72, %s73, %s74
    %p78 = pneg %p72
    %p79 = scmp.eq.s32.totalorder %s13, 3
    %p80 = por %p78, %p79
    %p81 = scmp.ne.s32.totalorder %s73, %s76
    %p82 = scmp.eq.s32.totalorder %s13, 0
    %p83 = por %p81, %p82
    %p84 = scmp.ne.s32.totalorder %s73, %s76
    %p85 = scmp.eq.s32.totalorder %s18, 3
    %p86 = por %p84, %p85
    %p87 = scmp.ne.s32.totalorder %s76, %s77
    %p88 = scmp.eq.s32.totalorder %s18, 0
    %p89 = por %p87, %p88
    %p90 = scmp.ne.s32.totalorder %s76, %s77
    %p91 = scmp.eq.s32.totalorder %s19, 3
    %p92 = por %p90, %p91
    %p94 = scmp.ne.s32.totalorder %s77, %s93
    %p95 = scmp.eq.s32.totalorder %s19, 0
    %p96 = por %p94, %p95
    %s97 = sadd.s32 %s21, 1
    %s98 = smul.u32 %s97, 8
    %p99 = scmp.lt.s32.totalorder %s98, 15
    %s100 = scalar_select %p99, %s98, 15
    %s101 = sadd.s32 %s28, 1
    %s102 = smul.u32 %s101, 8
    %p103 = scmp.lt.s32.totalorder %s102, 15
    %s104 = scalar_select %p103, %s102, 15
    %s105 = ssub.s32 %s20, %s32
    %s106 = ssub.s32 %s100, %s104
    %s107 = sor.u32 %s105, %s106
    %p108 = scmp.eq.s32.totalorder %s107, 0
    %s110 = sadd.s32 %s109, 1
    %s111 = scalar_select %p108, %s109, %s110
    %p114 = pneg %p108
    %p115 = scmp.eq.s32.totalorder %s13, 3
    %p116 = por %p114, %p115
    %p117 = scmp.ne.s32.totalorder %s109, %s112
    %p118 = scmp.eq.s32.totalorder %s13, 0
    %p119 = por %p117, %p118
    %p120 = scmp.ne.s32.totalorder %s109, %s112
    %p121 = scmp.eq.s32.totalorder %s18, 3
    %p122 = por %p120, %p121
    %p123 = scmp.ne.s32.totalorder %s112, %s113
    %p124 = scmp.eq.s32.totalorder %s18, 0
    %p125 = por %p123, %p124
    %p126 = scmp.ne.s32.totalorder %s112, %s113
    %p127 = scmp.eq.s32.totalorder %s19, 3
    %p128 = por %p126, %p127
    %p130 = scmp.ne.s32.totalorder %s113, %s129
    %p131 = scmp.eq.s32.totalorder %s19, 0
    %p132 = por %p130, %p131
    %s134 = sadd.s32 %s133, 1
    %p137 = scmp.eq.s32.totalorder %s13, 3
    %p138 = scmp.ne.s32.totalorder %s133, %s135
    %p139 = scmp.eq.s32.totalorder %s13, 0
    %p140 = por %p138, %p139
    %p141 = scmp.ne.s32.totalorder %s133, %s135
    %p142 = scmp.eq.s32.totalorder %s18, 3
    %p143 = por %p141, %p142
    %p144 = scmp.ne.s32.totalorder %s135, %s136
    %p145 = scmp.eq.s32.totalorder %s18, 0
    %p146 = por %p144, %p145
    %p147 = scmp.ne.s32.totalorder %s135, %s136
    %p148 = scmp.eq.s32.totalorder %s19, 3
    %p149 = por %p147, %p148
    %p151 = scmp.ne.s32.totalorder %s136, %s150
    %p152 = scmp.eq.s32.totalorder %s19, 0
    %p153 = por %p151, %p152
    %s155 = sadd.s32 %s154, 1
    %p158 = scmp.eq.s32.totalorder %s13, 3
    %p159 = scmp.ne.s32.totalorder %s154, %s156
    %p160 = scmp.eq.s32.totalorder %s13, 0
    %p161 = por %p159, %p160
    %p162 = scmp.ne.s32.totalorder %s154, %s156
    %p163 = scmp.eq.s32.totalorder %s18, 3
    %p164 = por %p162, %p163
    %p165 = scmp.ne.s32.totalorder %s156, %s157
    %p166 = scmp.eq.s32.totalorder %s18, 0
    %p167 = por %p165, %p166
    %p168 = scmp.ne.s32.totalorder %s156, %s157
    %p169 = scmp.eq.s32.totalorder %s19, 3
    %p170 = por %p168, %p169
    %p172 = scmp.ne.s32.totalorder %s157, %s171
    %p173 = scmp.eq.s32.totalorder %s19, 0
    %p174 = por %p172, %p173
    %s176 = sadd.s32 %s175, 1
    %p179 = scmp.eq.s32.totalorder %s13, 3
    %p180 = scmp.ne.s32.totalorder %s175, %s177
    %p181 = scmp.eq.s32.totalorder %s13, 0
    %p182 = por %p180, %p181
    %p183 = scmp.ne.s32.totalorder %s175, %s177
    %p184 = scmp.eq.s32.totalorder %s18, 3
    %p185 = por %p183, %p184
    %p186 = scmp.ne.s32.totalorder %s177, %s178
    %p187 = scmp.eq.s32.totalorder %s18, 0
    %p188 = por %p186, %p187
    %p189 = scmp.ne.s32.totalorder %s177, %s178
    %p190 = scmp.eq.s32.totalorder %s19, 3
    %p191 = por %p189, %p190
    %p193 = scmp.ne.s32.totalorder %s178, %s192
    %p194 = scmp.eq.s32.totalorder %s19, 0
    %p195 = por %p193, %p194
    %s197 = sadd.s32 %s196, 1
    %p200 = scmp.eq.s32.totalorder %s13, 3
    %p201 = scmp.ne.s32.totalorder %s196, %s198
    %p202 = scmp.eq.s32.totalorder %s13, 0
    %p203 = por %p201, %p202
    %p204 = scmp.ne.s32.totalorder %s196, %s198
    %p205 = scmp.eq.s32.totalorder %s18, 3
    %p206 = por %p204, %p205
    %p207 = scmp.ne.s32.totalorder %s198, %s199
    %p208 = scmp.eq.s32.totalorder %s18, 0
    %p209 = por %p207, %p208
    %p210 = scmp.ne.s32.totalorder %s198, %s199
    %p211 = scmp.eq.s32.totalorder %s19, 3
    %p212 = por %p210, %p211
    %p214 = scmp.ne.s32.totalorder %s199, %s213
    %p215 = scmp.eq.s32.totalorder %s19, 0
    %p216 = por %p214, %p215
    %s217 = ssub.s32 %s20, %s32
    %s218 = ssub.s32 %s21, %s28
    %s219 = sor.u32 %s217, %s218
    %p220 = scmp.eq.s32.totalorder %s219, 0
    %s222 = sadd.s32 %s221, 1
    %s223 = scalar_select %p220, %s221, %s222
    %p226 = pneg %p220
    %p227 = scmp.eq.s32.totalorder %s13, 3
    %p228 = por %p226, %p227
    %p229 = scmp.ne.s32.totalorder %s221, %s224
    %p230 = scmp.eq.s32.totalorder %s13, 0
    %p231 = por %p229, %p230
    %p232 = scmp.ne.s32.totalorder %s221, %s224
    %p233 = scmp.eq.s32.totalorder %s18, 3
    %p234 = por %p232, %p233
    %p235 = scmp.ne.s32.totalorder %s224, %s225
    %p236 = scmp.eq.s32.totalorder %s18, 0
    %p237 = por %p235, %p236
    %p238 = scmp.ne.s32.totalorder %s224, %s225
    %p239 = scmp.eq.s32.totalorder %s19, 3
    %p240 = por %p238, %p239
    %p242 = scmp.ne.s32.totalorder %s225, %s241
    %p243 = scmp.eq.s32.totalorder %s19, 0
    %p244 = por %p242, %p243
    %p245 = scmp.le.s32.totalorder 1, %s13
    %p246 = scmp.lt.s32.totalorder %s13, 5
    %p247 = pnand %p245, %p246
    %p248 = pneg %p247
    // Predicated region
    $region9: #{bottleneck_forward.3} parent=5 // pred_check
      _
    $region10: #{bottleneck_forward.3} parent=5 // pred_check_branch
      %250 = sbr.rel (%p247) target = $region12
    $region11: #{bottleneck_forward.3} parent=5 // pred_region
      %s251 = ssub.s32 %s13, 1
      // Predicated region
      $region13: #{bottleneck_forward.3} parent=11 // pred_check
        %p252 = pneg %p146
      $region14: #{bottleneck_forward.3} parent=11 // pred_check_branch
        %254 = sbr.rel (%p252) target = $region16
      $region15: #{bottleneck_forward.3} parent=11 // pred_region
        _
      $region16: #{bottleneck_forward.3} parent=11 // pred_fallthru
        _
      // Predicated region
      $region17: #{bottleneck_forward.3} parent=11 // pred_check
        %p255 = pneg %p167
      $region18: #{bottleneck_forward.3} parent=11 // pred_check_branch
        %257 = sbr.rel (%p255) target = $region20
      $region19: #{bottleneck_forward.3} parent=11 // pred_region
        _
      $region20: #{bottleneck_forward.3} parent=11 // pred_fallthru
        _
      // Predicated region
      $region21: #{bottleneck_forward.3} parent=11 // pred_check
        %p258 = pneg %p188
      $region22: #{bottleneck_forward.3} parent=11 // pred_check_branch
        %260 = sbr.rel (%p258) target = $region24
      $region23: #{bottleneck_forward.3} parent=11 // pred_region
        _
      $region24: #{bottleneck_forward.3} parent=11 // pred_fallthru
        _
      // Predicated region
      $region25: #{bottleneck_forward.3} parent=11 // pred_check
        %p261 = pneg %p209
      $region26: #{bottleneck_forward.3} parent=11 // pred_check_branch
        %263 = sbr.rel (%p261) target = $region28
      $region27: #{bottleneck_forward.3} parent=11 // pred_region
        _
      $region28: #{bottleneck_forward.3} parent=11 // pred_fallthru
        _
    $region12: #{bottleneck_forward.3} parent=5 // pred_fallthru
      _
    %p264 = scmp.lt.s32.totalorder %s13, 4
    // Predicated region
    $region29: #{bottleneck_forward.3} parent=5 // pred_check
      %p265 = pneg %p264
    $region30: #{bottleneck_forward.3} parent=5 // pred_check_branch
      %267 = sbr.rel (%p265) target = $region32
    $region31: #{bottleneck_forward.3} parent=5 // pred_region
      // Predicated region
      $region33: #{bottleneck_forward.3} parent=31 // pred_check
        %p268 = pneg %p55
      $region34: #{bottleneck_forward.3} parent=31 // pred_check_branch
        %270 = sbr.rel (%p268) target = $region36
      $region35: #{bottleneck_forward.3} parent=31 // pred_region
        %s271 = smul.u32 %s21, 8
        %s272 = ssub.s32 %s271, 1
        %p273 = scmp.gt.s32.totalorder %s272, 0
        %s274 = scalar_select %p273, %s272, 0
        %p275 = scmp.lt.s32.totalorder %s20, 1
        %s276 = scalar_select %p275, %s20, 1
        %p277 = scmp.lt.s32.totalorder %s274, 15
        %s278 = scalar_select %p277, %s274, 15
        %s279 = smul.addr %s278, 2
        %s280 = smul.addr %s276, 32
        %s281 = sadd.s32 %s279, %s280
        %s282 = smul.addr %s281, 8
        %s283 = scalar_lea.vmem %s0, %s282
        %s284 = smul.u32 %s21, 8
        %s285 = ssub.s32 %s284, 1
        %p286 = scmp.gt.s32.totalorder %s285, 0
        %s287 = scalar_select %p286, %s285, 0
      $region36: #{bottleneck_forward.3} parent=31 // pred_fallthru
        _
      // Predicated region
      $region37: #{bottleneck_forward.3} parent=31 // pred_check
        %p288 = pneg %p83
      $region38: #{bottleneck_forward.3} parent=31 // pred_check_branch
        %290 = sbr.rel (%p288) target = $region40
      $region39: #{bottleneck_forward.3} parent=31 // pred_region
        %s291 = smul.u32 8, %s21
        %p292 = scmp.lt.s32.totalorder %s20, 1
        %s293 = scalar_select %p292, %s20, 1
        %p294 = scmp.lt.s32.totalorder %s291, 15
        %s295 = scalar_select %p294, %s291, 15
        %s296 = smul.addr %s295, 2
        %s297 = smul.addr %s293, 32
        %s298 = sadd.s32 %s296, %s297
        %s299 = smul.addr %s298, 8
        %s300 = scalar_lea.vmem %s1, %s299
        %s301 = smul.u32 8, %s21
      $region40: #{bottleneck_forward.3} parent=31 // pred_fallthru
        _
      // Predicated region
      $region41: #{bottleneck_forward.3} parent=31 // pred_check
        %p302 = pneg %p119
      $region42: #{bottleneck_forward.3} parent=31 // pred_check_branch
        %304 = sbr.rel (%p302) target = $region44
      $region43: #{bottleneck_forward.3} parent=31 // pred_region
        %s305 = sadd.s32 %s21, 1
        %s306 = smul.u32 %s305, 8
        %p307 = scmp.lt.s32.totalorder %s306, 15
        %s308 = scalar_select %p307, %s306, 15
        %p309 = scmp.lt.s32.totalorder %s20, 1
        %s310 = scalar_select %p309, %s20, 1
        %p311 = scmp.lt.s32.totalorder %s308, 15
        %s312 = scalar_select %p311, %s308, 15
        %s313 = smul.addr %s312, 2
        %s314 = smul.addr %s310, 32
        %s315 = sadd.s32 %s313, %s314
        %s316 = smul.addr %s315, 8
        %s317 = scalar_lea.vmem %s2, %s316
        %s318 = sadd.s32 %s21, 1
        %s319 = smul.u32 %s318, 8
        %p320 = scmp.lt.s32.totalorder %s319, 15
        %s321 = scalar_select %p320, %s319, 15
      $region44: #{bottleneck_forward.3} parent=31 // pred_fallthru
        _
    $region32: #{bottleneck_forward.3} parent=5 // pred_fallthru
      _
    %p322 = scmp.le.s32.totalorder 1, %s13
    %p323 = scmp.lt.s32.totalorder %s13, 5
    %p324 = pnand %p322, %p323
    %p325 = pneg %p324
    // Predicated region
    $region45: #{bottleneck_forward.3} parent=5 // pred_check
      _
    $region46: #{bottleneck_forward.3} parent=5 // pred_check_branch
      %327 = sbr.rel (%p324) target = $region48
    $region47: #{bottleneck_forward.3} parent=5 // pred_region
      %s328 = ssub.s32 %s13, 1
      %s329 = smul.u32 %s23, 8
      %s330 = ssub.s32 %s329, 1
      %p331 = scmp.gt.s32.totalorder %s330, 0
      %s332 = scalar_select %p331, %s330, 0
      %p333 = scmp.lt.s32.totalorder %s22, 1
      %s334 = scalar_select %p333, %s22, 1
      %p335 = scmp.lt.s32.totalorder %s332, 15
      %s336 = scalar_select %p335, %s332, 15
      %s337 = smul.addr %s336, 2
      %s338 = smul.addr %s334, 32
      %s339 = sadd.s32 %s337, %s338
      %s340 = smul.addr %s339, 8
      %s341 = scalar_lea.vmem %s0, %s340
      %p342 = pneg %p61
      %p343 = pneg %p58
      %s344 = smul.u32 8, %s23
      %p345 = scmp.lt.s32.totalorder %s22, 1
      %s346 = scalar_select %p345, %s22, 1
      %p347 = scmp.lt.s32.totalorder %s344, 15
      %s348 = scalar_select %p347, %s344, 15
      %s349 = smul.addr %s348, 2
      %s350 = smul.addr %s346, 32
      %s351 = sadd.s32 %s349, %s350
      %s352 = smul.addr %s351, 8
      %s353 = scalar_lea.vmem %s1, %s352
      %p354 = pneg %p89
      %p355 = pneg %p86
      %s356 = sadd.s32 %s23, 1
      %s357 = smul.u32 %s356, 8
      %p358 = scmp.lt.s32.totalorder %s357, 15
      %s359 = scalar_select %p358, %s357, 15
      %p360 = scmp.lt.s32.totalorder %s22, 1
      %s361 = scalar_select %p360, %s22, 1
      %p362 = scmp.lt.s32.totalorder %s359, 15
      %s363 = scalar_select %p362, %s359, 15
      %s364 = smul.addr %s363, 2
      %s365 = smul.addr %s361, 32
      %s366 = sadd.s32 %s364, %s365
      %s367 = smul.addr %s366, 8
      %s368 = scalar_lea.vmem %s2, %s367
      %p369 = pneg %p125
      %p370 = pneg %p122
      %p371 = pneg %p146
      %p372 = pneg %p143
      %p373 = pneg %p167
      %p374 = pneg %p164
      %p375 = pneg %p188
      %p376 = pneg %p185
      %p377 = pneg %p209
      %p378 = pneg %p206
      %p379 = pneg %p237
      %p380 = pneg %p234
      %s381 = smul.u32 8, %s23
      %p382 = scmp.lt.s32.totalorder %s22, 1
      %s383 = scalar_select %p382, %s22, 1
      %p384 = scmp.lt.s32.totalorder %s381, 15
      %s385 = scalar_select %p384, %s381, 15
      %s386 = smul.addr %s385, 2
      %s387 = smul.addr %s383, 32
      %s388 = sadd.s32 %s386, %s387
      %s389 = smul.addr %s388, 8
      %s390 = scalar_lea.vmem %s7, %s389
      %s391 = smul.u32 %s23, 8
      %s392 = ssub.s32 %s391, 1
      %p393 = scmp.gt.s32.totalorder %s392, 0
      %s394 = scalar_select %p393, %s392, 0
      %p395 = scmp.lt.s32.totalorder %s22, 1
      %s396 = scalar_select %p395, %s22, 1
      %p397 = scmp.lt.s32.totalorder %s394, 15
      %s398 = scalar_select %p397, %s394, 15
      %s399 = smul.addr %s398, 2
      %s400 = smul.addr %s396, 32
      %s401 = sadd.s32 %s399, %s400
      %s402 = smul.addr %s401, 8
      %s403 = scalar_lea.vmem %s0, %s402
      %s404 = smul.u32 %s23, 8
      %s405 = ssub.s32 %s404, 1
      %p406 = scmp.gt.s32.totalorder %s405, 0
      %s407 = scalar_select %p406, %s405, 0
      %s408 = smul.u32 8, %s23
      %p409 = scmp.lt.s32.totalorder %s22, 1
      %s410 = scalar_select %p409, %s22, 1
      %p411 = scmp.lt.s32.totalorder %s408, 15
      %s412 = scalar_select %p411, %s408, 15
      %s413 = smul.addr %s412, 2
      %s414 = smul.addr %s410, 32
      %s415 = sadd.s32 %s413, %s414
      %s416 = smul.addr %s415, 8
      %s417 = scalar_lea.vmem %s1, %s416
      %s418 = smul.u32 8, %s23
      %s419 = sadd.s32 %s23, 1
      %s420 = smul.u32 %s419, 8
      %p421 = scmp.lt.s32.totalorder %s420, 15
      %s422 = scalar_select %p421, %s420, 15
      %p423 = scmp.lt.s32.totalorder %s22, 1
      %s424 = scalar_select %p423, %s22, 1
      %p425 = scmp.lt.s32.totalorder %s422, 15
      %s426 = scalar_select %p425, %s422, 15
      %s427 = smul.addr %s426, 2
      %s428 = smul.addr %s424, 32
      %s429 = sadd.s32 %s427, %s428
      %s430 = smul.addr %s429, 8
      %s431 = scalar_lea.vmem %s2, %s430
      %s432 = sadd.s32 %s23, 1
      %s433 = smul.u32 %s432, 8
      %p434 = scmp.lt.s32.totalorder %s433, 15
      %s435 = scalar_select %p434, %s433, 15
      %s436 = smul.u32 8, %s23
      %p437 = scmp.lt.s32.totalorder %s22, 1
      %s438 = scalar_select %p437, %s22, 1
      %p439 = scmp.lt.s32.totalorder %s436, 15
      %s440 = scalar_select %p439, %s436, 15
      %s441 = smul.addr %s440, 2
      %s442 = smul.addr %s438, 32
      %s443 = sadd.s32 %s441, %s442
      %s444 = smul.addr %s443, 8
      %s445 = scalar_lea.vmem %s7, %s444
      %s446 = smul.u32 8, %s23
      %v448 = vld [vmem:[%s3] sm:$0x1]
      %v449 = vld [vmem:[%s4] sm:$0x1]
      %v450 = vld [vmem:[%s417] sm:$0xff]
      %v451 = vld [vmem:[%s417 + $0x8] sm:$0xff]
      %v452 = vld [vmem:[%s417 + $0x10] sm:$0xff]
      %v453 = vld [vmem:[%s417 + $0x18] sm:$0xff]
      %v454 = vld [vmem:[%s417 + $0x20] sm:$0xff]
      %v455 = vld [vmem:[%s417 + $0x28] sm:$0xff]
      %v456 = vld [vmem:[%s417 + $0x30] sm:$0xff]
      %v457 = vld [vmem:[%s417 + $0x38] sm:$0xff]
      %v458 = vld [vmem:[%s417 + $0x40] sm:$0xff]
      %v459 = vld [vmem:[%s417 + $0x48] sm:$0xff]
      %v460 = vld [vmem:[%s417 + $0x50] sm:$0xff]
      %v461 = vld [vmem:[%s417 + $0x58] sm:$0xff]
      %v462 = vld [vmem:[%s417 + $0x60] sm:$0xff]
      %v463 = vld [vmem:[%s417 + $0x68] sm:$0xff]
      %v464 = vld [vmem:[%s417 + $0x70] sm:$0xff]
      %v465 = vld [vmem:[%s417 + $0x78] sm:$0xff]
      %v467 = vlaneseq
      %v468 = vshrl.u32 %v467, 7
      %v469 = vsub.s32 0, %v468
      %v470 = vrot.slane %v448, %v469
      %v472 = vmul.f32 %v450, %v470
      %v473 = vmul.f32 %v451, %v470
      %v474 = vmul.f32 %v452, %v470
      %v475 = vmul.f32 %v453, %v470
      %v476 = vmul.f32 %v454, %v470
      %v477 = vmul.f32 %v455, %v470
      %v478 = vmul.f32 %v456, %v470
      %v479 = vmul.f32 %v457, %v470
      %v480 = vmul.f32 %v458, %v470
      %v481 = vmul.f32 %v459, %v470
      %v482 = vmul.f32 %v460, %v470
      %v483 = vmul.f32 %v461, %v470
      %v484 = vmul.f32 %v462, %v470
      %v485 = vmul.f32 %v463, %v470
      %v486 = vmul.f32 %v464, %v470
      %v487 = vmul.f32 %v465, %v470
      %v489 = vlaneseq
      %v490 = vshrl.u32 %v489, 7
      %v491 = vsub.s32 0, %v490
      %v492 = vrot.slane %v449, %v491
      %v494 = vadd.f32 %v472, %v492
      %v495 = vadd.f32 %v473, %v492
      %v496 = vadd.f32 %v474, %v492
      %v497 = vadd.f32 %v475, %v492
      %v498 = vadd.f32 %v476, %v492
      %v499 = vadd.f32 %v477, %v492
      %v500 = vadd.f32 %v478, %v492
      %v501 = vadd.f32 %v479, %v492
      %v502 = vadd.f32 %v480, %v492
      %v503 = vadd.f32 %v481, %v492
      %v504 = vadd.f32 %v482, %v492
      %v505 = vadd.f32 %v483, %v492
      %v506 = vadd.f32 %v484, %v492
      %v507 = vadd.f32 %v485, %v492
      %v508 = vadd.f32 %v486, %v492
      %v509 = vadd.f32 %v487, %v492
      %v510 = vmax.f32 %v494, 0.0
      %v511 = vmax.f32 %v495, 0.0
      %v512 = vmax.f32 %v496, 0.0
      %v513 = vmax.f32 %v497, 0.0
      %v514 = vmax.f32 %v498, 0.0
      %v515 = vmax.f32 %v499, 0.0
      %v516 = vmax.f32 %v500, 0.0
      %v517 = vmax.f32 %v501, 0.0
      %v518 = vmax.f32 %v502, 0.0
      %v519 = vmax.f32 %v503, 0.0
      %v520 = vmax.f32 %v504, 0.0
      %v521 = vmax.f32 %v505, 0.0
      %v522 = vmax.f32 %v506, 0.0
      %v523 = vmax.f32 %v507, 0.0
      %v524 = vmax.f32 %v508, 0.0
      %v525 = vmax.f32 %v509, 0.0
      %v526 = vld [vmem:[%s403] sm:$0xff]
      %v527 = vld [vmem:[%s403 + $0x8] sm:$0xff]
      %v528 = vmul.f32 %v526, %v470
      %v529 = vmul.f32 %v527, %v470
      %v530 = vadd.f32 %v528, %v492
      %v531 = vadd.f32 %v529, %v492
      %v532 = vmax.f32 %v530, 0.0
      %v533 = vmax.f32 %v531, 0.0
      %v534 = vld [vmem:[%s431] sm:$0xff]
      %v535 = vld [vmem:[%s431 + $0x8] sm:$0xff]
      %v536 = vmul.f32 %v534, %v470
      %v537 = vmul.f32 %v535, %v470
      %v538 = vadd.f32 %v536, %v492
      %v539 = vadd.f32 %v537, %v492
      %v540 = vmax.f32 %v538, 0.0
      %v541 = vmax.f32 %v539, 0.0
      %p542 = scmp.gt.s32.totalorder %s23, 0
      %s543 = scalar_select %p542, 1, 0
      %s544 = scvt.s32.f32 %s543
      %v545 = vstv %s544
      %v546 = vmul.f32 %v532, %v545
      %v547 = vmul.f32 %v533, %v545
      %p548 = scmp.lt.s32.totalorder %s23, 1
      %s549 = scalar_select %p548, 1, 0
      %s550 = scvt.s32.f32 %s549
      %v551 = vstv %s550
      %v552 = vmul.f32 %v540, %v551
      %v553 = vmul.f32 %v541, %v551
      %554 = vst [vmem:[#allocation2] sm:$0x1] 0.0
      %555 = vst [vmem:[#allocation2 + $0x18] sm:$0x1] 0.0
      %556 = vst [vmem:[#allocation2 + $0x30] sm:$0x1] 0.0
      %557 = vst [vmem:[#allocation2 + $0x48] sm:$0x1] 0.0
      %558 = vst [vmem:[#allocation2 + $0x60] sm:$0x1] 0.0
      %559 = vst [vmem:[#allocation2 + $0x78] sm:$0x1] 0.0
      %560 = vst [vmem:[#allocation2 + $0x90] sm:$0x1] 0.0
      %561 = vst [vmem:[#allocation2 + $0xa8] sm:$0x1] 0.0
      %562 = vst [vmem:[#allocation2 + $0xc0] sm:$0x1] 0.0
      %563 = vst [vmem:[#allocation2 + $0xd8] sm:$0x1] 0.0
      %564 = vst [vmem:[#allocation2 + $0x11] sm:$0x1] 0.0
      %565 = vst [vmem:[#allocation2 + $0x29] sm:$0x1] 0.0
      %566 = vst [vmem:[#allocation2 + $0x41] sm:$0x1] 0.0
      %567 = vst [vmem:[#allocation2 + $0x59] sm:$0x1] 0.0
      %568 = vst [vmem:[#allocation2 + $0x71] sm:$0x1] 0.0
      %569 = vst [vmem:[#allocation2 + $0x89] sm:$0x1] 0.0
      %570 = vst [vmem:[#allocation2 + $0xa1] sm:$0x1] 0.0
      %571 = vst [vmem:[#allocation2 + $0xb9] sm:$0x1] 0.0
      %572 = vst [vmem:[#allocation2 + $0xd1] sm:$0x1] 0.0
      %573 = vst [vmem:[#allocation2 + $0xe9] sm:$0x1] 0.0
      %574 = vst [vmem:[#allocation2 + $0x1] sm:$0xff] %v546
      %575 = vst [vmem:[#allocation2 + $0x9] sm:$0xff] %v547
      %s576 = scalar_lea.vmem [#allocation2], 24
      %577 = vst [vmem:[%s576 + $0x1] sm:$0xff] %v510
      %578 = vst [vmem:[%s576 + $0x9] sm:$0xff] %v511
      %579 = vst [vmem:[%s576 + $0x19] sm:$0xff] %v512
      %580 = vst [vmem:[%s576 + $0x21] sm:$0xff] %v513
      %581 = vst [vmem:[%s576 + $0x31] sm:$0xff] %v514
      %582 = vst [vmem:[%s576 + $0x39] sm:$0xff] %v515
      %583 = vst [vmem:[%s576 + $0x49] sm:$0xff] %v516
      %584 = vst [vmem:[%s576 + $0x51] sm:$0xff] %v517
      %585 = vst [vmem:[%s576 + $0x61] sm:$0xff] %v518
      %586 = vst [vmem:[%s576 + $0x69] sm:$0xff] %v519
      %587 = vst [vmem:[%s576 + $0x79] sm:$0xff] %v520
      %588 = vst [vmem:[%s576 + $0x81] sm:$0xff] %v521
      %589 = vst [vmem:[%s576 + $0x91] sm:$0xff] %v522
      %590 = vst [vmem:[%s576 + $0x99] sm:$0xff] %v523
      %591 = vst [vmem:[%s576 + $0xa9] sm:$0xff] %v524
      %592 = vst [vmem:[%s576 + $0xb1] sm:$0xff] %v525
      %s593 = scalar_lea.vmem [#allocation2], 216
      %594 = vst [vmem:[%s593 + $0x1] sm:$0xff] %v552
      %595 = vst [vmem:[%s593 + $0x9] sm:$0xff] %v553
      %v596 = vlaneseq
      %v597 = vand.u32 %v596, 127
      %v598 = vld [vmem:[#allocation2] sm:$0xff]
      %v599 = vld [vmem:[#allocation2 + $0x8] sm:$0xff]
      %v600 = vld [vmem:[#allocation2 + $0x18] sm:$0xff]
      %v601 = vld [vmem:[#allocation2 + $0x20] sm:$0xff]
      %v602 = vld [vmem:[#allocation2 + $0x30] sm:$0xff]
      %v603 = vld [vmem:[#allocation2 + $0x38] sm:$0xff]
      %v604 = vld [vmem:[#allocation2 + $0x48] sm:$0xff]
      %v605 = vld [vmem:[#allocation2 + $0x50] sm:$0xff]
      %v606 = vld [vmem:[#allocation2 + $0x60] sm:$0xff]
      %v607 = vld [vmem:[#allocation2 + $0x68] sm:$0xff]
      %v608 = vld [vmem:[#allocation2 + $0x78] sm:$0xff]
      %v609 = vld [vmem:[#allocation2 + $0x80] sm:$0xff]
      %v610 = vld [vmem:[#allocation2 + $0x90] sm:$0xff]
      %v611 = vld [vmem:[#allocation2 + $0x98] sm:$0xff]
      %v612 = vld [vmem:[#allocation2 + $0xa8] sm:$0xff]
      %v613 = vld [vmem:[#allocation2 + $0xb0] sm:$0xff]
      %v614 = vld [vmem:[#allocation2 + $0xc0] sm:$0xff]
      %v615 = vld [vmem:[#allocation2 + $0xc8] sm:$0xff]
      %v616 = vld [vmem:[#allocation2 + $0xd8] sm:$0xff]
      %v617 = vld [vmem:[#allocation2 + $0xe0] sm:$0xff]
      %v618 = vpack.c.bf16 %v599, %v598
      %v619 = vpack.c.bf16 %v601, %v600
      %v620 = vpack.c.bf16 %v603, %v602
      %v621 = vpack.c.bf16 %v605, %v604
      %v622 = vpack.c.bf16 %v607, %v606
      %v623 = vpack.c.bf16 %v609, %v608
      %v624 = vpack.c.bf16 %v611, %v610
      %v625 = vpack.c.bf16 %v613, %v612
      %v626 = vpack.c.bf16 %v615, %v614
      %v627 = vpack.c.bf16 %v617, %v616
      %v628 = vld [vmem:[%s5] sm:$0xf]
      %v629 = vld [vmem:[%s5 + $0x4] sm:$0xf]
      %v630 = vld [vmem:[%s5 + $0x8] sm:$0xf]
      %v631 = vld [vmem:[%s5 + $0xc] sm:$0xf]
      %v632 = vld [vmem:[%s5 + $0x10] sm:$0xf]
      %v633 = vld [vmem:[%s5 + $0x14] sm:$0xf]
      %v634 = vld [vmem:[%s5 + $0x18] sm:$0xf]
      %v635 = vld [vmem:[%s5 + $0x1c] sm:$0xf]
      %v636 = vld [vmem:[%s5 + $0x20] sm:$0xf]
      %v637 = vld [vmem:[%s5 + $0x24] sm:$0xf]
      %v638 = vld [vmem:[%s5 + $0x28] sm:$0xf]
      %v639 = vld [vmem:[%s5 + $0x2c] sm:$0xf]
      %v640 = vld [vmem:[%s5 + $0x30] sm:$0xf]
      %v641 = vld [vmem:[%s5 + $0x34] sm:$0xf]
      %v642 = vld [vmem:[%s5 + $0x38] sm:$0xf]
      %v643 = vld [vmem:[%s5 + $0x3c] sm:$0xf]
      %v660 = vunpack.c.l.b16 %v628
      %v661 = vunpack.c.l.b16 %v629
      %v662 = vunpack.c.l.b16 %v630
      %v663 = vunpack.c.l.b16 %v631
      %v664 = vunpack.c.l.b16 %v632
      %v665 = vunpack.c.l.b16 %v633
      %v666 = vunpack.c.l.b16 %v634
      %v667 = vunpack.c.l.b16 %v635
      %v668 = vunpack.c.l.b16 %v636
      %v669 = vunpack.c.l.b16 %v637
      %v670 = vunpack.c.l.b16 %v638
      %v671 = vunpack.c.l.b16 %v639
      %v672 = vunpack.c.l.b16 %v640
      %v673 = vunpack.c.l.b16 %v641
      %v674 = vunpack.c.l.b16 %v642
      %v675 = vunpack.c.l.b16 %v643
      %v676 = vpack.c.b16 %v661, %v660
      %v677 = vpack.c.b16 %v663, %v662
      %v678 = vpack.c.b16 %v665, %v664
      %v679 = vpack.c.b16 %v667, %v666
      %v680 = vpack.c.b16 %v669, %v668
      %v681 = vpack.c.b16 %v671, %v670
      %v682 = vpack.c.b16 %v673, %v672
      %v683 = vpack.c.b16 %v675, %v674
      %692 = vmatprep.subr.bf16.mxu0 0
      %693 = vmatpush1.bf16.msra.mxu0 %v676
      %694 = vmatprep.subr.bf16.mxu0 0
      %695 = vmatpush1.bf16.msra.mxu0 %v677
      %696 = vmatprep.subr.bf16.mxu0 0
      %697 = vmatpush1.bf16.msra.mxu0 %v678
      %698 = vmatprep.subr.bf16.mxu0 0
      %699 = vmatpush1.bf16.msra.mxu0 %v679
      %700 = vmatprep.subr.bf16.mxu0 0
      %701 = vmatpush1.bf16.msra.mxu0 %v680
      %702 = vmatprep.subr.bf16.mxu0 0
      %703 = vmatpush1.bf16.msra.mxu0 %v681
      %704 = vmatprep.subr.bf16.mxu0 0
      %705 = vmatpush1.bf16.msra.mxu0 %v682
      %706 = vmatprep.subr.bf16.mxu0 0
      %707 = vmatpush1.bf16.msra.mxu0 %v683
      %708 = vmatprep.subr.bf16.mxu0 0
      %709 = vmatpush1.bf16.msra.mxu0 0
      %710 = vmatprep.subr.bf16.mxu0 0
      %711 = vmatpush1.bf16.msra.mxu0 0
      %712 = vmatprep.subr.bf16.mxu0 0
      %713 = vmatpush1.bf16.msra.mxu0 0
      %714 = vmatprep.subr.bf16.mxu0 0
      %715 = vmatpush1.bf16.msra.mxu0 0
      %716 = vmatprep.subr.bf16.mxu0 0
      %717 = vmatpush1.bf16.msra.mxu0 0
      %718 = vmatprep.subr.bf16.mxu0 0
      %719 = vmatpush1.bf16.msra.mxu0 0
      %720 = vmatprep.subr.bf16.mxu0 0
      %721 = vmatpush1.bf16.msra.mxu0 0
      %722 = vmatprep.subr.bf16.mxu0 0
      %723 = vmatpush1.bf16.msra.mxu0 0
      %724 = vmatprep.mubr.bf16.mxu0 0
      %725 = vmatmul.mubr.bf16.gmra.mrb[0].mxu0 %v618
      %v726 = vpop.f32.mrb[0].mxu0
      %v727 = vadd.f32 0.0, %v726
      %v728 = vpop.f32.mrb[0].mxu0
      %v729 = vpop.f32.mrb[0].mxu0
      %v730 = vadd.f32 0.0, %v729
      %v731 = vpop.f32.mrb[0].mxu0
      %732 = vmatprep.mubr.bf16.mxu0 0
      %733 = vmatmul.mubr.bf16.gmra.mrb[0].mxu0 %v619
      %v734 = vpop.f32.mrb[0].mxu0
      %v735 = vadd.f32 0.0, %v734
      %v736 = vpop.f32.mrb[0].mxu0
      %v737 = vpop.f32.mrb[0].mxu0
      %v738 = vadd.f32 0.0, %v737
      %v739 = vpop.f32.mrb[0].mxu0
      %740 = vmatprep.mubr.bf16.mxu0 0
      %741 = vmatmul.mubr.bf16.gmra.mrb[0].mxu0 %v620
      %v742 = vpop.f32.mrb[0].mxu0
      %v743 = vadd.f32 0.0, %v742
      %v744 = vpop.f32.mrb[0].mxu0
      %v745 = vpop.f32.mrb[0].mxu0
      %v746 = vadd.f32 0.0, %v745
      %v747 = vpop.f32.mrb[0].mxu0
      %748 = vmatprep.mubr.bf16.mxu0 0
      %749 = vmatmul.mubr.bf16.gmra.mrb[0].mxu0 %v621
      %v750 = vpop.f32.mrb[0].mxu0
      %v751 = vadd.f32 0.0, %v750
      %v752 = vpop.f32.mrb[0].mxu0
      %v753 = vpop.f32.mrb[0].mxu0
      %v754 = vadd.f32 0.0, %v753
      %v755 = vpop.f32.mrb[0].mxu0
      %756 = vmatprep.mubr.bf16.mxu0 0
      %757 = vmatmul.mubr.bf16.gmra.mrb[0].mxu0 %v622
      %v758 = vpop.f32.mrb[0].mxu0
      %v759 = vadd.f32 0.0, %v758
      %v760 = vpop.f32.mrb[0].mxu0
      %v761 = vpop.f32.mrb[0].mxu0
      %v762 = vadd.f32 0.0, %v761
      %v763 = vpop.f32.mrb[0].mxu0
      %764 = vmatprep.mubr.bf16.mxu0 0
      %765 = vmatmul.mubr.bf16.gmra.mrb[0].mxu0 %v623
      %v766 = vpop.f32.mrb[0].mxu0
      %v767 = vadd.f32 0.0, %v766
      %v768 = vpop.f32.mrb[0].mxu0
      %v769 = vpop.f32.mrb[0].mxu0
      %v770 = vadd.f32 0.0, %v769
      %v771 = vpop.f32.mrb[0].mxu0
      %772 = vmatprep.mubr.bf16.mxu0 0
      %773 = vmatmul.mubr.bf16.gmra.mrb[0].mxu0 %v624
      %v774 = vpop.f32.mrb[0].mxu0
      %v775 = vadd.f32 0.0, %v774
      %v776 = vpop.f32.mrb[0].mxu0
      %v777 = vpop.f32.mrb[0].mxu0
      %v778 = vadd.f32 0.0, %v777
      %v779 = vpop.f32.mrb[0].mxu0
      %780 = vmatprep.mubr.bf16.mxu0 0
      %781 = vmatmul.mubr.bf16.gmra.mrb[0].mxu0 %v625
      %v782 = vpop.f32.mrb[0].mxu0
      %v783 = vadd.f32 0.0, %v782
      %v784 = vpop.f32.mrb[0].mxu0
      %v785 = vpop.f32.mrb[0].mxu0
      %v786 = vadd.f32 0.0, %v785
      %v787 = vpop.f32.mrb[0].mxu0
      %788 = vmatprep.mubr.bf16.mxu0 0
      %789 = vmatmul.mubr.bf16.gmra.mrb[0].mxu0 %v626
      %v790 = vpop.f32.mrb[0].mxu0
      %v791 = vadd.f32 0.0, %v790
      %v792 = vpop.f32.mrb[0].mxu0
      %v793 = vpop.f32.mrb[0].mxu0
      %v794 = vadd.f32 0.0, %v793
      %v795 = vpop.f32.mrb[0].mxu0
      %796 = vmatprep.mubr.bf16.mxu0 0
      %797 = vmatmul.mubr.bf16.gmra.mrb[0].mxu0 %v627
      %v798 = vpop.f32.mrb[0].mxu0
      %v799 = vadd.f32 0.0, %v798
      %v800 = vpop.f32.mrb[0].mxu0
      %v801 = vpop.f32.mrb[0].mxu0
      %v802 = vadd.f32 0.0, %v801
      %v803 = vpop.f32.mrb[0].mxu0
      %804 = vdwg.mxu0
      %vm805 = vcmp.lt.s32.totalorder %v597, 32
      %vm806 = vcmp.lt.s32.totalorder %v597, 64
      %v807 = vsel %vm806, %v735, %v743
      %v808 = vsel %vm806, %v738, %v746
      %v809 = vsel %vm806, %v743, %v751
      %v810 = vsel %vm806, %v746, %v754
      %v811 = vsel %vm806, %v751, %v759
      %v812 = vsel %vm806, %v754, %v762
      %v813 = vsel %vm806, %v759, %v767
      %v814 = vsel %vm806, %v762, %v770
      %v815 = vsel %vm806, %v767, %v775
      %v816 = vsel %vm806, %v770, %v778
      %v817 = vsel %vm806, %v775, %v783
      %v818 = vsel %vm806, %v778, %v786
      %v819 = vsel %vm806, %v783, %v791
      %v820 = vsel %vm806, %v786, %v794
      %v821 = vsel %vm806, %v791, %v799
      %v822 = vsel %vm806, %v794, %v802
      %v823 = vsel %vm805, %v727, %v807
      %v824 = vsel %vm805, %v730, %v808
      %v825 = vsel %vm805, %v735, %v809
      %v826 = vsel %vm805, %v738, %v810
      %v827 = vsel %vm805, %v743, %v811
      %v828 = vsel %vm805, %v746, %v812
      %v829 = vsel %vm805, %v751, %v813
      %v830 = vsel %vm805, %v754, %v814
      %v831 = vsel %vm805, %v759, %v815
      %v832 = vsel %vm805, %v762, %v816
      %v833 = vsel %vm805, %v767, %v817
      %v834 = vsel %vm805, %v770, %v818
      %v835 = vsel %vm805, %v775, %v819
      %v836 = vsel %vm805, %v778, %v820
      %v837 = vsel %vm805, %v783, %v821
      %v838 = vsel %vm805, %v786, %v822
      %v839 = vadd.f32 %v823, 0.0
      %v840 = vadd.f32 %v824, 0.0
      %v841 = vadd.f32 %v825, 0.0
      %v842 = vadd.f32 %v826, 0.0
      %v843 = vadd.f32 %v827, 0.0
      %v844 = vadd.f32 %v828, 0.0
      %v845 = vadd.f32 %v829, 0.0
      %v846 = vadd.f32 %v830, 0.0
      %v847 = vadd.f32 %v831, 0.0
      %v848 = vadd.f32 %v832, 0.0
      %v849 = vadd.f32 %v833, 0.0
      %v850 = vadd.f32 %v834, 0.0
      %v851 = vadd.f32 %v835, 0.0
      %v852 = vadd.f32 %v836, 0.0
      %v853 = vadd.f32 %v837, 0.0
      %v854 = vadd.f32 %v838, 0.0
      %v855 = vld [vmem:[#allocation2 + $0x1] sm:$0xff]
      %v856 = vld [vmem:[#allocation2 + $0x9] sm:$0xff]
      %v857 = vld [vmem:[#allocation2 + $0x19] sm:$0xff]
      %v858 = vld [vmem:[#allocation2 + $0x21] sm:$0xff]
      %v859 = vld [vmem:[#allocation2 + $0x31] sm:$0xff]
      %v860 = vld [vmem:[#allocation2 + $0x39] sm:$0xff]
      %v861 = vld [vmem:[#allocation2 + $0x49] sm:$0xff]
      %v862 = vld [vmem:[#allocation2 + $0x51] sm:$0xff]
      %v863 = vld [vmem:[#allocation2 + $0x61] sm:$0xff]
      %v864 = vld [vmem:[#allocation2 + $0x69] sm:$0xff]
      %v865 = vld [vmem:[#allocation2 + $0x79] sm:$0xff]
      %v866 = vld [vmem:[#allocation2 + $0x81] sm:$0xff]
      %v867 = vld [vmem:[#allocation2 + $0x91] sm:$0xff]
      %v868 = vld [vmem:[#allocation2 + $0x99] sm:$0xff]
      %v869 = vld [vmem:[#allocation2 + $0xa9] sm:$0xff]
      %v870 = vld [vmem:[#allocation2 + $0xb1] sm:$0xff]
      %v871 = vld [vmem:[#allocation2 + $0xc1] sm:$0xff]
      %v872 = vld [vmem:[#allocation2 + $0xc9] sm:$0xff]
      %v873 = vld [vmem:[#allocation2 + $0xd9] sm:$0xff]
      %v874 = vld [vmem:[#allocation2 + $0xe1] sm:$0xff]
      %v875 = vpack.c.bf16 %v856, %v855
      %v876 = vpack.c.bf16 %v858, %v857
      %v877 = vpack.c.bf16 %v860, %v859
      %v878 = vpack.c.bf16 %v862, %v861
      %v879 = vpack.c.bf16 %v864, %v863
      %v880 = vpack.c.bf16 %v866, %v865
      %v881 = vpack.c.bf16 %v868, %v867
      %v882 = vpack.c.bf16 %v870, %v869
      %v883 = vpack.c.bf16 %v872, %v871
      %v884 = vpack.c.bf16 %v874, %v873
      %s885 = scalar_lea.vmem %s5, 64
      %v886 = vld [vmem:[%s885] sm:$0xf]
      %v887 = vld [vmem:[%s885 + $0x4] sm:$0xf]
      %v888 = vld [vmem:[%s885 + $0x8] sm:$0xf]
      %v889 = vld [vmem:[%s885 + $0xc] sm:$0xf]
      %v890 = vld [vmem:[%s885 + $0x10] sm:$0xf]
      %v891 = vld [vmem:[%s885 + $0x14] sm:$0xf]
      %v892 = vld [vmem:[%s885 + $0x18] sm:$0xf]
      %v893 = vld [vmem:[%s885 + $0x1c] sm:$0xf]
      %v894 = vld [vmem:[%s885 + $0x20] sm:$0xf]
      %v895 = vld [vmem:[%s885 + $0x24] sm:$0xf]
      %v896 = vld [vmem:[%s885 + $0x28] sm:$0xf]
      %v897 = vld [vmem:[%s885 + $0x2c] sm:$0xf]
      %v898 = vld [vmem:[%s885 + $0x30] sm:$0xf]
      %v899 = vld [vmem:[%s885 + $0x34] sm:$0xf]
      %v900 = vld [vmem:[%s885 + $0x38] sm:$0xf]
      %v901 = vld [vmem:[%s885 + $0x3c] sm:$0xf]
      %v918 = vunpack.c.l.b16 %v886
      %v919 = vunpack.c.l.b16 %v887
      %v920 = vunpack.c.l.b16 %v888
      %v921 = vunpack.c.l.b16 %v889
      %v922 = vunpack.c.l.b16 %v890
      %v923 = vunpack.c.l.b16 %v891
      %v924 = vunpack.c.l.b16 %v892
      %v925 = vunpack.c.l.b16 %v893
      %v926 = vunpack.c.l.b16 %v894
      %v927 = vunpack.c.l.b16 %v895
      %v928 = vunpack.c.l.b16 %v896
      %v929 = vunpack.c.l.b16 %v897
      %v930 = vunpack.c.l.b16 %v898
      %v931 = vunpack.c.l.b16 %v899
      %v932 = vunpack.c.l.b16 %v900
      %v933 = vunpack.c.l.b16 %v901
      %v934 = vpack.c.b16 %v919, %v918
      %v935 = vpack.c.b16 %v921, %v920
      %v936 = vpack.c.b16 %v923, %v922
      %v937 = vpack.c.b16 %v925, %v924
      %v938 = vpack.c.b16 %v927, %v926
      %v939 = vpack.c.b16 %v929, %v928
      %v940 = vpack.c.b16 %v931, %v930
      %v941 = vpack.c.b16 %v933, %v932
      %950 = vmatprep.subr.bf16.mxu0 0
      %951 = vmatpush1.bf16.msra.mxu0 %v934
      %952 = vmatprep.subr.bf16.mxu0 0
      %953 = vmatpush1.bf16.msra.mxu0 %v935
      %954 = vmatprep.subr.bf16.mxu0 0
      %955 = vmatpush1.bf16.msra.mxu0 %v936
      %956 = vmatprep.subr.bf16.mxu0 0
      %957 = vmatpush1.bf16.msra.mxu0 %v937
      %958 = vmatprep.subr.bf16.mxu0 0
      %959 = vmatpush1.bf16.msra.mxu0 %v938
      %960 = vmatprep.subr.bf16.mxu0 0
      %961 = vmatpush1.bf16.msra.mxu0 %v939
      %962 = vmatprep.subr.bf16.mxu0 0
      %963 = vmatpush1.bf16.msra.mxu0 %v940
      %964 = vmatprep.subr.bf16.mxu0 0
      %965 = vmatpush1.bf16.msra.mxu0 %v941
      %966 = vmatprep.subr.bf16.mxu0 0
      %967 = vmatpush1.bf16.msra.mxu0 0
      %968 = vmatprep.subr.bf16.mxu0 0
      %969 = vmatpush1.bf16.msra.mxu0 0
      %970 = vmatprep.subr.bf16.mxu0 0
      %971 = vmatpush1.bf16.msra.mxu0 0
      %972 = vmatprep.subr.bf16.mxu0 0
      %973 = vmatpush1.bf16.msra.mxu0 0
      %974 = vmatprep.subr.bf16.mxu0 0
      %975 = vmatpush1.bf16.msra.mxu0 0
      %976 = vmatprep.subr.bf16.mxu0 0
      %977 = vmatpush1.bf16.msra.mxu0 0
      %978 = vmatprep.subr.bf16.mxu0 0
      %979 = vmatpush1.bf16.msra.mxu0 0
      %980 = vmatprep.subr.bf16.mxu0 0
      %981 = vmatpush1.bf16.msra.mxu0 0
      %982 = vmatprep.mubr.bf16.mxu0 0
      %983 = vmatmul.mubr.bf16.gmra.mrb[0].mxu0 %v875
      %v984 = vpop.f32.mrb[0].mxu0
      %v985 = vadd.f32 0.0, %v984
      %v986 = vpop.f32.mrb[0].mxu0
      %v987 = vpop.f32.mrb[0].mxu0
      %v988 = vadd.f32 0.0, %v987
      %v989 = vpop.f32.mrb[0].mxu0
      %990 = vmatprep.mubr.bf16.mxu0 0
      %991 = vmatmul.mubr.bf16.gmra.mrb[0].mxu0 %v876
      %v992 = vpop.f32.mrb[0].mxu0
      %v993 = vadd.f32 0.0, %v992
      %v994 = vpop.f32.mrb[0].mxu0
      %v995 = vpop.f32.mrb[0].mxu0
      %v996 = vadd.f32 0.0, %v995
      %v997 = vpop.f32.mrb[0].mxu0
      %998 = vmatprep.mubr.bf16.mxu0 0
      %999 = vmatmul.mubr.bf16.gmra.mrb[0].mxu0 %v877
      %v1000 = vpop.f32.mrb[0].mxu0
      %v1001 = vadd.f32 0.0, %v1000
      %v1002 = vpop.f32.mrb[0].mxu0
      %v1003 = vpop.f32.mrb[0].mxu0
      %v1004 = vadd.f32 0.0, %v1003
      %v1005 = vpop.f32.mrb[0].mxu0
      %1006 = vmatprep.mubr.bf16.mxu0 0
      %1007 = vmatmul.mubr.bf16.gmra.mrb[0].mxu0 %v878
      %v1008 = vpop.f32.mrb[0].mxu0
      %v1009 = vadd.f32 0.0, %v1008
      %v1010 = vpop.f32.mrb[0].mxu0
      %v1011 = vpop.f32.mrb[0].mxu0
      %v1012 = vadd.f32 0.0, %v1011
      %v1013 = vpop.f32.mrb[0].mxu0
      %1014 = vmatprep.mubr.bf16.mxu0 0
      %1015 = vmatmul.mubr.bf16.gmra.mrb[0].mxu0 %v879
      %v1016 = vpop.f32.mrb[0].mxu0
      %v1017 = vadd.f32 0.0, %v1016
      %v1018 = vpop.f32.mrb[0].mxu0
      %v1019 = vpop.f32.mrb[0].mxu0
      %v1020 = vadd.f32 0.0, %v1019
      %v1021 = vpop.f32.mrb[0].mxu0
      %1022 = vmatprep.mubr.bf16.mxu0 0
      %1023 = vmatmul.mubr.bf16.gmra.mrb[0].mxu0 %v880
      %v1024 = vpop.f32.mrb[0].mxu0
      %v1025 = vadd.f32 0.0, %v1024
      %v1026 = vpop.f32.mrb[0].mxu0
      %v1027 = vpop.f32.mrb[0].mxu0
      %v1028 = vadd.f32 0.0, %v1027
      %v1029 = vpop.f32.mrb[0].mxu0
      %1030 = vmatprep.mubr.bf16.mxu0 0
      %1031 = vmatmul.mubr.bf16.gmra.mrb[0].mxu0 %v881
      %v1032 = vpop.f32.mrb[0].mxu0
      %v1033 = vadd.f32 0.0, %v1032
      %v1034 = vpop.f32.mrb[0].mxu0
      %v1035 = vpop.f32.mrb[0].mxu0
      %v1036 = vadd.f32 0.0, %v1035
      %v1037 = vpop.f32.mrb[0].mxu0
      %1038 = vmatprep.mubr.bf16.mxu0 0
      %1039 = vmatmul.mubr.bf16.gmra.mrb[0].mxu0 %v882
      %v1040 = vpop.f32.mrb[0].mxu0
      %v1041 = vadd.f32 0.0, %v1040
      %v1042 = vpop.f32.mrb[0].mxu0
      %v1043 = vpop.f32.mrb[0].mxu0
      %v1044 = vadd.f32 0.0, %v1043
      %v1045 = vpop.f32.mrb[0].mxu0
      %1046 = vmatprep.mubr.bf16.mxu0 0
      %1047 = vmatmul.mubr.bf16.gmra.mrb[0].mxu0 %v883
      %v1048 = vpop.f32.mrb[0].mxu0
      %v1049 = vadd.f32 0.0, %v1048
      %v1050 = vpop.f32.mrb[0].mxu0
      %v1051 = vpop.f32.mrb[0].mxu0
      %v1052 = vadd.f32 0.0, %v1051
      %v1053 = vpop.f32.mrb[0].mxu0
      %1054 = vmatprep.mubr.bf16.mxu0 0
      %1055 = vmatmul.mubr.bf16.gmra.mrb[0].mxu0 %v884
      %v1056 = vpop.f32.mrb[0].mxu0
      %v1057 = vadd.f32 0.0, %v1056
      %v1058 = vpop.f32.mrb[0].mxu0
      %v1059 = vpop.f32.mrb[0].mxu0
      %v1060 = vadd.f32 0.0, %v1059
      %v1061 = vpop.f32.mrb[0].mxu0
      %1062 = vdwg.mxu0
      %v1063 = vsel %vm806, %v993, %v1001
      %v1064 = vsel %vm806, %v996, %v1004
      %v1065 = vsel %vm806, %v1001, %v1009
      %v1066 = vsel %vm806, %v1004, %v1012
      %v1067 = vsel %vm806, %v1009, %v1017
      %v1068 = vsel %vm806, %v1012, %v1020
      %v1069 = vsel %vm806, %v1017, %v1025
      %v1070 = vsel %vm806, %v1020, %v1028
      %v1071 = vsel %vm806, %v1025, %v1033
      %v1072 = vsel %vm806, %v1028, %v1036
      %v1073 = vsel %vm806, %v1033, %v1041
      %v1074 = vsel %vm806, %v1036, %v1044
      %v1075 = vsel %vm806, %v1041, %v1049
      %v1076 = vsel %vm806, %v1044, %v1052
      %v1077 = vsel %vm806, %v1049, %v1057
      %v1078 = vsel %vm806, %v1052, %v1060
      %v1079 = vsel %vm805, %v985, %v1063
      %v1080 = vsel %vm805, %v988, %v1064
      %v1081 = vsel %vm805, %v993, %v1065
      %v1082 = vsel %vm805, %v996, %v1066
      %v1083 = vsel %vm805, %v1001, %v1067
      %v1084 = vsel %vm805, %v1004, %v1068
      %v1085 = vsel %vm805, %v1009, %v1069
      %v1086 = vsel %vm805, %v1012, %v1070
      %v1087 = vsel %vm805, %v1017, %v1071
      %v1088 = vsel %vm805, %v1020, %v1072
      %v1089 = vsel %vm805, %v1025, %v1073
      %v1090 = vsel %vm805, %v1028, %v1074
      %v1091 = vsel %vm805, %v1033, %v1075
      %v1092 = vsel %vm805, %v1036, %v1076
      %v1093 = vsel %vm805, %v1041, %v1077
      %v1094 = vsel %vm805, %v1044, %v1078
      %v1095 = vadd.f32 %v839, %v1079
      %v1096 = vadd.f32 %v840, %v1080
      %v1097 = vadd.f32 %v841, %v1081
      %v1098 = vadd.f32 %v842, %v1082
      %v1099 = vadd.f32 %v843, %v1083
      %v1100 = vadd.f32 %v844, %v1084
      %v1101 = vadd.f32 %v845, %v1085
      %v1102 = vadd.f32 %v846, %v1086
      %v1103 = vadd.f32 %v847, %v1087
      %v1104 = vadd.f32 %v848, %v1088
      %v1105 = vadd.f32 %v849, %v1089
      %v1106 = vadd.f32 %v850, %v1090
      %v1107 = vadd.f32 %v851, %v1091
      %v1108 = vadd.f32 %v852, %v1092
      %v1109 = vadd.f32 %v853, %v1093
      %v1110 = vadd.f32 %v854, %v1094
      %v1111 = vld [vmem:[#allocation2 + $0x2] sm:$0xff]
      %v1112 = vld [vmem:[#allocation2 + $0xa] sm:$0xff]
      %v1113 = vld [vmem:[#allocation2 + $0x1a] sm:$0xff]
      %v1114 = vld [vmem:[#allocation2 + $0x22] sm:$0xff]
      %v1115 = vld [vmem:[#allocation2 + $0x32] sm:$0xff]
      %v1116 = vld [vmem:[#allocation2 + $0x3a] sm:$0xff]
      %v1117 = vld [vmem:[#allocation2 + $0x4a] sm:$0xff]
      %v1118 = vld [vmem:[#allocation2 + $0x52] sm:$0xff]
      %v1119 = vld [vmem:[#allocation2 + $0x62] sm:$0xff]
      %v1120 = vld [vmem:[#allocation2 + $0x6a] sm:$0xff]
      %v1121 = vld [vmem:[#allocation2 + $0x7a] sm:$0xff]
      %v1122 = vld [vmem:[#allocation2 + $0x82] sm:$0xff]
      %v1123 = vld [vmem:[#allocation2 + $0x92] sm:$0xff]
      %v1124 = vld [vmem:[#allocation2 + $0x9a] sm:$0xff]
      %v1125 = vld [vmem:[#allocation2 + $0xaa] sm:$0xff]
      %v1126 = vld [vmem:[#allocation2 + $0xb2] sm:$0xff]
      %v1127 = vld [vmem:[#allocation2 + $0xc2] sm:$0xff]
      %v1128 = vld [vmem:[#allocation2 + $0xca] sm:$0xff]
      %v1129 = vld [vmem:[#allocation2 + $0xda] sm:$0xff]
      %v1130 = vld [vmem:[#allocation2 + $0xe2] sm:$0xff]
      %v1131 = vpack.c.bf16 %v1112, %v1111
      %v1132 = vpack.c.bf16 %v1114, %v1113
      %v1133 = vpack.c.bf16 %v1116, %v1115
      %v1134 = vpack.c.bf16 %v1118, %v1117
      %v1135 = vpack.c.bf16 %v1120, %v1119
      %v1136 = vpack.c.bf16 %v1122, %v1121
      %v1137 = vpack.c.bf16 %v1124, %v1123
      %v1138 = vpack.c.bf16 %v1126, %v1125
      %v1139 = vpack.c.bf16 %v1128, %v1127
      %v1140 = vpack.c.bf16 %v1130, %v1129
      %s1141 = scalar_lea.vmem %s5, 128
      %v1142 = vld [vmem:[%s1141] sm:$0xf]
      %v1143 = vld [vmem:[%s1141 + $0x4] sm:$0xf]
      %v1144 = vld [vmem:[%s1141 + $0x8] sm:$0xf]
      %v1145 = vld [vmem:[%s1141 + $0xc] sm:$0xf]
      %v1146 = vld [vmem:[%s1141 + $0x10] sm:$0xf]
      %v1147 = vld [vmem:[%s1141 + $0x14] sm:$0xf]
      %v1148 = vld [vmem:[%s1141 + $0x18] sm:$0xf]
      %v1149 = vld [vmem:[%s1141 + $0x1c] sm:$0xf]
      %v1150 = vld [vmem:[%s1141 + $0x20] sm:$0xf]
      %v1151 = vld [vmem:[%s1141 + $0x24] sm:$0xf]
      %v1152 = vld [vmem:[%s1141 + $0x28] sm:$0xf]
      %v1153 = vld [vmem:[%s1141 + $0x2c] sm:$0xf]
      %v1154 = vld [vmem:[%s1141 + $0x30] sm:$0xf]
      %v1155 = vld [vmem:[%s1141 + $0x34] sm:$0xf]
      %v1156 = vld [vmem:[%s1141 + $0x38] sm:$0xf]
      %v1157 = vld [vmem:[%s1141 + $0x3c] sm:$0xf]
      %v1174 = vunpack.c.l.b16 %v1142
      %v1175 = vunpack.c.l.b16 %v1143
      %v1176 = vunpack.c.l.b16 %v1144
      %v1177 = vunpack.c.l.b16 %v1145
      %v1178 = vunpack.c.l.b16 %v1146
      %v1179 = vunpack.c.l.b16 %v1147
      %v1180 = vunpack.c.l.b16 %v1148
      %v1181 = vunpack.c.l.b16 %v1149
      %v1182 = vunpack.c.l.b16 %v1150
      %v1183 = vunpack.c.l.b16 %v1151
      %v1184 = vunpack.c.l.b16 %v1152
      %v1185 = vunpack.c.l.b16 %v1153
      %v1186 = vunpack.c.l.b16 %v1154
      %v1187 = vunpack.c.l.b16 %v1155
      %v1188 = vunpack.c.l.b16 %v1156
      %v1189 = vunpack.c.l.b16 %v1157
      %v1190 = vpack.c.b16 %v1175, %v1174
      %v1191 = vpack.c.b16 %v1177, %v1176
      %v1192 = vpack.c.b16 %v1179, %v1178
      %v1193 = vpack.c.b16 %v1181, %v1180
      %v1194 = vpack.c.b16 %v1183, %v1182
      %v1195 = vpack.c.b16 %v1185, %v1184
      %v1196 = vpack.c.b16 %v1187, %v1186
      %v1197 = vpack.c.b16 %v1189, %v1188
      %1206 = vmatprep.subr.bf16.mxu0 0
      %1207 = vmatpush1.bf16.msra.mxu0 %v1190
      %1208 = vmatprep.subr.bf16.mxu0 0
      %1209 = vmatpush1.bf16.msra.mxu0 %v1191
      %1210 = vmatprep.subr.bf16.mxu0 0
      %1211 = vmatpush1.bf16.msra.mxu0 %v1192
      %1212 = vmatprep.subr.bf16.mxu0 0
      %1213 = vmatpush1.bf16.msra.mxu0 %v1193
      %1214 = vmatprep.subr.bf16.mxu0 0
      %1215 = vmatpush1.bf16.msra.mxu0 %v1194
      %1216 = vmatprep.subr.bf16.mxu0 0
      %1217 = vmatpush1.bf16.msra.mxu0 %v1195
      %1218 = vmatprep.subr.bf16.mxu0 0
      %1219 = vmatpush1.bf16.msra.mxu0 %v1196
      %1220 = vmatprep.subr.bf16.mxu0 0
      %1221 = vmatpush1.bf16.msra.mxu0 %v1197
      %1222 = vmatprep.subr.bf16.mxu0 0
      %1223 = vmatpush1.bf16.msra.mxu0 0
      %1224 = vmatprep.subr.bf16.mxu0 0
      %1225 = vmatpush1.bf16.msra.mxu0 0
      %1226 = vmatprep.subr.bf16.mxu0 0
      %1227 = vmatpush1.bf16.msra.mxu0 0
      %1228 = vmatprep.subr.bf16.mxu0 0
      %1229 = vmatpush1.bf16.msra.mxu0 0
      %1230 = vmatprep.subr.bf16.mxu0 0
      %1231 = vmatpush1.bf16.msra.mxu0 0
      %1232 = vmatprep.subr.bf16.mxu0 0
      %1233 = vmatpush1.bf16.msra.mxu0 0
      %1234 = vmatprep.subr.bf16.mxu0 0
      %1235 = vmatpush1.bf16.msra.mxu0 0
      %1236 = vmatprep.subr.bf16.mxu0 0
      %1237 = vmatpush1.bf16.msra.mxu0 0
      %1238 = vmatprep.mubr.bf16.mxu0 0
      %1239 = vmatmul.mubr.bf16.gmra.mrb[0].mxu0 %v1131
      %v1240 = vpop.f32.mrb[0].mxu0
      %v1241 = vadd.f32 0.0, %v1240
      %v1242 = vpop.f32.mrb[0].mxu0
      %v1243 = vpop.f32.mrb[0].mxu0
      %v1244 = vadd.f32 0.0, %v1243
      %v1245 = vpop.f32.mrb[0].mxu0
      %1246 = vmatprep.mubr.bf16.mxu0 0
      %1247 = vmatmul.mubr.bf16.gmra.mrb[0].mxu0 %v1132
      %v1248 = vpop.f32.mrb[0].mxu0
      %v1249 = vadd.f32 0.0, %v1248
      %v1250 = vpop.f32.mrb[0].mxu0
      %v1251 = vpop.f32.mrb[0].mxu0
      %v1252 = vadd.f32 0.0, %v1251
      %v1253 = vpop.f32.mrb[0].mxu0
      %1254 = vmatprep.mubr.bf16.mxu0 0
      %1255 = vmatmul.mubr.bf16.gmra.mrb[0].mxu0 %v1133
      %v1256 = vpop.f32.mrb[0].mxu0
      %v1257 = vadd.f32 0.0, %v1256
      %v1258 = vpop.f32.mrb[0].mxu0
      %v1259 = vpop.f32.mrb[0].mxu0
      %v1260 = vadd.f32 0.0, %v1259
      %v1261 = vpop.f32.mrb[0].mxu0
      %1262 = vmatprep.mubr.bf16.mxu0 0
      %1263 = vmatmul.mubr.bf16.gmra.mrb[0].mxu0 %v1134
      %v1264 = vpop.f32.mrb[0].mxu0
      %v1265 = vadd.f32 0.0, %v1264
      %v1266 = vpop.f32.mrb[0].mxu0
      %v1267 = vpop.f32.mrb[0].mxu0
      %v1268 = vadd.f32 0.0, %v1267
      %v1269 = vpop.f32.mrb[0].mxu0
      %1270 = vmatprep.mubr.bf16.mxu0 0
      %1271 = vmatmul.mubr.bf16.gmra.mrb[0].mxu0 %v1135
      %v1272 = vpop.f32.mrb[0].mxu0
      %v1273 = vadd.f32 0.0, %v1272
      %v1274 = vpop.f32.mrb[0].mxu0
      %v1275 = vpop.f32.mrb[0].mxu0
      %v1276 = vadd.f32 0.0, %v1275
      %v1277 = vpop.f32.mrb[0].mxu0
      %1278 = vmatprep.mubr.bf16.mxu0 0
      %1279 = vmatmul.mubr.bf16.gmra.mrb[0].mxu0 %v1136
      %v1280 = vpop.f32.mrb[0].mxu0
      %v1281 = vadd.f32 0.0, %v1280
      %v1282 = vpop.f32.mrb[0].mxu0
      %v1283 = vpop.f32.mrb[0].mxu0
      %v1284 = vadd.f32 0.0, %v1283
      %v1285 = vpop.f32.mrb[0].mxu0
      %1286 = vmatprep.mubr.bf16.mxu0 0
      %1287 = vmatmul.mubr.bf16.gmra.mrb[0].mxu0 %v1137
      %v1288 = vpop.f32.mrb[0].mxu0
      %v1289 = vadd.f32 0.0, %v1288
      %v1290 = vpop.f32.mrb[0].mxu0
      %v1291 = vpop.f32.mrb[0].mxu0
      %v1292 = vadd.f32 0.0, %v1291
      %v1293 = vpop.f32.mrb[0].mxu0
      %1294 = vmatprep.mubr.bf16.mxu0 0
      %1295 = vmatmul.mubr.bf16.gmra.mrb[0].mxu0 %v1138
      %v1296 = vpop.f32.mrb[0].mxu0
      %v1297 = vadd.f32 0.0, %v1296
      %v1298 = vpop.f32.mrb[0].mxu0
      %v1299 = vpop.f32.mrb[0].mxu0
      %v1300 = vadd.f32 0.0, %v1299
      %v1301 = vpop.f32.mrb[0].mxu0
      %1302 = vmatprep.mubr.bf16.mxu0 0
      %1303 = vmatmul.mubr.bf16.gmra.mrb[0].mxu0 %v1139
      %v1304 = vpop.f32.mrb[0].mxu0
      %v1305 = vadd.f32 0.0, %v1304
      %v1306 = vpop.f32.mrb[0].mxu0
      %v1307 = vpop.f32.mrb[0].mxu0
      %v1308 = vadd.f32 0.0, %v1307
      %v1309 = vpop.f32.mrb[0].mxu0
      %1310 = vmatprep.mubr.bf16.mxu0 0
      %1311 = vmatmul.mubr.bf16.gmra.mrb[0].mxu0 %v1140
      %v1312 = vpop.f32.mrb[0].mxu0
      %v1313 = vadd.f32 0.0, %v1312
      %v1314 = vpop.f32.mrb[0].mxu0
      %v1315 = vpop.f32.mrb[0].mxu0
      %v1316 = vadd.f32 0.0, %v1315
      %v1317 = vpop.f32.mrb[0].mxu0
      %1318 = vdwg.mxu0
      %v1319 = vsel %vm806, %v1249, %v1257
      %v1320 = vsel %vm806, %v1252, %v1260
      %v1321 = vsel %vm806, %v1257, %v1265
      %v1322 = vsel %vm806, %v1260, %v1268
      %v1323 = vsel %vm806, %v1265, %v1273
      %v1324 = vsel %vm806, %v1268, %v1276
      %v1325 = vsel %vm806, %v1273, %v1281
      %v1326 = vsel %vm806, %v1276, %v1284
      %v1327 = vsel %vm806, %v1281, %v1289
      %v1328 = vsel %vm806, %v1284, %v1292
      %v1329 = vsel %vm806, %v1289, %v1297
      %v1330 = vsel %vm806, %v1292, %v1300
      %v1331 = vsel %vm806, %v1297, %v1305
      %v1332 = vsel %vm806, %v1300, %v1308
      %v1333 = vsel %vm806, %v1305, %v1313
      %v1334 = vsel %vm806, %v1308, %v1316
      %v1335 = vsel %vm805, %v1241, %v1319
      %v1336 = vsel %vm805, %v1244, %v1320
      %v1337 = vsel %vm805, %v1249, %v1321
      %v1338 = vsel %vm805, %v1252, %v1322
      %v1339 = vsel %vm805, %v1257, %v1323
      %v1340 = vsel %vm805, %v1260, %v1324
      %v1341 = vsel %vm805, %v1265, %v1325
      %v1342 = vsel %vm805, %v1268, %v1326
      %v1343 = vsel %vm805, %v1273, %v1327
      %v1344 = vsel %vm805, %v1276, %v1328
      %v1345 = vsel %vm805, %v1281, %v1329
      %v1346 = vsel %vm805, %v1284, %v1330
      %v1347 = vsel %vm805, %v1289, %v1331
      %v1348 = vsel %vm805, %v1292, %v1332
      %v1349 = vsel %vm805, %v1297, %v1333
      %v1350 = vsel %vm805, %v1300, %v1334
      %v1351 = vadd.f32 %v1095, %v1335
      %v1352 = vadd.f32 %v1096, %v1336
      %v1353 = vadd.f32 %v1097, %v1337
      %v1354 = vadd.f32 %v1098, %v1338
      %v1355 = vadd.f32 %v1099, %v1339
      %v1356 = vadd.f32 %v1100, %v1340
      %v1357 = vadd.f32 %v1101, %v1341
      %v1358 = vadd.f32 %v1102, %v1342
      %v1359 = vadd.f32 %v1103, %v1343
      %v1360 = vadd.f32 %v1104, %v1344
      %v1361 = vadd.f32 %v1105, %v1345
      %v1362 = vadd.f32 %v1106, %v1346
      %v1363 = vadd.f32 %v1107, %v1347
      %v1364 = vadd.f32 %v1108, %v1348
      %v1365 = vadd.f32 %v1109, %v1349
      %v1366 = vadd.f32 %v1110, %v1350
      %1367 = vrot.lane.b32.xlu0 %v1351, 96
      %v1368 = vpop.permute.xlu0 %1367
      %1369 = vrot.lane.b32.xlu0 %v1352, 96
      %v1370 = vpop.permute.xlu0 %1369
      %1371 = vrot.lane.b32.xlu0 %v1353, 96
      %v1372 = vpop.permute.xlu0 %1371
      %1373 = vrot.lane.b32.xlu0 %v1354, 96
      %v1374 = vpop.permute.xlu0 %1373
      %1375 = vrot.lane.b32.xlu0 %v1355, 96
      %v1376 = vpop.permute.xlu0 %1375
      %1377 = vrot.lane.b32.xlu0 %v1356, 96
      %v1378 = vpop.permute.xlu0 %1377
      %1379 = vrot.lane.b32.xlu0 %v1357, 96
      %v1380 = vpop.permute.xlu0 %1379
      %1381 = vrot.lane.b32.xlu0 %v1358, 96
      %v1382 = vpop.permute.xlu0 %1381
      %1383 = vrot.lane.b32.xlu0 %v1359, 96
      %v1384 = vpop.permute.xlu0 %1383
      %1385 = vrot.lane.b32.xlu0 %v1360, 96
      %v1386 = vpop.permute.xlu0 %1385
      %1387 = vrot.lane.b32.xlu0 %v1361, 96
      %v1388 = vpop.permute.xlu0 %1387
      %1389 = vrot.lane.b32.xlu0 %v1362, 96
      %v1390 = vpop.permute.xlu0 %1389
      %1391 = vrot.lane.b32.xlu0 %v1363, 96
      %v1392 = vpop.permute.xlu0 %1391
      %1393 = vrot.lane.b32.xlu0 %v1364, 96
      %v1394 = vpop.permute.xlu0 %1393
      %1395 = vrot.lane.b32.xlu0 %v1365, 96
      %v1396 = vpop.permute.xlu0 %1395
      %1397 = vrot.lane.b32.xlu0 %v1366, 96
      %v1398 = vpop.permute.xlu0 %1397
      %v1399 = vadd.f32 %v1351, %v1368
      %v1400 = vadd.f32 %v1352, %v1370
      %v1401 = vadd.f32 %v1353, %v1372
      %v1402 = vadd.f32 %v1354, %v1374
      %v1403 = vadd.f32 %v1355, %v1376
      %v1404 = vadd.f32 %v1356, %v1378
      %v1405 = vadd.f32 %v1357, %v1380
      %v1406 = vadd.f32 %v1358, %v1382
      %v1407 = vadd.f32 %v1359, %v1384
      %v1408 = vadd.f32 %v1360, %v1386
      %v1409 = vadd.f32 %v1361, %v1388
      %v1410 = vadd.f32 %v1362, %v1390
      %v1411 = vadd.f32 %v1363, %v1392
      %v1412 = vadd.f32 %v1364, %v1394
      %v1413 = vadd.f32 %v1365, %v1396
      %v1414 = vadd.f32 %v1366, %v1398
      %1415 = vrot.lane.b32.xlu0 %v1351, 64
      %v1416 = vpop.permute.xlu0 %1415
      %1417 = vrot.lane.b32.xlu0 %v1352, 64
      %v1418 = vpop.permute.xlu0 %1417
      %1419 = vrot.lane.b32.xlu0 %v1353, 64
      %v1420 = vpop.permute.xlu0 %1419
      %1421 = vrot.lane.b32.xlu0 %v1354, 64
      %v1422 = vpop.permute.xlu0 %1421
      %1423 = vrot.lane.b32.xlu0 %v1355, 64
      %v1424 = vpop.permute.xlu0 %1423
      %1425 = vrot.lane.b32.xlu0 %v1356, 64
      %v1426 = vpop.permute.xlu0 %1425
      %1427 = vrot.lane.b32.xlu0 %v1357, 64
      %v1428 = vpop.permute.xlu0 %1427
      %1429 = vrot.lane.b32.xlu0 %v1358, 64
      %v1430 = vpop.permute.xlu0 %1429
      %1431 = vrot.lane.b32.xlu0 %v1359, 64
      %v1432 = vpop.permute.xlu0 %1431
      %1433 = vrot.lane.b32.xlu0 %v1360, 64
      %v1434 = vpop.permute.xlu0 %1433
      %1435 = vrot.lane.b32.xlu0 %v1361, 64
      %v1436 = vpop.permute.xlu0 %1435
      %1437 = vrot.lane.b32.xlu0 %v1362, 64
      %v1438 = vpop.permute.xlu0 %1437
      %1439 = vrot.lane.b32.xlu0 %v1363, 64
      %v1440 = vpop.permute.xlu0 %1439
      %1441 = vrot.lane.b32.xlu0 %v1364, 64
      %v1442 = vpop.permute.xlu0 %1441
      %1443 = vrot.lane.b32.xlu0 %v1365, 64
      %v1444 = vpop.permute.xlu0 %1443
      %1445 = vrot.lane.b32.xlu0 %v1366, 64
      %v1446 = vpop.permute.xlu0 %1445
      %v1447 = vadd.f32 %v1399, %v1416
      %v1448 = vadd.f32 %v1400, %v1418
      %v1449 = vadd.f32 %v1401, %v1420
      %v1450 = vadd.f32 %v1402, %v1422
      %v1451 = vadd.f32 %v1403, %v1424
      %v1452 = vadd.f32 %v1404, %v1426
      %v1453 = vadd.f32 %v1405, %v1428
      %v1454 = vadd.f32 %v1406, %v1430
      %v1455 = vadd.f32 %v1407, %v1432
      %v1456 = vadd.f32 %v1408, %v1434
      %v1457 = vadd.f32 %v1409, %v1436
      %v1458 = vadd.f32 %v1410, %v1438
      %v1459 = vadd.f32 %v1411, %v1440
      %v1460 = vadd.f32 %v1412, %v1442
      %v1461 = vadd.f32 %v1413, %v1444
      %v1462 = vadd.f32 %v1414, %v1446
      %v1463 = vld [vmem:[%s6] sm:$0x1]
      %v1465 = vlaneseq
      %v1466 = vshrl.u32 %v1465, 7
      %v1467 = vsub.s32 0, %v1466
      %v1468 = vrot.slane %v1463, %v1467
      %v1470 = vadd.f32 %v1447, %v1468
      %v1471 = vadd.f32 %v1448, %v1468
      %v1472 = vadd.f32 %v1449, %v1468
      %v1473 = vadd.f32 %v1450, %v1468
      %v1474 = vadd.f32 %v1451, %v1468
      %v1475 = vadd.f32 %v1452, %v1468
      %v1476 = vadd.f32 %v1453, %v1468
      %v1477 = vadd.f32 %v1454, %v1468
      %v1478 = vadd.f32 %v1455, %v1468
      %v1479 = vadd.f32 %v1456, %v1468
      %v1480 = vadd.f32 %v1457, %v1468
      %v1481 = vadd.f32 %v1458, %v1468
      %v1482 = vadd.f32 %v1459, %v1468
      %v1483 = vadd.f32 %v1460, %v1468
      %v1484 = vadd.f32 %v1461, %v1468
      %v1485 = vadd.f32 %v1462, %v1468
      %vm1486 = vcmask 261120
      %1487 = vst.msk [vmem:[%s445] sm:$0xff] %vm1486, %v1470
      %1488 = vst.msk [vmem:[%s445 + $0x8] sm:$0xff] %vm1486, %v1471
      %1489 = vst.msk [vmem:[%s445 + $0x10] sm:$0xff] %vm1486, %v1472
      %1490 = vst.msk [vmem:[%s445 + $0x18] sm:$0xff] %vm1486, %v1473
      %1491 = vst.msk [vmem:[%s445 + $0x20] sm:$0xff] %vm1486, %v1474
      %1492 = vst.msk [vmem:[%s445 + $0x28] sm:$0xff] %vm1486, %v1475
      %1493 = vst.msk [vmem:[%s445 + $0x30] sm:$0xff] %vm1486, %v1476
      %1494 = vst.msk [vmem:[%s445 + $0x38] sm:$0xff] %vm1486, %v1477
      %1495 = vst.msk [vmem:[%s445 + $0x40] sm:$0xff] %vm1486, %v1478
      %1496 = vst.msk [vmem:[%s445 + $0x48] sm:$0xff] %vm1486, %v1479
      %1497 = vst.msk [vmem:[%s445 + $0x50] sm:$0xff] %vm1486, %v1480
      %1498 = vst.msk [vmem:[%s445 + $0x58] sm:$0xff] %vm1486, %v1481
      %1499 = vst.msk [vmem:[%s445 + $0x60] sm:$0xff] %vm1486, %v1482
      %1500 = vst.msk [vmem:[%s445 + $0x68] sm:$0xff] %vm1486, %v1483
      %1501 = vst.msk [vmem:[%s445 + $0x70] sm:$0xff] %vm1486, %v1484
      %1502 = vst.msk [vmem:[%s445 + $0x78] sm:$0xff] %vm1486, %v1485
      %s1503 = smul.u32 8, %s23
      %p1504 = scmp.lt.s32.totalorder %s22, 1
      %s1505 = scalar_select %p1504, %s22, 1
      %p1506 = scmp.lt.s32.totalorder %s1503, 15
      %s1507 = scalar_select %p1506, %s1503, 15
      %s1508 = smul.addr %s1507, 2
      %s1509 = smul.addr %s1505, 32
      %s1510 = sadd.s32 %s1508, %s1509
      %s1511 = smul.addr %s1510, 8
      %s1512 = scalar_lea.vmem %s7, %s1511
      // Predicated region
      $region49: #{bottleneck_forward.3} parent=47 // pred_check
        %p1513 = pneg %p234
      $region50: #{bottleneck_forward.3} parent=47 // pred_check_branch
        %1515 = sbr.rel (%p1513) target = $region52
      $region51: #{bottleneck_forward.3} parent=47 // pred_region
        %s1516 = smul.u32 8, %s23
      $region52: #{bottleneck_forward.3} parent=47 // pred_fallthru
        _
    $region48: #{bottleneck_forward.3} parent=5 // pred_fallthru
      _
    %p1517 = scmp.le.s32.totalorder 2, %s13
    // Predicated region
    $region53: #{bottleneck_forward.3} parent=5 // pred_check
      %p1518 = pneg %p1517
    $region54: #{bottleneck_forward.3} parent=5 // pred_check_branch
      %1520 = sbr.rel (%p1518) target = $region56
    $region55: #{bottleneck_forward.3} parent=5 // pred_region
      %s1521 = ssub.s32 %s13, 2
      // Predicated region
      $region57: #{bottleneck_forward.3} parent=55 // pred_check
        %p1522 = pneg %p240
      $region58: #{bottleneck_forward.3} parent=55 // pred_check_branch
        %1524 = sbr.rel (%p1522) target = $region60
      $region59: #{bottleneck_forward.3} parent=55 // pred_region
        %s1525 = smul.u32 8, %s25
        %p1526 = scmp.lt.s32.totalorder %s24, 1
        %s1527 = scalar_select %p1526, %s24, 1
        %p1528 = scmp.lt.s32.totalorder %s1525, 15
        %s1529 = scalar_select %p1528, %s1525, 15
        %s1530 = smul.addr %s1529, 2
        %s1531 = smul.addr %s1527, 32
        %s1532 = sadd.s32 %s1530, %s1531
        %s1533 = smul.addr %s1532, 8
        %s1534 = scalar_lea.vmem %s7, %s1533
      $region60: #{bottleneck_forward.3} parent=55 // pred_fallthru
        _
    $region56: #{bottleneck_forward.3} parent=5 // pred_fallthru
      _
  $region6: #{bottleneck_forward.3} parent=0 // loop_footer
    %s17 = sadd.s32 1, %s13
  $region7: #{bottleneck_forward.3} parent=0 // loop_footer_branch
    %12 = sbr.rel target = $region3
  $region8: #{bottleneck_forward.3} parent=0 // loop_exit
    _

</llo_original>
